<compile_context>
chip_gen: v5e
topology: v5e:2x2
jax: 0.10.0
libtpu: 0.0.40
codegen_flags: <defaults>
</compile_context>

<pallas_src>
import functools

import jax
import jax.numpy as jnp
from jax.experimental import pallas as pl
from jax.experimental.pallas import tpu as pltpu


LAMBDA1 = LAMBDA2 = LAMBDA3 = 1.0   # args.lambda1/2/3
N_HOOKED_LAYERS = 2                 # two Conv modules are hooked

_VMEM = pl.BlockSpec(memory_space=pltpu.MemorySpace.VMEM)


# ---------------------------------------------------------------------------
# Pallas kernels
# ---------------------------------------------------------------------------

def _conv_mm_kernel(w_ref, x_ref, b_ref, pre_ref, relu_ref):
    # w: (1, C_out, K), x: (1, K, TM), b: (1, C_out, 1)
    # pre/relu: (1, C_out, TM)  -- lane-dense outputs (TM multiple of 128).
    w = w_ref[0].astype(jnp.bfloat16)
    xc = x_ref[0].astype(jnp.bfloat16)
    acc = jnp.dot(w, xc, preferred_element_type=jnp.float32)
    pre = acc + b_ref[0]                      # bias broadcast over lanes
    pre_ref[0] = pre                          # pre-ReLU ("Conv" forward hook)
    relu_ref[0] = jnp.maximum(pre, 0.0)       # fused ReLU epilogue


def _dual_loss_kernel(a1_ref, g1_ref, a2_ref, g2_ref,
                      sh_ref, sw_ref, gh_ref, gw_ref,
                      lp_ref, lq_ref, o_ref):
    """Fused POD(conv1) + POD(conv2) + JSD(logits) -> scalar activation loss.

    Activations are (C, M) with M = N*H*W (lane-dense).  S_h: (M, N*H), S_w: (M, N*W)
    map the flat spatial index to per-(n,h) / per-(n,w) sum groups; G_h: (N*H, N),
    G_w: (N*W, N) collapse those groups to per-sample sums.
    """
    sh = sh_ref[...]
    sw = sw_ref[...]
    gh = gh_ref[...]
    gw = gw_ref[...]

    def pod_pair(a, b):
        a = a.astype(jnp.float32)
        b = b.astype(jnp.float32)
        a2 = a * a
        b2 = b * b
        # a.pow(2).sum(dim=3) / .sum(dim=2) as small MXU matmuls (stay 2-D, lane-dense).
        a_h = jnp.dot(a2, sh, preferred_element_type=jnp.float32)  # (C, N*H)
        a_w = jnp.dot(a2, sw, preferred_element_type=jnp.float32)  # (C, N*W)
        b_h = jnp.dot(b2, sh, preferred_element_type=jnp.float32)
        b_w = jnp.dot(b2, sw, preferred_element_type=jnp.float32)

        def per_sample(t_h, t_w):
            # sum over channels then over the sample's H (resp. W) columns -> (1, N)
            col_h = jnp.sum(t_h, axis=0, keepdims=True)
            col_w = jnp.sum(t_w, axis=0, keepdims=True)
            return (jnp.dot(col_h, gh, preferred_element_type=jnp.float32)
                    + jnp.dot(col_w, gw, preferred_element_type=jnp.float32))

        na2 = per_sample(a_h * a_h, a_w * a_w)        # ||a||^2 per sample  (1, N)
        nb2 = per_sample(b_h * b_h, b_w * b_w)        # ||b||^2 per sample
        ab = per_sample(a_h * b_h, a_w * b_w)         # <a, b>  per sample
        na = jnp.maximum(jnp.sqrt(na2), 1e-12)        # F.normalize eps
        nb = jnp.maximum(jnp.sqrt(nb2), 1e-12)
        # ||a/na - b/nb||^2 expanded -- identical to frobenius_norm(a_hat - b_hat).
        d2 = na2 / (na * na) + nb2 / (nb * nb) - 2.0 * ab / (na * nb)
        d2 = jnp.maximum(d2, 0.0)
        return jnp.mean(jnp.sqrt(d2))                 # mean over batch

    pod1 = pod_pair(a1_ref[...], g1_ref[...])
    pod2 = pod_pair(a2_ref[...], g2_ref[...])

    # ---- JSD(global_logits, online_logits), T=1, KLDivLoss(reduction='batchmean')
    xp = lp_ref[...].astype(jnp.float32)              # global logits  (input_p)
    xq = lq_ref[...].astype(jnp.float32)              # online logits  (input_q)
    n_batch = lp_ref.shape[0]

    def softmax(z):
        m = jnp.max(z, axis=1, keepdims=True)
        e = jnp.exp(z - m)
        return e / jnp.sum(e, axis=1, keepdims=True)

    eps = 2e-45                 # set_epsilon (subnormal; flushed on TPU)
    tiny = 1.1754944e-38        # smallest normal f32: keeps log() finite on TPU
    p = jnp.maximum(eps + (1.0 - eps) * softmax(xp), tiny)
    q = jnp.maximum(eps + (1.0 - eps) * softmax(xq), tiny)
    m = 0.5 * (p + q)
    logm = jnp.log(m)
    kl_p = jnp.sum(p * (jnp.log(p) - logm)) / n_batch
    kl_q = jnp.sum(q * (jnp.log(q) - logm)) / n_batch
    jsd = 0.5 * (kl_p + kl_q)

    # pod([conv1])/n_layers, pod([conv2])/n_layers, lambda-weighted sum.
    loss = (LAMBDA1 * pod1 / N_HOOKED_LAYERS
            + LAMBDA2 * pod2 / N_HOOKED_LAYERS
            + LAMBDA3 * jsd)
    o_ref[...] = jnp.broadcast_to(loss, (1, 1))


# ---------------------------------------------------------------------------
# Wrappers
# ---------------------------------------------------------------------------

def conv3x3_models(cols, weights, biases, *, shared_cols):
    """Batched-over-models 3x3 conv as matmul: (B,C_out,K) @ (.,K,M) -> (B,C_out,M).

    cols:    (1, K, M) if shared_cols (same input for every model) else (B, K, M)
    weights: (B, C_out, C_in, 3, 3)
    biases:  (B, C_out)
    Returns (pre_act, relu) each (B, C_out, M), M = N*H*W (lane-dense).
    """
    B, C_out = weights.shape[0], weights.shape[1]
    K = weights.shape[2] * 9
    M = cols.shape[-1]
    TM = M if M <= 512 else 512
    assert M % TM == 0 and TM % 128 == 0

    w2 = weights.reshape(B, C_out, K).astype(jnp.float32)
    b2 = biases.reshape(B, C_out, 1).astype(jnp.float32)

    cols_idx = (lambda b, m: (0, 0, m)) if shared_cols else (lambda b, m: (b, 0, m))
    out_spec = pl.BlockSpec((1, C_out, TM), lambda b, m: (b, 0, m))

    pre, relu = pl.pallas_call(
        _conv_mm_kernel,
        out_shape=(jax.ShapeDtypeStruct((B, C_out, M), jnp.float32),
                   jax.ShapeDtypeStruct((B, C_out, M), jnp.float32)),
        grid=(B, M // TM),
        in_specs=[pl.BlockSpec((1, C_out, K), lambda b, m: (b, 0, 0)),
                  pl.BlockSpec((1, K, TM), cols_idx),
                  pl.BlockSpec((1, C_out, 1), lambda b, m: (b, 0, 0))],
        out_specs=(out_spec, out_spec),
        compiler_params=pltpu.CompilerParams(
            dimension_semantics=("parallel", "parallel")),
    )(w2, cols.astype(jnp.float32), b2)
    return pre, relu


def _im2col_3x3_cm(x_cnhw):
    """Channel-major im2col: (C, N, H, W) -> (C*9, N*H*W); K index = c*9 + kh*3 + kw,
    column index = (n, h, w) flattened -- matches the flipped matmul orientation."""
    C, N, H, W = x_cnhw.shape
    xp = jnp.pad(x_cnhw, ((0, 0), (0, 0), (1, 1), (1, 1)))
    patches = [xp[:, :, i:i + H, j:j + W] for i in range(3) for j in range(3)]
    p = jnp.stack(patches, axis=1)                 # (C, 9, N, H, W)
    return p.reshape(C * 9, N * H * W)


def _pod_selection_mats(N, H, W):
    """Constant selection / grouping matrices for the fused POD kernel."""
    M = N * H * W
    m = jnp.arange(M)
    gh_idx = m // W                                # -> n*H + h
    gw_idx = (m // (H * W)) * W + (m % W)          # -> n*W + w
    s_h = (gh_idx[:, None] == jnp.arange(N * H)[None, :]).astype(jnp.float32)
    s_w = (gw_idx[:, None] == jnp.arange(N * W)[None, :]).astype(jnp.float32)
    g_h = ((jnp.arange(N * H) // H)[:, None] == jnp.arange(N)[None, :]).astype(jnp.float32)
    g_w = ((jnp.arange(N * W) // W)[:, None] == jnp.arange(N)[None, :]).astype(jnp.float32)
    return s_h, s_w, g_h, g_w


# ---------------------------------------------------------------------------
# Synthetic CNN forward (B models in one pass; B=2 for online+global)
# ---------------------------------------------------------------------------

def run_models(x_nchw, params_list):
    """Run `len(params_list)` models on the same input x.

    Returns (logits (B, N, num_classes), (pre1, pre2)) where pre1/pre2 are the
    pre-ReLU conv activations (B, C, N*H*W) -- the "Conv" forward-hook captures.
    """
    B = len(params_list)
    N, C_in, H, W = x_nchw.shape
    M = N * H * W

    # Conv1: both models share the im2col of x (identical input) -> one shared block.
    x_cm = jnp.transpose(x_nchw, (1, 0, 2, 3))                    # (C_in, N, H, W)
    cols1 = _im2col_3x3_cm(x_cm)[None]                            # (1, C_in*9, M)
    w1 = jnp.stack([p["w1"] for p in params_list])
    b1 = jnp.stack([p["b1"] for p in params_list])
    pre1, relu1 = conv3x3_models(cols1, w1, b1, shared_cols=True)  # (B, C1, M)

    # Conv2: per-model im2col of its own ReLU'd conv1 output.
    C1 = w1.shape[1]
    relu1_cm = relu1.reshape(B, C1, N, H, W)                      # pure reshape
    cols2 = jnp.stack([_im2col_3x3_cm(relu1_cm[i]) for i in range(B)])  # (B, C1*9, M)
    w2 = jnp.stack([p["w2"] for p in params_list])
    b2 = jnp.stack([p["b2"] for p in params_list])
    pre2, relu2 = conv3x3_models(cols2, w2, b2, shared_cols=False)  # (B, C2, M)

    # Global average pool + tiny linear head in plain JAX (sub-MXU-pass sized).
    C2 = w2.shape[1]
    pooled = jnp.mean(relu2.reshape(B, C2, N, H * W), axis=-1)    # (B, C2, N)
    pooled = jnp.transpose(pooled, (0, 2, 1))                     # (B, N, C2)
    wf = jnp.stack([p["wf"] for p in params_list])                # (B, classes, C2)
    bf = jnp.stack([p["bf"] for p in params_list])                # (B, classes)
    logits = jnp.einsum("bnc,bkc->bnk", pooled, wf) + bf[:, None, :]
    return logits, (pre1, pre2)


@functools.partial(jax.jit, static_argnames=("online_target",))
def dual_model_forward(x, online_params, global_params, online_target=True):
    if not online_target:
        logits, _ = run_models(x, [online_params])
        return logits[0]

    logits, (pre1, pre2) = run_models(x, [online_params, global_params])
    logits_online, logits_global = logits[0], logits[1]

    N, _, H, W = x.shape
    s_h, s_w, g_h, g_w = _pod_selection_mats(N, H, W)

    # One fused kernel: POD(conv1 pair) + POD(conv2 pair) + JSD(global, online).
    loss = pl.pallas_call(
        _dual_loss_kernel,
        out_shape=jax.ShapeDtypeStruct((1, 1), jnp.float32),
        in_specs=[_VMEM] * 10,
        out_specs=_VMEM,
    )(pre1[0], pre1[1], pre2[0], pre2[1],
      s_h, s_w, g_h, g_w,
      logits_global, logits_online)

    # TODO(synk): torch.isfinite checks + exit(1) parameter-NaN diagnostics are
    # host-side control flow and are not reproduced inside the kernel.
    return logits_online, loss[0, 0]


# ---------------------------------------------------------------------------
# Main
# ---------------------------------------------------------------------------

def _init_params(key, c_in=4, c1=8, c2=16, num_classes=10):
    k1, k2, k3, k4, k5, k6 = jax.random.split(key, 6)
    return {
        "w1": 0.1 * jax.random.normal(k1, (c1, c_in, 3, 3), jnp.float32),
        "b1": 0.1 * jax.random.normal(k2, (c1,), jnp.float32),
        "w2": 0.1 * jax.random.normal(k3, (c2, c1, 3, 3), jnp.float32),
        "b2": 0.1 * jax.random.normal(k4, (c2,), jnp.float32),
        "wf": 0.1 * jax.random.normal(k5, (num_classes, c2), jnp.float32),
        "bf": 0.1 * jax.random.normal(k6, (num_classes,), jnp.float32),
    }


if __name__ == "__main__":
    root = jax.random.PRNGKey(0)
    kx, kon, kgl = jax.random.split(root, 3)

    x = jax.random.normal(kx, (2, 4, 16, 16), jnp.float32)  # NCHW, like PyTorch
    online_params = _init_params(kon)
    global_params = _init_params(kgl)   # frozen deepcopy stand-in (different init)

    logits, activation_loss = dual_model_forward(
        x, online_params, global_params, online_target=True)
    jax.block_until_ready((logits, activation_loss))

    assert logits.shape == (2, 10)
    assert activation_loss.shape == ()
    assert bool(jnp.isfinite(activation_loss))
    print("KERNEL_OK")
</pallas_src>

<mosaic_0001>
module attributes {stable_mosaic.version = 11 : i64} {
  func.func @_conv_mm_kernel(%arg0: i32, %arg1: i32, %arg2: memref<1x8x36xf32, #tpu.memory_space<vmem>>, %arg3: memref<1x36x512xf32, #tpu.memory_space<vmem>>, %arg4: memref<1x8x1xf32, #tpu.memory_space<vmem>>, %arg5: memref<1x8x512xf32, #tpu.memory_space<vmem>>, %arg6: memref<1x8x512xf32, #tpu.memory_space<vmem>>) attributes {dimension_semantics = [#tpu.dimension_semantics<parallel>, #tpu.dimension_semantics<parallel>], iteration_bounds = array<i64: 2, 1>, scalar_prefetch = 0 : i64, scratch_operands = 0 : i64, tpu.core_type = #tpu.core_type<tc>, window_params = [{transform_indices = @transform_0, window_bounds = array<i64: 1, 8, 36>}, {transform_indices = @transform_1, window_bounds = array<i64: 1, 36, 512>}, {transform_indices = @transform_2, window_bounds = array<i64: 1, 8, 1>}, {transform_indices = @transform_3, window_bounds = array<i64: 1, 8, 512>}, {transform_indices = @transform_4, window_bounds = array<i64: 1, 8, 512>}]} {
    %c0 = arith.constant 0 : index
    %c0_0 = arith.constant 0 : index
    %c0_1 = arith.constant 0 : index
    %0 = vector.load %arg2[%c0, %c0_0, %c0_1] : memref<1x8x36xf32, #tpu.memory_space<vmem>>, vector<1x8x36xf32>
    %1 = vector.shape_cast %0 : vector<1x8x36xf32> to vector<8x36xf32>
    %2 = arith.truncf %1 : vector<8x36xf32> to vector<8x36xbf16>
    %c0_2 = arith.constant 0 : index
    %c0_3 = arith.constant 0 : index
    %c0_4 = arith.constant 0 : index
    %3 = vector.load %arg3[%c0_2, %c0_3, %c0_4] : memref<1x36x512xf32, #tpu.memory_space<vmem>>, vector<1x36x512xf32>
    %4 = vector.shape_cast %3 : vector<1x36x512xf32> to vector<36x512xf32>
    %5 = arith.truncf %4 : vector<36x512xf32> to vector<36x512xbf16>
    %cst = arith.constant dense<0.000000e+00> : vector<8x512xf32>
    %6 = tpu.matmul %2, %5, %cst {dimension_numbers = #tpu.dot_dimension_numbers<[1], [0], [0], [1], [0, 0, 1, 1], [], []>} : vector<8x36xbf16>, vector<36x512xbf16>, vector<8x512xf32> -> vector<8x512xf32>
    %c0_5 = arith.constant 0 : index
    %c0_6 = arith.constant 0 : index
    %c0_7 = arith.constant 0 : index
    %7 = vector.load %arg4[%c0_5, %c0_6, %c0_7] : memref<1x8x1xf32, #tpu.memory_space<vmem>>, vector<1x8x1xf32>
    %8 = vector.shape_cast %7 : vector<1x8x1xf32> to vector<8x1xf32>
    %9 = vector.broadcast %8 : vector<8x1xf32> to vector<8x512xf32>
    %10 = arith.addf %6, %9 : vector<8x512xf32>
    %c0_8 = arith.constant 0 : index
    %c0_9 = arith.constant 0 : index
    %c0_10 = arith.constant 0 : index
    %11 = vector.load %arg5[%c0_8, %c0_9, %c0_10] : memref<1x8x512xf32, #tpu.memory_space<vmem>>, vector<1x8x512xf32>
    %12 = vector.shape_cast %11 : vector<1x8x512xf32> to vector<8x512xf32>
    %13 = vector.shape_cast %10 : vector<8x512xf32> to vector<1x8x512xf32>
    tpu.vector_store %arg5[%c0_8, %c0_9, %c0_10], %13 {strides = array<i32>} : memref<1x8x512xf32, #tpu.memory_space<vmem>>, vector<1x8x512xf32>,
    %cst_11 = arith.constant 0.000000e+00 : f32
    %14 = vector.broadcast %cst_11 : f32 to vector<8x512xf32>
    %15 = arith.maximumf %10, %14 : vector<8x512xf32>
    %c0_12 = arith.constant 0 : index
    %c0_13 = arith.constant 0 : index
    %c0_14 = arith.constant 0 : index
    %16 = vector.load %arg6[%c0_12, %c0_13, %c0_14] : memref<1x8x512xf32, #tpu.memory_space<vmem>>, vector<1x8x512xf32>
    %17 = vector.shape_cast %16 : vector<1x8x512xf32> to vector<8x512xf32>
    %18 = vector.shape_cast %15 : vector<8x512xf32> to vector<1x8x512xf32>
    tpu.vector_store %arg6[%c0_12, %c0_13, %c0_14], %18 {strides = array<i32>} : memref<1x8x512xf32, #tpu.memory_space<vmem>>, vector<1x8x512xf32>,
    return
  }
  func.func @transform_0(%arg0: i32, %arg1: i32) -> (i32, i32, i32) {
    %c0_i32 = arith.constant 0 : i32
    %c0_i32_0 = arith.constant 0 : i32
    %c0_i32_1 = arith.constant 0 : i32
    return %arg0, %c0_i32, %c0_i32_0 : i32, i32, i32
  }
  func.func @transform_1(%arg0: i32, %arg1: i32) -> (i32, i32, i32) {
    %c0_i32 = arith.constant 0 : i32
    %c0_i32_0 = arith.constant 0 : i32
    %c0_i32_1 = arith.constant 0 : i32
    return %c0_i32, %c0_i32_0, %arg1 : i32, i32, i32
  }
  func.func @transform_2(%arg0: i32, %arg1: i32) -> (i32, i32, i32) {
    %c0_i32 = arith.constant 0 : i32
    %c0_i32_0 = arith.constant 0 : i32
    %c0_i32_1 = arith.constant 0 : i32
    return %arg0, %c0_i32, %c0_i32_0 : i32, i32, i32
  }
  func.func @transform_3(%arg0: i32, %arg1: i32) -> (i32, i32, i32) {
    %c0_i32 = arith.constant 0 : i32
    %c0_i32_0 = arith.constant 0 : i32
    return %arg0, %c0_i32, %arg1 : i32, i32, i32
  }
  func.func @transform_4(%arg0: i32, %arg1: i32) -> (i32, i32, i32) {
    %c0_i32 = arith.constant 0 : i32
    %c0_i32_0 = arith.constant 0 : i32
    return %arg0, %c0_i32, %arg1 : i32, i32, i32
  }
}

module attributes {stable_mosaic.version = 11 : i64} {
  func.func @_conv_mm_kernel(%arg0: i32, %arg1: i32, %arg2: memref<1x16x72xf32, #tpu.memory_space<vmem>>, %arg3: memref<1x72x512xf32, #tpu.memory_space<vmem>>, %arg4: memref<1x16x1xf32, #tpu.memory_space<vmem>>, %arg5: memref<1x16x512xf32, #tpu.memory_space<vmem>>, %arg6: memref<1x16x512xf32, #tpu.memory_space<vmem>>) attributes {dimension_semantics = [#tpu.dimension_semantics<parallel>, #tpu.dimension_semantics<parallel>], iteration_bounds = array<i64: 2, 1>, scalar_prefetch = 0 : i64, scratch_operands = 0 : i64, tpu.core_type = #tpu.core_type<tc>, window_params = [{transform_indices = @transform_0, window_bounds = array<i64: 1, 16, 72>}, {transform_indices = @transform_1, window_bounds = array<i64: 1, 72, 512>}, {transform_indices = @transform_2, window_bounds = array<i64: 1, 16, 1>}, {transform_indices = @transform_3, window_bounds = array<i64: 1, 16, 512>}, {transform_indices = @transform_4, window_bounds = array<i64: 1, 16, 512>}]} {
    %c0 = arith.constant 0 : index
    %c0_0 = arith.constant 0 : index
    %c0_1 = arith.constant 0 : index
    %0 = vector.load %arg2[%c0, %c0_0, %c0_1] : memref<1x16x72xf32, #tpu.memory_space<vmem>>, vector<1x16x72xf32>
    %1 = vector.shape_cast %0 : vector<1x16x72xf32> to vector<16x72xf32>
    %2 = arith.truncf %1 : vector<16x72xf32> to vector<16x72xbf16>
    %c0_2 = arith.constant 0 : index
    %c0_3 = arith.constant 0 : index
    %c0_4 = arith.constant 0 : index
    %3 = vector.load %arg3[%c0_2, %c0_3, %c0_4] : memref<1x72x512xf32, #tpu.memory_space<vmem>>, vector<1x72x512xf32>
    %4 = vector.shape_cast %3 : vector<1x72x512xf32> to vector<72x512xf32>
    %5 = arith.truncf %4 : vector<72x512xf32> to vector<72x512xbf16>
    %cst = arith.constant dense<0.000000e+00> : vector<16x512xf32>
    %6 = tpu.matmul %2, %5, %cst {dimension_numbers = #tpu.dot_dimension_numbers<[1], [0], [0], [1], [0, 0, 1, 1], [], []>} : vector<16x72xbf16>, vector<72x512xbf16>, vector<16x512xf32> -> vector<16x512xf32>
    %c0_5 = arith.constant 0 : index
    %c0_6 = arith.constant 0 : index
    %c0_7 = arith.constant 0 : index
    %7 = vector.load %arg4[%c0_5, %c0_6, %c0_7] : memref<1x16x1xf32, #tpu.memory_space<vmem>>, vector<1x16x1xf32>
    %8 = vector.shape_cast %7 : vector<1x16x1xf32> to vector<16x1xf32>
    %9 = vector.broadcast %8 : vector<16x1xf32> to vector<16x512xf32>
    %10 = arith.addf %6, %9 : vector<16x512xf32>
    %c0_8 = arith.constant 0 : index
    %c0_9 = arith.constant 0 : index
    %c0_10 = arith.constant 0 : index
    %11 = vector.load %arg5[%c0_8, %c0_9, %c0_10] : memref<1x16x512xf32, #tpu.memory_space<vmem>>, vector<1x16x512xf32>
    %12 = vector.shape_cast %11 : vector<1x16x512xf32> to vector<16x512xf32>
    %13 = vector.shape_cast %10 : vector<16x512xf32> to vector<1x16x512xf32>
    tpu.vector_store %arg5[%c0_8, %c0_9, %c0_10], %13 {strides = array<i32>} : memref<1x16x512xf32, #tpu.memory_space<vmem>>, vector<1x16x512xf32>,
    %cst_11 = arith.constant 0.000000e+00 : f32
    %14 = vector.broadcast %cst_11 : f32 to vector<16x512xf32>
    %15 = arith.maximumf %10, %14 : vector<16x512xf32>
    %c0_12 = arith.constant 0 : index
    %c0_13 = arith.constant 0 : index
    %c0_14 = arith.constant 0 : index
    %16 = vector.load %arg6[%c0_12, %c0_13, %c0_14] : memref<1x16x512xf32, #tpu.memory_space<vmem>>, vector<1x16x512xf32>
    %17 = vector.shape_cast %16 : vector<1x16x512xf32> to vector<16x512xf32>
    %18 = vector.shape_cast %15 : vector<16x512xf32> to vector<1x16x512xf32>
    tpu.vector_store %arg6[%c0_12, %c0_13, %c0_14], %18 {strides = array<i32>} : memref<1x16x512xf32, #tpu.memory_space<vmem>>, vector<1x16x512xf32>,
    return
  }
  func.func @transform_0(%arg0: i32, %arg1: i32) -> (i32, i32, i32) {
    %c0_i32 = arith.constant 0 : i32
    %c0_i32_0 = arith.constant 0 : i32
    %c0_i32_1 = arith.constant 0 : i32
    return %arg0, %c0_i32, %c0_i32_0 : i32, i32, i32
  }
  func.func @transform_1(%arg0: i32, %arg1: i32) -> (i32, i32, i32) {
    %c0_i32 = arith.constant 0 : i32
    %c0_i32_0 = arith.constant 0 : i32
    return %arg0, %c0_i32, %arg1 : i32, i32, i32
  }
  func.func @transform_2(%arg0: i32, %arg1: i32) -> (i32, i32, i32) {
    %c0_i32 = arith.constant 0 : i32
    %c0_i32_0 = arith.constant 0 : i32
    %c0_i32_1 = arith.constant 0 : i32
    return %arg0, %c0_i32, %c0_i32_0 : i32, i32, i32
  }
  func.func @transform_3(%arg0: i32, %arg1: i32) -> (i32, i32, i32) {
    %c0_i32 = arith.constant 0 : i32
    %c0_i32_0 = arith.constant 0 : i32
    return %arg0, %c0_i32, %arg1 : i32, i32, i32
  }
  func.func @transform_4(%arg0: i32, %arg1: i32) -> (i32, i32, i32) {
    %c0_i32 = arith.constant 0 : i32
    %c0_i32_0 = arith.constant 0 : i32
    return %arg0, %c0_i32, %arg1 : i32, i32, i32
  }
}

module attributes {stable_mosaic.version = 11 : i64} {
  func.func @_dual_loss_kernel(%arg0: memref<8x512xf32, #tpu.memory_space<vmem>>, %arg1: memref<8x512xf32, #tpu.memory_space<vmem>>, %arg2: memref<16x512xf32, #tpu.memory_space<vmem>>, %arg3: memref<16x512xf32, #tpu.memory_space<vmem>>, %arg4: memref<512x32xf32, #tpu.memory_space<vmem>>, %arg5: memref<512x32xf32, #tpu.memory_space<vmem>>, %arg6: memref<32x2xf32, #tpu.memory_space<vmem>>, %arg7: memref<32x2xf32, #tpu.memory_space<vmem>>, %arg8: memref<2x10xf32, #tpu.memory_space<vmem>>, %arg9: memref<2x10xf32, #tpu.memory_space<vmem>>, %arg10: memref<1x1xf32, #tpu.memory_space<vmem>>) attributes {dimension_semantics = [], scalar_prefetch = 0 : i64, scratch_operands = 0 : i64, tpu.core_type = #tpu.core_type<tc>} {
    %c0 = arith.constant 0 : index
    %c0_0 = arith.constant 0 : index
    %0 = vector.load %arg4[%c0, %c0_0] : memref<512x32xf32, #tpu.memory_space<vmem>>, vector<512x32xf32>
    %c0_1 = arith.constant 0 : index
    %c0_2 = arith.constant 0 : index
    %1 = vector.load %arg5[%c0_1, %c0_2] : memref<512x32xf32, #tpu.memory_space<vmem>>, vector<512x32xf32>
    %c0_3 = arith.constant 0 : index
    %c0_4 = arith.constant 0 : index
    %2 = vector.load %arg6[%c0_3, %c0_4] : memref<32x2xf32, #tpu.memory_space<vmem>>, vector<32x2xf32>
    %c0_5 = arith.constant 0 : index
    %c0_6 = arith.constant 0 : index
    %3 = vector.load %arg7[%c0_5, %c0_6] : memref<32x2xf32, #tpu.memory_space<vmem>>, vector<32x2xf32>
    %c0_7 = arith.constant 0 : index
    %c0_8 = arith.constant 0 : index
    %4 = vector.load %arg0[%c0_7, %c0_8] : memref<8x512xf32, #tpu.memory_space<vmem>>, vector<8x512xf32>
    %c0_9 = arith.constant 0 : index
    %c0_10 = arith.constant 0 : index
    %5 = vector.load %arg1[%c0_9, %c0_10] : memref<8x512xf32, #tpu.memory_space<vmem>>, vector<8x512xf32>
    %6 = arith.mulf %4, %4 : vector<8x512xf32>
    %7 = arith.mulf %5, %5 : vector<8x512xf32>
    %cst = arith.constant dense<0.000000e+00> : vector<8x32xf32>
    %8 = tpu.matmul %6, %0, %cst {dimension_numbers = #tpu.dot_dimension_numbers<[1], [0], [0], [1], [0, 0, 1, 1], [], []>} : vector<8x512xf32>, vector<512x32xf32>, vector<8x32xf32> -> vector<8x32xf32>
    %cst_11 = arith.constant dense<0.000000e+00> : vector<8x32xf32>
    %9 = tpu.matmul %6, %1, %cst_11 {dimension_numbers = #tpu.dot_dimension_numbers<[1], [0], [0], [1], [0, 0, 1, 1], [], []>} : vector<8x512xf32>, vector<512x32xf32>, vector<8x32xf32> -> vector<8x32xf32>
    %cst_12 = arith.constant dense<0.000000e+00> : vector<8x32xf32>
    %10 = tpu.matmul %7, %0, %cst_12 {dimension_numbers = #tpu.dot_dimension_numbers<[1], [0], [0], [1], [0, 0, 1, 1], [], []>} : vector<8x512xf32>, vector<512x32xf32>, vector<8x32xf32> -> vector<8x32xf32>
    %cst_13 = arith.constant dense<0.000000e+00> : vector<8x32xf32>
    %11 = tpu.matmul %7, %1, %cst_13 {dimension_numbers = #tpu.dot_dimension_numbers<[1], [0], [0], [1], [0, 0, 1, 1], [], []>} : vector<8x512xf32>, vector<512x32xf32>, vector<8x32xf32> -> vector<8x32xf32>
    %12 = arith.mulf %8, %8 : vector<8x32xf32>
    %13 = arith.mulf %9, %9 : vector<8x32xf32>
    %cst_14 = arith.constant dense<0.000000e+00> : vector<32xf32>
    %14 = vector.multi_reduction <add>, %12, %cst_14 [0] : vector<8x32xf32> to vector<32xf32>
    %15 = vector.shape_cast %14 : vector<32xf32> to vector<1x32xf32>
    %cst_15 = arith.constant dense<0.000000e+00> : vector<32xf32>
    %16 = vector.multi_reduction <add>, %13, %cst_15 [0] : vector<8x32xf32> to vector<32xf32>
    %17 = vector.shape_cast %16 : vector<32xf32> to vector<1x32xf32>
    %cst_16 = arith.constant dense<0.000000e+00> : vector<1x2xf32>
    %18 = tpu.matmul %15, %2, %cst_16 {dimension_numbers = #tpu.dot_dimension_numbers<[1], [0], [0], [1], [0, 0, 1, 1], [], []>} : vector<1x32xf32>, vector<32x2xf32>, vector<1x2xf32> -> vector<1x2xf32>
    %cst_17 = arith.constant dense<0.000000e+00> : vector<1x2xf32>
    %19 = tpu.matmul %17, %3, %cst_17 {dimension_numbers = #tpu.dot_dimension_numbers<[1], [0], [0], [1], [0, 0, 1, 1], [], []>} : vector<1x32xf32>, vector<32x2xf32>, vector<1x2xf32> -> vector<1x2xf32>
    %20 = arith.addf %18, %19 : vector<1x2xf32>
    %21 = arith.mulf %10, %10 : vector<8x32xf32>
    %22 = arith.mulf %11, %11 : vector<8x32xf32>
    %cst_18 = arith.constant dense<0.000000e+00> : vector<32xf32>
    %23 = vector.multi_reduction <add>, %21, %cst_18 [0] : vector<8x32xf32> to vector<32xf32>
    %24 = vector.shape_cast %23 : vector<32xf32> to vector<1x32xf32>
    %cst_19 = arith.constant dense<0.000000e+00> : vector<32xf32>
    %25 = vector.multi_reduction <add>, %22, %cst_19 [0] : vector<8x32xf32> to vector<32xf32>
    %26 = vector.shape_cast %25 : vector<32xf32> to vector<1x32xf32>
    %cst_20 = arith.constant dense<0.000000e+00> : vector<1x2xf32>
    %27 = tpu.matmul %24, %2, %cst_20 {dimension_numbers = #tpu.dot_dimension_numbers<[1], [0], [0], [1], [0, 0, 1, 1], [], []>} : vector<1x32xf32>, vector<32x2xf32>, vector<1x2xf32> -> vector<1x2xf32>
    %cst_21 = arith.constant dense<0.000000e+00> : vector<1x2xf32>
    %28 = tpu.matmul %26, %3, %cst_21 {dimension_numbers = #tpu.dot_dimension_numbers<[1], [0], [0], [1], [0, 0, 1, 1], [], []>} : vector<1x32xf32>, vector<32x2xf32>, vector<1x2xf32> -> vector<1x2xf32>
    %29 = arith.addf %27, %28 : vector<1x2xf32>
    %30 = arith.mulf %8, %10 : vector<8x32xf32>
    %31 = arith.mulf %9, %11 : vector<8x32xf32>
    %cst_22 = arith.constant dense<0.000000e+00> : vector<32xf32>
    %32 = vector.multi_reduction <add>, %30, %cst_22 [0] : vector<8x32xf32> to vector<32xf32>
    %33 = vector.shape_cast %32 : vector<32xf32> to vector<1x32xf32>
    %cst_23 = arith.constant dense<0.000000e+00> : vector<32xf32>
    %34 = vector.multi_reduction <add>, %31, %cst_23 [0] : vector<8x32xf32> to vector<32xf32>
    %35 = vector.shape_cast %34 : vector<32xf32> to vector<1x32xf32>
    %cst_24 = arith.constant dense<0.000000e+00> : vector<1x2xf32>
    %36 = tpu.matmul %33, %2, %cst_24 {dimension_numbers = #tpu.dot_dimension_numbers<[1], [0], [0], [1], [0, 0, 1, 1], [], []>} : vector<1x32xf32>, vector<32x2xf32>, vector<1x2xf32> -> vector<1x2xf32>
    %cst_25 = arith.constant dense<0.000000e+00> : vector<1x2xf32>
    %37 = tpu.matmul %35, %3, %cst_25 {dimension_numbers = #tpu.dot_dimension_numbers<[1], [0], [0], [1], [0, 0, 1, 1], [], []>} : vector<1x32xf32>, vector<32x2xf32>, vector<1x2xf32> -> vector<1x2xf32>
    %38 = arith.addf %36, %37 : vector<1x2xf32>
    %39 = math.sqrt %20 : vector<1x2xf32>
    %cst_26 = arith.constant 9.99999996E-13 : f32
    %40 = vector.broadcast %cst_26 : f32 to vector<1x2xf32>
    %41 = arith.maximumf %39, %40 : vector<1x2xf32>
    %42 = math.sqrt %29 : vector<1x2xf32>
    %cst_27 = arith.constant 9.99999996E-13 : f32
    %43 = vector.broadcast %cst_27 : f32 to vector<1x2xf32>
    %44 = arith.maximumf %42, %43 : vector<1x2xf32>
    %45 = arith.mulf %41, %41 : vector<1x2xf32>
    %46 = arith.divf %20, %45 : vector<1x2xf32>
    %47 = arith.mulf %44, %44 : vector<1x2xf32>
    %48 = arith.divf %29, %47 : vector<1x2xf32>
    %49 = arith.addf %46, %48 : vector<1x2xf32>
    %cst_28 = arith.constant 2.000000e+00 : f32
    %50 = vector.broadcast %cst_28 : f32 to vector<1x2xf32>
    %51 = arith.mulf %50, %38 : vector<1x2xf32>
    %52 = arith.mulf %41, %44 : vector<1x2xf32>
    %53 = arith.divf %51, %52 : vector<1x2xf32>
    %54 = arith.subf %49, %53 : vector<1x2xf32>
    %cst_29 = arith.constant 0.000000e+00 : f32
    %55 = vector.broadcast %cst_29 : f32 to vector<1x2xf32>
    %56 = arith.maximumf %54, %55 : vector<1x2xf32>
    %57 = math.sqrt %56 : vector<1x2xf32>
    %58 = vector.shape_cast %57 : vector<1x2xf32> to vector<1x1x2xf32>
    %cst_30 = arith.constant dense<0.000000e+00> : vector<1xf32>
    %59 = vector.multi_reduction <add>, %58, %cst_30 [1, 2] : vector<1x1x2xf32> to vector<1xf32>
    %60 = vector.shape_cast %59 : vector<1xf32> to vector<1x1x1xf32>
    %61 = vector.extract %60[0, 0, 0] : f32 from vector<1x1x1xf32>
    %cst_31 = arith.constant 2.000000e+00 : f32
    %62 = arith.divf %61, %cst_31 : f32
    %c0_32 = arith.constant 0 : index
    %c0_33 = arith.constant 0 : index
    %63 = vector.load %arg2[%c0_32, %c0_33] : memref<16x512xf32, #tpu.memory_space<vmem>>, vector<16x512xf32>
    %c0_34 = arith.constant 0 : index
    %c0_35 = arith.constant 0 : index
    %64 = vector.load %arg3[%c0_34, %c0_35] : memref<16x512xf32, #tpu.memory_space<vmem>>, vector<16x512xf32>
    %65 = arith.mulf %63, %63 : vector<16x512xf32>
    %66 = arith.mulf %64, %64 : vector<16x512xf32>
    %cst_36 = arith.constant dense<0.000000e+00> : vector<16x32xf32>
    %67 = tpu.matmul %65, %0, %cst_36 {dimension_numbers = #tpu.dot_dimension_numbers<[1], [0], [0], [1], [0, 0, 1, 1], [], []>} : vector<16x512xf32>, vector<512x32xf32>, vector<16x32xf32> -> vector<16x32xf32>
    %cst_37 = arith.constant dense<0.000000e+00> : vector<16x32xf32>
    %68 = tpu.matmul %65, %1, %cst_37 {dimension_numbers = #tpu.dot_dimension_numbers<[1], [0], [0], [1], [0, 0, 1, 1], [], []>} : vector<16x512xf32>, vector<512x32xf32>, vector<16x32xf32> -> vector<16x32xf32>
    %cst_38 = arith.constant dense<0.000000e+00> : vector<16x32xf32>
    %69 = tpu.matmul %66, %0, %cst_38 {dimension_numbers = #tpu.dot_dimension_numbers<[1], [0], [0], [1], [0, 0, 1, 1], [], []>} : vector<16x512xf32>, vector<512x32xf32>, vector<16x32xf32> -> vector<16x32xf32>
    %cst_39 = arith.constant dense<0.000000e+00> : vector<16x32xf32>
    %70 = tpu.matmul %66, %1, %cst_39 {dimension_numbers = #tpu.dot_dimension_numbers<[1], [0], [0], [1], [0, 0, 1, 1], [], []>} : vector<16x512xf32>, vector<512x32xf32>, vector<16x32xf32> -> vector<16x32xf32>
    %71 = arith.mulf %67, %67 : vector<16x32xf32>
    %72 = arith.mulf %68, %68 : vector<16x32xf32>
    %cst_40 = arith.constant dense<0.000000e+00> : vector<32xf32>
    %73 = vector.multi_reduction <add>, %71, %cst_40 [0] : vector<16x32xf32> to vector<32xf32>
    %74 = vector.shape_cast %73 : vector<32xf32> to vector<1x32xf32>
    %cst_41 = arith.constant dense<0.000000e+00> : vector<32xf32>
    %75 = vector.multi_reduction <add>, %72, %cst_41 [0] : vector<16x32xf32> to vector<32xf32>
    %76 = vector.shape_cast %75 : vector<32xf32> to vector<1x32xf32>
    %cst_42 = arith.constant dense<0.000000e+00> : vector<1x2xf32>
    %77 = tpu.matmul %74, %2, %cst_42 {dimension_numbers = #tpu.dot_dimension_numbers<[1], [0], [0], [1], [0, 0, 1, 1], [], []>} : vector<1x32xf32>, vector<32x2xf32>, vector<1x2xf32> -> vector<1x2xf32>
    %cst_43 = arith.constant dense<0.000000e+00> : vector<1x2xf32>
    %78 = tpu.matmul %76, %3, %cst_43 {dimension_numbers = #tpu.dot_dimension_numbers<[1], [0], [0], [1], [0, 0, 1, 1], [], []>} : vector<1x32xf32>, vector<32x2xf32>, vector<1x2xf32> -> vector<1x2xf32>
    %79 = arith.addf %77, %78 : vector<1x2xf32>
    %80 = arith.mulf %69, %69 : vector<16x32xf32>
    %81 = arith.mulf %70, %70 : vector<16x32xf32>
    %cst_44 = arith.constant dense<0.000000e+00> : vector<32xf32>
    %82 = vector.multi_reduction <add>, %80, %cst_44 [0] : vector<16x32xf32> to vector<32xf32>
    %83 = vector.shape_cast %82 : vector<32xf32> to vector<1x32xf32>
    %cst_45 = arith.constant dense<0.000000e+00> : vector<32xf32>
    %84 = vector.multi_reduction <add>, %81, %cst_45 [0] : vector<16x32xf32> to vector<32xf32>
    %85 = vector.shape_cast %84 : vector<32xf32> to vector<1x32xf32>
    %cst_46 = arith.constant dense<0.000000e+00> : vector<1x2xf32>
    %86 = tpu.matmul %83, %2, %cst_46 {dimension_numbers = #tpu.dot_dimension_numbers<[1], [0], [0], [1], [0, 0, 1, 1], [], []>} : vector<1x32xf32>, vector<32x2xf32>, vector<1x2xf32> -> vector<1x2xf32>
    %cst_47 = arith.constant dense<0.000000e+00> : vector<1x2xf32>
    %87 = tpu.matmul %85, %3, %cst_47 {dimension_numbers = #tpu.dot_dimension_numbers<[1], [0], [0], [1], [0, 0, 1, 1], [], []>} : vector<1x32xf32>, vector<32x2xf32>, vector<1x2xf32> -> vector<1x2xf32>
    %88 = arith.addf %86, %87 : vector<1x2xf32>
    %89 = arith.mulf %67, %69 : vector<16x32xf32>
    %90 = arith.mulf %68, %70 : vector<16x32xf32>
    %cst_48 = arith.constant dense<0.000000e+00> : vector<32xf32>
    %91 = vector.multi_reduction <add>, %89, %cst_48 [0] : vector<16x32xf32> to vector<32xf32>
    %92 = vector.shape_cast %91 : vector<32xf32> to vector<1x32xf32>
    %cst_49 = arith.constant dense<0.000000e+00> : vector<32xf32>
    %93 = vector.multi_reduction <add>, %90, %cst_49 [0] : vector<16x32xf32> to vector<32xf32>
    %94 = vector.shape_cast %93 : vector<32xf32> to vector<1x32xf32>
    %cst_50 = arith.constant dense<0.000000e+00> : vector<1x2xf32>
    %95 = tpu.matmul %92, %2, %cst_50 {dimension_numbers = #tpu.dot_dimension_numbers<[1], [0], [0], [1], [0, 0, 1, 1], [], []>} : vector<1x32xf32>, vector<32x2xf32>, vector<1x2xf32> -> vector<1x2xf32>
    %cst_51 = arith.constant dense<0.000000e+00> : vector<1x2xf32>
    %96 = tpu.matmul %94, %3, %cst_51 {dimension_numbers = #tpu.dot_dimension_numbers<[1], [0], [0], [1], [0, 0, 1, 1], [], []>} : vector<1x32xf32>, vector<32x2xf32>, vector<1x2xf32> -> vector<1x2xf32>
    %97 = arith.addf %95, %96 : vector<1x2xf32>
    %98 = math.sqrt %79 : vector<1x2xf32>
    %cst_52 = arith.constant 9.99999996E-13 : f32
    %99 = vector.broadcast %cst_52 : f32 to vector<1x2xf32>
    %100 = arith.maximumf %98, %99 : vector<1x2xf32>
    %101 = math.sqrt %88 : vector<1x2xf32>
    %cst_53 = arith.constant 9.99999996E-13 : f32
    %102 = vector.broadcast %cst_53 : f32 to vector<1x2xf32>
    %103 = arith.maximumf %101, %102 : vector<1x2xf32>
    %104 = arith.mulf %100, %100 : vector<1x2xf32>
    %105 = arith.divf %79, %104 : vector<1x2xf32>
    %106 = arith.mulf %103, %103 : vector<1x2xf32>
    %107 = arith.divf %88, %106 : vector<1x2xf32>
    %108 = arith.addf %105, %107 : vector<1x2xf32>
    %cst_54 = arith.constant 2.000000e+00 : f32
    %109 = vector.broadcast %cst_54 : f32 to vector<1x2xf32>
    %110 = arith.mulf %109, %97 : vector<1x2xf32>
    %111 = arith.mulf %100, %103 : vector<1x2xf32>
    %112 = arith.divf %110, %111 : vector<1x2xf32>
    %113 = arith.subf %108, %112 : vector<1x2xf32>
    %cst_55 = arith.constant 0.000000e+00 : f32
    %114 = vector.broadcast %cst_55 : f32 to vector<1x2xf32>
    %115 = arith.maximumf %113, %114 : vector<1x2xf32>
    %116 = math.sqrt %115 : vector<1x2xf32>
    %117 = vector.shape_cast %116 : vector<1x2xf32> to vector<1x1x2xf32>
    %cst_56 = arith.constant dense<0.000000e+00> : vector<1xf32>
    %118 = vector.multi_reduction <add>, %117, %cst_56 [1, 2] : vector<1x1x2xf32> to vector<1xf32>
    %119 = vector.shape_cast %118 : vector<1xf32> to vector<1x1x1xf32>
    %120 = vector.extract %119[0, 0, 0] : f32 from vector<1x1x1xf32>
    %cst_57 = arith.constant 2.000000e+00 : f32
    %121 = arith.divf %120, %cst_57 : f32
    %c0_58 = arith.constant 0 : index
    %c0_59 = arith.constant 0 : index
    %122 = vector.load %arg8[%c0_58, %c0_59] : memref<2x10xf32, #tpu.memory_space<vmem>>, vector<2x10xf32>
    %c0_60 = arith.constant 0 : index
    %c0_61 = arith.constant 0 : index
    %123 = vector.load %arg9[%c0_60, %c0_61] : memref<2x10xf32, #tpu.memory_space<vmem>>, vector<2x10xf32>
    %cst_62 = arith.constant dense<0xFF800000> : vector<2xf32>
    %124 = vector.multi_reduction <maximumf>, %122, %cst_62 [1] : vector<2x10xf32> to vector<2xf32>
    %125 = vector.shape_cast %124 : vector<2xf32> to vector<2x1xf32>
    %126 = vector.broadcast %125 : vector<2x1xf32> to vector<2x10xf32>
    %127 = arith.subf %122, %126 : vector<2x10xf32>
    %128 = math.exp %127 : vector<2x10xf32>
    %cst_63 = arith.constant dense<0.000000e+00> : vector<2xf32>
    %129 = vector.multi_reduction <add>, %128, %cst_63 [1] : vector<2x10xf32> to vector<2xf32>
    %130 = vector.shape_cast %129 : vector<2xf32> to vector<2x1xf32>
    %131 = vector.broadcast %130 : vector<2x1xf32> to vector<2x10xf32>
    %132 = arith.divf %128, %131 : vector<2x10xf32>
    %cst_64 = arith.constant 1.000000e+00 : f32
    %133 = vector.broadcast %cst_64 : f32 to vector<2x10xf32>
    %134 = arith.mulf %133, %132 : vector<2x10xf32>
    %cst_65 = arith.constant 1.401300e-45 : f32
    %135 = vector.broadcast %cst_65 : f32 to vector<2x10xf32>
    %136 = arith.addf %135, %134 : vector<2x10xf32>
    %cst_66 = arith.constant 1.17549435E-38 : f32
    %137 = vector.broadcast %cst_66 : f32 to vector<2x10xf32>
    %138 = arith.maximumf %136, %137 : vector<2x10xf32>
    %cst_67 = arith.constant dense<0xFF800000> : vector<2xf32>
    %139 = vector.multi_reduction <maximumf>, %123, %cst_67 [1] : vector<2x10xf32> to vector<2xf32>
    %140 = vector.shape_cast %139 : vector<2xf32> to vector<2x1xf32>
    %141 = vector.broadcast %140 : vector<2x1xf32> to vector<2x10xf32>
    %142 = arith.subf %123, %141 : vector<2x10xf32>
    %143 = math.exp %142 : vector<2x10xf32>
    %cst_68 = arith.constant dense<0.000000e+00> : vector<2xf32>
    %144 = vector.multi_reduction <add>, %143, %cst_68 [1] : vector<2x10xf32> to vector<2xf32>
    %145 = vector.shape_cast %144 : vector<2xf32> to vector<2x1xf32>
    %146 = vector.broadcast %145 : vector<2x1xf32> to vector<2x10xf32>
    %147 = arith.divf %143, %146 : vector<2x10xf32>
    %cst_69 = arith.constant 1.000000e+00 : f32
    %148 = vector.broadcast %cst_69 : f32 to vector<2x10xf32>
    %149 = arith.mulf %148, %147 : vector<2x10xf32>
    %cst_70 = arith.constant 1.401300e-45 : f32
    %150 = vector.broadcast %cst_70 : f32 to vector<2x10xf32>
    %151 = arith.addf %150, %149 : vector<2x10xf32>
    %cst_71 = arith.constant 1.17549435E-38 : f32
    %152 = vector.broadcast %cst_71 : f32 to vector<2x10xf32>
    %153 = arith.maximumf %151, %152 : vector<2x10xf32>
    %154 = arith.addf %138, %153 : vector<2x10xf32>
    %cst_72 = arith.constant 5.000000e-01 : f32
    %155 = vector.broadcast %cst_72 : f32 to vector<2x10xf32>
    %156 = arith.mulf %155, %154 : vector<2x10xf32>
    %157 = math.log %156 : vector<2x10xf32>
    %158 = math.log %138 : vector<2x10xf32>
    %159 = arith.subf %158, %157 : vector<2x10xf32>
    %160 = arith.mulf %138, %159 : vector<2x10xf32>
    %161 = vector.shape_cast %160 : vector<2x10xf32> to vector<1x2x10xf32>
    %cst_73 = arith.constant dense<0.000000e+00> : vector<1xf32>
    %162 = vector.multi_reduction <add>, %161, %cst_73 [1, 2] : vector<1x2x10xf32> to vector<1xf32>
    %163 = vector.shape_cast %162 : vector<1xf32> to vector<1x1x1xf32>
    %164 = vector.extract %163[0, 0, 0] : f32 from vector<1x1x1xf32>
    %cst_74 = arith.constant 2.000000e+00 : f32
    %165 = arith.divf %164, %cst_74 : f32
    %166 = math.log %153 : vector<2x10xf32>
    %167 = arith.subf %166, %157 : vector<2x10xf32>
    %168 = arith.mulf %153, %167 : vector<2x10xf32>
    %169 = vector.shape_cast %168 : vector<2x10xf32> to vector<1x2x10xf32>
    %cst_75 = arith.constant dense<0.000000e+00> : vector<1xf32>
    %170 = vector.multi_reduction <add>, %169, %cst_75 [1, 2] : vector<1x2x10xf32> to vector<1xf32>
    %171 = vector.shape_cast %170 : vector<1xf32> to vector<1x1x1xf32>
    %172 = vector.extract %171[0, 0, 0] : f32 from vector<1x1x1xf32>
    %cst_76 = arith.constant 2.000000e+00 : f32
    %173 = arith.divf %172, %cst_76 : f32
    %174 = arith.addf %165, %173 : f32
    %cst_77 = arith.constant 5.000000e-01 : f32
    %175 = arith.mulf %cst_77, %174 : f32
    %cst_78 = arith.constant 1.000000e+00 : f32
    %176 = arith.mulf %cst_78, %62 : f32
    %cst_79 = arith.constant 2.000000e+00 : f32
    %177 = arith.divf %176, %cst_79 : f32
    %cst_80 = arith.constant 1.000000e+00 : f32
    %178 = arith.mulf %cst_80, %121 : f32
    %cst_81 = arith.constant 2.000000e+00 : f32
    %179 = arith.divf %178, %cst_81 : f32
    %180 = arith.addf %177, %179 : f32
    %cst_82 = arith.constant 1.000000e+00 : f32
    %181 = arith.mulf %cst_82, %175 : f32
    %182 = arith.addf %180, %181 : f32
    %183 = vector.broadcast %182 : f32 to vector<1x1xf32>
    %c0_83 = arith.constant 0 : index
    %c0_84 = arith.constant 0 : index
    %184 = vector.load %arg10[%c0_83, %c0_84] : memref<1x1xf32, #tpu.memory_space<vmem>>, vector<1x1xf32>
    tpu.vector_store %arg10[%c0_83, %c0_84], %183 {strides = array<i32>} : memref<1x1xf32, #tpu.memory_space<vmem>>, vector<1x1xf32>,
    return
  }
}

</mosaic_0001>

<llo_original>
// kernel: squeeze.9
$region0: #{squeeze.9}
  %s0 = inlined_call_operand.vmem [shape: f32[1,8,512], index: 0, kind: input, shape index: {}]
  %s1 = inlined_call_operand.vmem [shape: f32[8,2,16,16], index: 1, kind: output, shape index: {}]
  %v2 = vld [vmem:[%s0] sm:$0xff]
  %vm3 = vcmask 130048
  %4 = vst.msk [vmem:[%s1] sm:$0x1] %vm3, %v2
  %s5 = scalar_lea.vmem %s1, 31
  %6 = vst.msk [vmem:[%s5] sm:$0x2] %vm3, %v2
  %s7 = scalar_lea.vmem %s1, 62
  %8 = vst.msk [vmem:[%s7] sm:$0x4] %vm3, %v2
  %s9 = scalar_lea.vmem %s1, 93
  %10 = vst.msk [vmem:[%s9] sm:$0x8] %vm3, %v2
  %s11 = scalar_lea.vmem %s1, 124
  %12 = vst.msk [vmem:[%s11] sm:$0x10] %vm3, %v2
  %s13 = scalar_lea.vmem %s1, 155
  %14 = vst.msk [vmem:[%s13] sm:$0x20] %vm3, %v2
  %s15 = scalar_lea.vmem %s1, 186
  %16 = vst.msk [vmem:[%s15] sm:$0x40] %vm3, %v2
  %s17 = scalar_lea.vmem %s1, 217
  %18 = vst.msk [vmem:[%s17] sm:$0x80] %vm3, %v2
  %s19 = scalar_lea.vmem %s0, 8
  %v20 = vld [vmem:[%s19] sm:$0xff]
  %vm21 = vcmask 130048
  %s22 = scalar_lea.vmem %s1, 8
  %23 = vst.msk [vmem:[%s22] sm:$0x1] %vm21, %v20
  %s24 = scalar_lea.vmem %s1, 39
  %25 = vst.msk [vmem:[%s24] sm:$0x2] %vm21, %v20
  %s26 = scalar_lea.vmem %s1, 70
  %27 = vst.msk [vmem:[%s26] sm:$0x4] %vm21, %v20
  %s28 = scalar_lea.vmem %s1, 101
  %29 = vst.msk [vmem:[%s28] sm:$0x8] %vm21, %v20
  %s30 = scalar_lea.vmem %s1, 132
  %31 = vst.msk [vmem:[%s30] sm:$0x10] %vm21, %v20
  %s32 = scalar_lea.vmem %s1, 163
  %33 = vst.msk [vmem:[%s32] sm:$0x20] %vm21, %v20
  %s34 = scalar_lea.vmem %s1, 194
  %35 = vst.msk [vmem:[%s34] sm:$0x40] %vm21, %v20
  %s36 = scalar_lea.vmem %s1, 225
  %37 = vst.msk [vmem:[%s36] sm:$0x80] %vm21, %v20
  %s38 = scalar_lea.vmem %s0, 16
  %v39 = vld [vmem:[%s38] sm:$0xff]
  %vm40 = vcmask 130048
  %s41 = scalar_lea.vmem %s1, 16
  %42 = vst.msk [vmem:[%s41] sm:$0x1] %vm40, %v39
  %s43 = scalar_lea.vmem %s1, 47
  %44 = vst.msk [vmem:[%s43] sm:$0x2] %vm40, %v39
  %s45 = scalar_lea.vmem %s1, 78
  %46 = vst.msk [vmem:[%s45] sm:$0x4] %vm40, %v39
  %s47 = scalar_lea.vmem %s1, 109
  %48 = vst.msk [vmem:[%s47] sm:$0x8] %vm40, %v39
  %s49 = scalar_lea.vmem %s1, 140
  %50 = vst.msk [vmem:[%s49] sm:$0x10] %vm40, %v39
  %s51 = scalar_lea.vmem %s1, 171
  %52 = vst.msk [vmem:[%s51] sm:$0x20] %vm40, %v39
  %s53 = scalar_lea.vmem %s1, 202
  %54 = vst.msk [vmem:[%s53] sm:$0x40] %vm40, %v39
  %s55 = scalar_lea.vmem %s1, 233
  %56 = vst.msk [vmem:[%s55] sm:$0x80] %vm40, %v39
  %s57 = scalar_lea.vmem %s0, 24
  %v58 = vld [vmem:[%s57] sm:$0xff]
  %vm59 = vcmask 130048
  %s60 = scalar_lea.vmem %s1, 24
  %61 = vst.msk [vmem:[%s60] sm:$0x1] %vm59, %v58
  %s62 = scalar_lea.vmem %s1, 55
  %63 = vst.msk [vmem:[%s62] sm:$0x2] %vm59, %v58
  %s64 = scalar_lea.vmem %s1, 86
  %65 = vst.msk [vmem:[%s64] sm:$0x4] %vm59, %v58
  %s66 = scalar_lea.vmem %s1, 117
  %67 = vst.msk [vmem:[%s66] sm:$0x8] %vm59, %v58
  %s68 = scalar_lea.vmem %s1, 148
  %69 = vst.msk [vmem:[%s68] sm:$0x10] %vm59, %v58
  %s70 = scalar_lea.vmem %s1, 179
  %71 = vst.msk [vmem:[%s70] sm:$0x20] %vm59, %v58
  %s72 = scalar_lea.vmem %s1, 210
  %73 = vst.msk [vmem:[%s72] sm:$0x40] %vm59, %v58
  %s74 = scalar_lea.vmem %s1, 241
  %75 = vst.msk [vmem:[%s74] sm:$0x80] %vm59, %v58
  %v76 = vld [vmem:[%s0] ss:$8 sm:$0xf]
  %s77 = scalar_lea.vmem %s0, 4294967265
  %v78 = vld [vmem:[%s77] ss:$8 sm:$0xf0]
  %vm79 = vcmask 1047556
  %v80 = vsel %vm79, %v78, %v76
  %81 = vrot.lane.b32.xlu0 %v80, 112
  %v82 = vpop.permute.xlu0 %81
  %vm83 = vcmask 130048
  %s84 = scalar_lea.vmem %s1, 1
  %85 = vst.msk [vmem:[%s84] ss:$8 sm:$0xf] %vm83, %v82
  %s86 = scalar_lea.vmem %s1, 1
  %87 = vst.msk [vmem:[%s86] ss:$8 sm:$0xf0] %vm83, %v82
  %s88 = scalar_lea.vmem %s0, 2
  %v89 = vld [vmem:[%s88] ss:$8 sm:$0xf]
  %s90 = scalar_lea.vmem %s0, 4294967267
  %v91 = vld [vmem:[%s90] ss:$8 sm:$0xf0]
  %vm92 = vcmask 1047556
  %v93 = vsel %vm92, %v91, %v89
  %94 = vrot.lane.b32.xlu0 %v93, 112
  %v95 = vpop.permute.xlu0 %94
  %vm96 = vcmask 130048
  %s97 = scalar_lea.vmem %s1, 65
  %98 = vst.msk [vmem:[%s97] ss:$8 sm:$0xf] %vm96, %v95
  %s99 = scalar_lea.vmem %s1, 65
  %100 = vst.msk [vmem:[%s99] ss:$8 sm:$0xf0] %vm96, %v95
  %s101 = scalar_lea.vmem %s0, 4
  %v102 = vld [vmem:[%s101] ss:$8 sm:$0xf]
  %s103 = scalar_lea.vmem %s0, 4294967269
  %v104 = vld [vmem:[%s103] ss:$8 sm:$0xf0]
  %vm105 = vcmask 1047556
  %v106 = vsel %vm105, %v104, %v102
  %107 = vrot.lane.b32.xlu0 %v106, 112
  %v108 = vpop.permute.xlu0 %107
  %vm109 = vcmask 130048
  %s110 = scalar_lea.vmem %s1, 129
  %111 = vst.msk [vmem:[%s110] ss:$8 sm:$0xf] %vm109, %v108
  %s112 = scalar_lea.vmem %s1, 129
  %113 = vst.msk [vmem:[%s112] ss:$8 sm:$0xf0] %vm109, %v108
  %s114 = scalar_lea.vmem %s0, 6
  %v115 = vld [vmem:[%s114] ss:$8 sm:$0xf]
  %s116 = scalar_lea.vmem %s0, 4294967271
  %v117 = vld [vmem:[%s116] ss:$8 sm:$0xf0]
  %vm118 = vcmask 1047556
  %v119 = vsel %vm118, %v117, %v115
  %120 = vrot.lane.b32.xlu0 %v119, 112
  %v121 = vpop.permute.xlu0 %120
  %vm122 = vcmask 130048
  %s123 = scalar_lea.vmem %s1, 193
  %124 = vst.msk [vmem:[%s123] ss:$8 sm:$0xf] %vm122, %v121
  %s125 = scalar_lea.vmem %s1, 193
  %126 = vst.msk [vmem:[%s125] ss:$8 sm:$0xf0] %vm122, %v121
  %v127 = vld [vmem:[%s0] ss:$8 sm:$0xf]
  %s128 = scalar_lea.vmem %s0, 4294967265
  %v129 = vld [vmem:[%s128] ss:$8 sm:$0xf0]
  %vm130 = vcmask 1047556
  %v131 = vsel %vm130, %v129, %v127
  %132 = vrot.lane.b32.xlu0 %v131, 96
  %v133 = vpop.permute.xlu0 %132
  %vm134 = vcmask 130048
  %s135 = scalar_lea.vmem %s1, 2
  %136 = vst.msk [vmem:[%s135] ss:$8 sm:$0xf] %vm134, %v133
  %s137 = scalar_lea.vmem %s1, 2
  %138 = vst.msk [vmem:[%s137] ss:$8 sm:$0xf0] %vm134, %v133
  %s139 = scalar_lea.vmem %s0, 2
  %v140 = vld [vmem:[%s139] ss:$8 sm:$0xf]
  %s141 = scalar_lea.vmem %s0, 4294967267
  %v142 = vld [vmem:[%s141] ss:$8 sm:$0xf0]
  %vm143 = vcmask 1047556
  %v144 = vsel %vm143, %v142, %v140
  %145 = vrot.lane.b32.xlu0 %v144, 96
  %v146 = vpop.permute.xlu0 %145
  %vm147 = vcmask 130048
  %s148 = scalar_lea.vmem %s1, 66
  %149 = vst.msk [vmem:[%s148] ss:$8 sm:$0xf] %vm147, %v146
  %s150 = scalar_lea.vmem %s1, 66
  %151 = vst.msk [vmem:[%s150] ss:$8 sm:$0xf0] %vm147, %v146
  %s152 = scalar_lea.vmem %s0, 4
  %v153 = vld [vmem:[%s152] ss:$8 sm:$0xf]
  %s154 = scalar_lea.vmem %s0, 4294967269
  %v155 = vld [vmem:[%s154] ss:$8 sm:$0xf0]
  %vm156 = vcmask 1047556
  %v157 = vsel %vm156, %v155, %v153
  %158 = vrot.lane.b32.xlu0 %v157, 96
  %v159 = vpop.permute.xlu0 %158
  %vm160 = vcmask 130048
  %s161 = scalar_lea.vmem %s1, 130
  %162 = vst.msk [vmem:[%s161] ss:$8 sm:$0xf] %vm160, %v159
  %s163 = scalar_lea.vmem %s1, 130
  %164 = vst.msk [vmem:[%s163] ss:$8 sm:$0xf0] %vm160, %v159
  %s165 = scalar_lea.vmem %s0, 6
  %v166 = vld [vmem:[%s165] ss:$8 sm:$0xf]
  %s167 = scalar_lea.vmem %s0, 4294967271
  %v168 = vld [vmem:[%s167] ss:$8 sm:$0xf0]
  %vm169 = vcmask 1047556
  %v170 = vsel %vm169, %v168, %v166
  %171 = vrot.lane.b32.xlu0 %v170, 96
  %v172 = vpop.permute.xlu0 %171
  %vm173 = vcmask 130048
  %s174 = scalar_lea.vmem %s1, 194
  %175 = vst.msk [vmem:[%s174] ss:$8 sm:$0xf] %vm173, %v172
  %s176 = scalar_lea.vmem %s1, 194
  %177 = vst.msk [vmem:[%s176] ss:$8 sm:$0xf0] %vm173, %v172
  %v178 = vld [vmem:[%s0] ss:$8 sm:$0xf]
  %s179 = scalar_lea.vmem %s0, 4294967265
  %v180 = vld [vmem:[%s179] ss:$8 sm:$0xf0]
  %vm181 = vcmask 1047556
  %v182 = vsel %vm181, %v180, %v178
  %183 = vrot.lane.b32.xlu0 %v182, 80
  %v184 = vpop.permute.xlu0 %183
  %vm185 = vcmask 130048
  %s186 = scalar_lea.vmem %s1, 3
  %187 = vst.msk [vmem:[%s186] ss:$8 sm:$0xf] %vm185, %v184
  %s188 = scalar_lea.vmem %s1, 3
  %189 = vst.msk [vmem:[%s188] ss:$8 sm:$0xf0] %vm185, %v184
  %s190 = scalar_lea.vmem %s0, 2
  %v191 = vld [vmem:[%s190] ss:$8 sm:$0xf]
  %s192 = scalar_lea.vmem %s0, 4294967267
  %v193 = vld [vmem:[%s192] ss:$8 sm:$0xf0]
  %vm194 = vcmask 1047556
  %v195 = vsel %vm194, %v193, %v191
  %196 = vrot.lane.b32.xlu0 %v195, 80
  %v197 = vpop.permute.xlu0 %196
  %vm198 = vcmask 130048
  %s199 = scalar_lea.vmem %s1, 67
  %200 = vst.msk [vmem:[%s199] ss:$8 sm:$0xf] %vm198, %v197
  %s201 = scalar_lea.vmem %s1, 67
  %202 = vst.msk [vmem:[%s201] ss:$8 sm:$0xf0] %vm198, %v197
  %s203 = scalar_lea.vmem %s0, 4
  %v204 = vld [vmem:[%s203] ss:$8 sm:$0xf]
  %s205 = scalar_lea.vmem %s0, 4294967269
  %v206 = vld [vmem:[%s205] ss:$8 sm:$0xf0]
  %vm207 = vcmask 1047556
  %v208 = vsel %vm207, %v206, %v204
  %209 = vrot.lane.b32.xlu0 %v208, 80
  %v210 = vpop.permute.xlu0 %209
  %vm211 = vcmask 130048
  %s212 = scalar_lea.vmem %s1, 131
  %213 = vst.msk [vmem:[%s212] ss:$8 sm:$0xf] %vm211, %v210
  %s214 = scalar_lea.vmem %s1, 131
  %215 = vst.msk [vmem:[%s214] ss:$8 sm:$0xf0] %vm211, %v210
  %s216 = scalar_lea.vmem %s0, 6
  %v217 = vld [vmem:[%s216] ss:$8 sm:$0xf]
  %s218 = scalar_lea.vmem %s0, 4294967271
  %v219 = vld [vmem:[%s218] ss:$8 sm:$0xf0]
  %vm220 = vcmask 1047556
  %v221 = vsel %vm220, %v219, %v217
  %222 = vrot.lane.b32.xlu0 %v221, 80
  %v223 = vpop.permute.xlu0 %222
  %vm224 = vcmask 130048
  %s225 = scalar_lea.vmem %s1, 195
  %226 = vst.msk [vmem:[%s225] ss:$8 sm:$0xf] %vm224, %v223
  %s227 = scalar_lea.vmem %s1, 195
  %228 = vst.msk [vmem:[%s227] ss:$8 sm:$0xf0] %vm224, %v223
  %v229 = vld [vmem:[%s0] ss:$8 sm:$0xf]
  %s230 = scalar_lea.vmem %s0, 4294967265
  %v231 = vld [vmem:[%s230] ss:$8 sm:$0xf0]
  %vm232 = vcmask 1047556
  %v233 = vsel %vm232, %v231, %v229
  %234 = vrot.lane.b32.xlu0 %v233, 64
  %v235 = vpop.permute.xlu0 %234
  %vm236 = vcmask 130048
  %s237 = scalar_lea.vmem %s1, 4
  %238 = vst.msk [vmem:[%s237] ss:$8 sm:$0xf] %vm236, %v235
  %s239 = scalar_lea.vmem %s1, 4
  %240 = vst.msk [vmem:[%s239] ss:$8 sm:$0xf0] %vm236, %v235
  %s241 = scalar_lea.vmem %s0, 2
  %v242 = vld [vmem:[%s241] ss:$8 sm:$0xf]
  %s243 = scalar_lea.vmem %s0, 4294967267
  %v244 = vld [vmem:[%s243] ss:$8 sm:$0xf0]
  %vm245 = vcmask 1047556
  %v246 = vsel %vm245, %v244, %v242
  %247 = vrot.lane.b32.xlu0 %v246, 64
  %v248 = vpop.permute.xlu0 %247
  %vm249 = vcmask 130048
  %s250 = scalar_lea.vmem %s1, 68
  %251 = vst.msk [vmem:[%s250] ss:$8 sm:$0xf] %vm249, %v248
  %s252 = scalar_lea.vmem %s1, 68
  %253 = vst.msk [vmem:[%s252] ss:$8 sm:$0xf0] %vm249, %v248
  %s254 = scalar_lea.vmem %s0, 4
  %v255 = vld [vmem:[%s254] ss:$8 sm:$0xf]
  %s256 = scalar_lea.vmem %s0, 4294967269
  %v257 = vld [vmem:[%s256] ss:$8 sm:$0xf0]
  %vm258 = vcmask 1047556
  %v259 = vsel %vm258, %v257, %v255
  %260 = vrot.lane.b32.xlu0 %v259, 64
  %v261 = vpop.permute.xlu0 %260
  %vm262 = vcmask 130048
  %s263 = scalar_lea.vmem %s1, 132
  %264 = vst.msk [vmem:[%s263] ss:$8 sm:$0xf] %vm262, %v261
  %s265 = scalar_lea.vmem %s1, 132
  %266 = vst.msk [vmem:[%s265] ss:$8 sm:$0xf0] %vm262, %v261
  %s267 = scalar_lea.vmem %s0, 6
  %v268 = vld [vmem:[%s267] ss:$8 sm:$0xf]
  %s269 = scalar_lea.vmem %s0, 4294967271
  %v270 = vld [vmem:[%s269] ss:$8 sm:$0xf0]
  %vm271 = vcmask 1047556
  %v272 = vsel %vm271, %v270, %v268
  %273 = vrot.lane.b32.xlu0 %v272, 64
  %v274 = vpop.permute.xlu0 %273
  %vm275 = vcmask 130048
  %s276 = scalar_lea.vmem %s1, 196
  %277 = vst.msk [vmem:[%s276] ss:$8 sm:$0xf] %vm275, %v274
  %s278 = scalar_lea.vmem %s1, 196
  %279 = vst.msk [vmem:[%s278] ss:$8 sm:$0xf0] %vm275, %v274
  %v280 = vld [vmem:[%s0] ss:$8 sm:$0xf]
  %s281 = scalar_lea.vmem %s0, 4294967265
  %v282 = vld [vmem:[%s281] ss:$8 sm:$0xf0]
  %vm283 = vcmask 1047556
  %v284 = vsel %vm283, %v282, %v280
  %285 = vrot.lane.b32.xlu0 %v284, 48
  %v286 = vpop.permute.xlu0 %285
  %vm287 = vcmask 130048
  %s288 = scalar_lea.vmem %s1, 5
  %289 = vst.msk [vmem:[%s288] ss:$8 sm:$0xf] %vm287, %v286
  %s290 = scalar_lea.vmem %s1, 5
  %291 = vst.msk [vmem:[%s290] ss:$8 sm:$0xf0] %vm287, %v286
  %s292 = scalar_lea.vmem %s0, 2
  %v293 = vld [vmem:[%s292] ss:$8 sm:$0xf]
  %s294 = scalar_lea.vmem %s0, 4294967267
  %v295 = vld [vmem:[%s294] ss:$8 sm:$0xf0]
  %vm296 = vcmask 1047556
  %v297 = vsel %vm296, %v295, %v293
  %298 = vrot.lane.b32.xlu0 %v297, 48
  %v299 = vpop.permute.xlu0 %298
  %vm300 = vcmask 130048
  %s301 = scalar_lea.vmem %s1, 69
  %302 = vst.msk [vmem:[%s301] ss:$8 sm:$0xf] %vm300, %v299
  %s303 = scalar_lea.vmem %s1, 69
  %304 = vst.msk [vmem:[%s303] ss:$8 sm:$0xf0] %vm300, %v299
  %s305 = scalar_lea.vmem %s0, 4
  %v306 = vld [vmem:[%s305] ss:$8 sm:$0xf]
  %s307 = scalar_lea.vmem %s0, 4294967269
  %v308 = vld [vmem:[%s307] ss:$8 sm:$0xf0]
  %vm309 = vcmask 1047556
  %v310 = vsel %vm309, %v308, %v306
  %311 = vrot.lane.b32.xlu0 %v310, 48
  %v312 = vpop.permute.xlu0 %311
  %vm313 = vcmask 130048
  %s314 = scalar_lea.vmem %s1, 133
  %315 = vst.msk [vmem:[%s314] ss:$8 sm:$0xf] %vm313, %v312
  %s316 = scalar_lea.vmem %s1, 133
  %317 = vst.msk [vmem:[%s316] ss:$8 sm:$0xf0] %vm313, %v312
  %s318 = scalar_lea.vmem %s0, 6
  %v319 = vld [vmem:[%s318] ss:$8 sm:$0xf]
  %s320 = scalar_lea.vmem %s0, 4294967271
  %v321 = vld [vmem:[%s320] ss:$8 sm:$0xf0]
  %vm322 = vcmask 1047556
  %v323 = vsel %vm322, %v321, %v319
  %324 = vrot.lane.b32.xlu0 %v323, 48
  %v325 = vpop.permute.xlu0 %324
  %vm326 = vcmask 130048
  %s327 = scalar_lea.vmem %s1, 197
  %328 = vst.msk [vmem:[%s327] ss:$8 sm:$0xf] %vm326, %v325
  %s329 = scalar_lea.vmem %s1, 197
  %330 = vst.msk [vmem:[%s329] ss:$8 sm:$0xf0] %vm326, %v325
  %v331 = vld [vmem:[%s0] ss:$8 sm:$0xf]
  %s332 = scalar_lea.vmem %s0, 4294967265
  %v333 = vld [vmem:[%s332] ss:$8 sm:$0xf0]
  %vm334 = vcmask 1047556
  %v335 = vsel %vm334, %v333, %v331
  %336 = vrot.lane.b32.xlu0 %v335, 32
  %v337 = vpop.permute.xlu0 %336
  %vm338 = vcmask 130048
  %s339 = scalar_lea.vmem %s1, 6
  %340 = vst.msk [vmem:[%s339] ss:$8 sm:$0xf] %vm338, %v337
  %s341 = scalar_lea.vmem %s1, 6
  %342 = vst.msk [vmem:[%s341] ss:$8 sm:$0xf0] %vm338, %v337
  %s343 = scalar_lea.vmem %s0, 2
  %v344 = vld [vmem:[%s343] ss:$8 sm:$0xf]
  %s345 = scalar_lea.vmem %s0, 4294967267
  %v346 = vld [vmem:[%s345] ss:$8 sm:$0xf0]
  %vm347 = vcmask 1047556
  %v348 = vsel %vm347, %v346, %v344
  %349 = vrot.lane.b32.xlu0 %v348, 32
  %v350 = vpop.permute.xlu0 %349
  %vm351 = vcmask 130048
  %s352 = scalar_lea.vmem %s1, 70
  %353 = vst.msk [vmem:[%s352] ss:$8 sm:$0xf] %vm351, %v350
  %s354 = scalar_lea.vmem %s1, 70
  %355 = vst.msk [vmem:[%s354] ss:$8 sm:$0xf0] %vm351, %v350
  %s356 = scalar_lea.vmem %s0, 4
  %v357 = vld [vmem:[%s356] ss:$8 sm:$0xf]
  %s358 = scalar_lea.vmem %s0, 4294967269
  %v359 = vld [vmem:[%s358] ss:$8 sm:$0xf0]
  %vm360 = vcmask 1047556
  %v361 = vsel %vm360, %v359, %v357
  %362 = vrot.lane.b32.xlu0 %v361, 32
  %v363 = vpop.permute.xlu0 %362
  %vm364 = vcmask 130048
  %s365 = scalar_lea.vmem %s1, 134
  %366 = vst.msk [vmem:[%s365] ss:$8 sm:$0xf] %vm364, %v363
  %s367 = scalar_lea.vmem %s1, 134
  %368 = vst.msk [vmem:[%s367] ss:$8 sm:$0xf0] %vm364, %v363
  %s369 = scalar_lea.vmem %s0, 6
  %v370 = vld [vmem:[%s369] ss:$8 sm:$0xf]
  %s371 = scalar_lea.vmem %s0, 4294967271
  %v372 = vld [vmem:[%s371] ss:$8 sm:$0xf0]
  %vm373 = vcmask 1047556
  %v374 = vsel %vm373, %v372, %v370
  %375 = vrot.lane.b32.xlu0 %v374, 32
  %v376 = vpop.permute.xlu0 %375
  %vm377 = vcmask 130048
  %s378 = scalar_lea.vmem %s1, 198
  %379 = vst.msk [vmem:[%s378] ss:$8 sm:$0xf] %vm377, %v376
  %s380 = scalar_lea.vmem %s1, 198
  %381 = vst.msk [vmem:[%s380] ss:$8 sm:$0xf0] %vm377, %v376
  %v382 = vld [vmem:[%s0] ss:$8 sm:$0xf]
  %s383 = scalar_lea.vmem %s0, 4294967265
  %v384 = vld [vmem:[%s383] ss:$8 sm:$0xf0]
  %vm385 = vcmask 1047556
  %v386 = vsel %vm385, %v384, %v382
  %387 = vrot.lane.b32.xlu0 %v386, 16
  %v388 = vpop.permute.xlu0 %387
  %vm389 = vcmask 130048
  %s390 = scalar_lea.vmem %s1, 7
  %391 = vst.msk [vmem:[%s390] ss:$8 sm:$0xf] %vm389, %v388
  %s392 = scalar_lea.vmem %s1, 7
  %393 = vst.msk [vmem:[%s392] ss:$8 sm:$0xf0] %vm389, %v388
  %s394 = scalar_lea.vmem %s0, 2
  %v395 = vld [vmem:[%s394] ss:$8 sm:$0xf]
  %s396 = scalar_lea.vmem %s0, 4294967267
  %v397 = vld [vmem:[%s396] ss:$8 sm:$0xf0]
  %vm398 = vcmask 1047556
  %v399 = vsel %vm398, %v397, %v395
  %400 = vrot.lane.b32.xlu0 %v399, 16
  %v401 = vpop.permute.xlu0 %400
  %vm402 = vcmask 130048
  %s403 = scalar_lea.vmem %s1, 71
  %404 = vst.msk [vmem:[%s403] ss:$8 sm:$0xf] %vm402, %v401
  %s405 = scalar_lea.vmem %s1, 71
  %406 = vst.msk [vmem:[%s405] ss:$8 sm:$0xf0] %vm402, %v401
  %s407 = scalar_lea.vmem %s0, 4
  %v408 = vld [vmem:[%s407] ss:$8 sm:$0xf]
  %s409 = scalar_lea.vmem %s0, 4294967269
  %v410 = vld [vmem:[%s409] ss:$8 sm:$0xf0]
  %vm411 = vcmask 1047556
  %v412 = vsel %vm411, %v410, %v408
  %413 = vrot.lane.b32.xlu0 %v412, 16
  %v414 = vpop.permute.xlu0 %413
  %vm415 = vcmask 130048
  %s416 = scalar_lea.vmem %s1, 135
  %417 = vst.msk [vmem:[%s416] ss:$8 sm:$0xf] %vm415, %v414
  %s418 = scalar_lea.vmem %s1, 135
  %419 = vst.msk [vmem:[%s418] ss:$8 sm:$0xf0] %vm415, %v414
  %s420 = scalar_lea.vmem %s0, 6
  %v421 = vld [vmem:[%s420] ss:$8 sm:$0xf]
  %s422 = scalar_lea.vmem %s0, 4294967271
  %v423 = vld [vmem:[%s422] ss:$8 sm:$0xf0]
  %vm424 = vcmask 1047556
  %v425 = vsel %vm424, %v423, %v421
  %426 = vrot.lane.b32.xlu0 %v425, 16
  %v427 = vpop.permute.xlu0 %426
  %vm428 = vcmask 130048
  %s429 = scalar_lea.vmem %s1, 199
  %430 = vst.msk [vmem:[%s429] ss:$8 sm:$0xf] %vm428, %v427
  %s431 = scalar_lea.vmem %s1, 199
  %432 = vst.msk [vmem:[%s431] ss:$8 sm:$0xf0] %vm428, %v427

// kernel: dual_model_forward.3
$region0: #{dual_model_forward.3}
  #allocation0 [shape = 'u32[]', space=smem, size = 0x4, offset = 0x4, fixed_abs, tag = 'smem constant byte address 0x4 - core index']
  #allocation1 [shape = 'u32[72,128]{1,0:T(1,128)}', space=vmem, size = 0x9000, scoped, tag = 'internal scratch']
  %s0 = inlined_call_operand.vmem [shape: f32[2,8,36], index: 0, kind: input, shape index: {}]
  %s1 = inlined_call_operand.vmem [shape: f32[1,36,512], index: 1, kind: input, shape index: {}]
  %s2 = inlined_call_operand.vmem [shape: f32[2,8,1], index: 2, kind: input, shape index: {}]
  %s3 = inlined_call_operand.vmem [shape: f32[2,8,512], index: 3, kind: output, shape index: {0}]
  %s4 = inlined_call_operand.vmem [shape: f32[2,8,512], index: 4, kind: output, shape index: {1}]
  %5 = xla_tuple %s3, %s4
  %s6 = sld [smem:[#allocation0]]
  $region53: #{dual_model_forward.3} parent=0
    _
  %s8 = ssub.s32 1, %s6
  %s9 = scalar_select 0, %s8, %s6
  loop: start=0, step=1, limit=4
  $region2: #{dual_model_forward.3} parent=0 // loop_pre_header
    _
  $region3: #{dual_model_forward.3} parent=0 // loop_header
    %s11 = sphi 0, %s15
    %p12 = scmp.ge.s32.totalorder %s11, 4
    %s18 = sphi 0, %s30
    %s19 = sphi 0, %s26
    %s20 = sphi 0, %s18
    %s21 = sphi 0, %s19
    %s22 = sphi 0, %s20
    %s23 = sphi 0, %s21
    %s33 = sphi 0, %s35
    %s36 = sphi 0, %s33
    %s37 = sphi 0, %s36
    %s53 = sphi 0, %s37
    %s59 = sphi 0, %s61
    %s62 = sphi 0, %s59
    %s63 = sphi 0, %s62
    %s79 = sphi 0, %s63
    %s85 = sphi 0, %s87
    %s88 = sphi 0, %s85
    %s89 = sphi 0, %s88
    %s105 = sphi 0, %s89
    %s113 = sphi 0, %s115
    %s116 = sphi 0, %s113
    %s117 = sphi 0, %s116
    %s133 = sphi 0, %s117
    %s141 = sphi 0, %s143
    %s144 = sphi 0, %s141
    %s145 = sphi 0, %s144
    %s161 = sphi 0, %s145
  $region4: #{dual_model_forward.3} parent=0 // loop_header_branch
    %14 = sbr.rel (%p12) target = $region8
  $region5: #{dual_model_forward.3} parent=0 // loop_body
    %s16 = ssub.s32 %s11, 1
    %s17 = ssub.s32 %s11, 2
    %s24 = sadd.s32 1, %s19
    %p25 = scmp.ge.s32.totalorder %s24, 1
    %s26 = scalar_select %p25, 0, %s24
    %s27 = sadd.s32 1, %s18
    %s28 = scalar_select %p25, %s27, %s18
    %p29 = scmp.ge.s32.totalorder %s28, 2
    %s30 = scalar_select %p29, 0, %s28
    %s31 = ssub.s32 %s18, %s30
    %p32 = scmp.eq.s32.totalorder %s31, 0
    %s34 = sadd.s32 %s33, 1
    %s35 = scalar_select %p32, %s33, %s34
    %p38 = pneg %p32
    %p39 = scmp.eq.s32.totalorder %s11, 1
    %p40 = por %p38, %p39
    %p41 = scmp.ne.s32.totalorder %s33, %s36
    %p42 = scmp.eq.s32.totalorder %s11, 0
    %p43 = por %p41, %p42
    %p44 = scmp.ne.s32.totalorder %s33, %s36
    %p45 = scmp.eq.s32.totalorder %s16, 1
    %p46 = por %p44, %p45
    %p47 = scmp.ne.s32.totalorder %s36, %s37
    %p48 = scmp.eq.s32.totalorder %s16, 0
    %p49 = por %p47, %p48
    %p50 = scmp.ne.s32.totalorder %s36, %s37
    %p51 = scmp.eq.s32.totalorder %s17, 1
    %p52 = por %p50, %p51
    %p54 = scmp.ne.s32.totalorder %s37, %s53
    %p55 = scmp.eq.s32.totalorder %s17, 0
    %p56 = por %p54, %p55
    %s57 = ssub.s32 %s19, %s26
    %p58 = scmp.eq.s32.totalorder %s57, 0
    %s60 = sadd.s32 %s59, 1
    %s61 = scalar_select %p58, %s59, %s60
    %p64 = pneg %p58
    %p65 = scmp.eq.s32.totalorder %s11, 1
    %p66 = por %p64, %p65
    %p67 = scmp.ne.s32.totalorder %s59, %s62
    %p68 = scmp.eq.s32.totalorder %s11, 0
    %p69 = por %p67, %p68
    %p70 = scmp.ne.s32.totalorder %s59, %s62
    %p71 = scmp.eq.s32.totalorder %s16, 1
    %p72 = por %p70, %p71
    %p73 = scmp.ne.s32.totalorder %s62, %s63
    %p74 = scmp.eq.s32.totalorder %s16, 0
    %p75 = por %p73, %p74
    %p76 = scmp.ne.s32.totalorder %s62, %s63
    %p77 = scmp.eq.s32.totalorder %s17, 1
    %p78 = por %p76, %p77
    %p80 = scmp.ne.s32.totalorder %s63, %s79
    %p81 = scmp.eq.s32.totalorder %s17, 0
    %p82 = por %p80, %p81
    %s83 = ssub.s32 %s18, %s30
    %p84 = scmp.eq.s32.totalorder %s83, 0
    %s86 = sadd.s32 %s85, 1
    %s87 = scalar_select %p84, %s85, %s86
    %p90 = pneg %p84
    %p91 = scmp.eq.s32.totalorder %s11, 1
    %p92 = por %p90, %p91
    %p93 = scmp.ne.s32.totalorder %s85, %s88
    %p94 = scmp.eq.s32.totalorder %s11, 0
    %p95 = por %p93, %p94
    %p96 = scmp.ne.s32.totalorder %s85, %s88
    %p97 = scmp.eq.s32.totalorder %s16, 1
    %p98 = por %p96, %p97
    %p99 = scmp.ne.s32.totalorder %s88, %s89
    %p100 = scmp.eq.s32.totalorder %s16, 0
    %p101 = por %p99, %p100
    %p102 = scmp.ne.s32.totalorder %s88, %s89
    %p103 = scmp.eq.s32.totalorder %s17, 1
    %p104 = por %p102, %p103
    %p106 = scmp.ne.s32.totalorder %s89, %s105
    %p107 = scmp.eq.s32.totalorder %s17, 0
    %p108 = por %p106, %p107
    %s109 = ssub.s32 %s18, %s30
    %s110 = ssub.s32 %s19, %s26
    %s111 = sor.u32 %s109, %s110
    %p112 = scmp.eq.s32.totalorder %s111, 0
    %s114 = sadd.s32 %s113, 1
    %s115 = scalar_select %p112, %s113, %s114
    %p118 = pneg %p112
    %p119 = scmp.eq.s32.totalorder %s11, 1
    %p120 = por %p118, %p119
    %p121 = scmp.ne.s32.totalorder %s113, %s116
    %p122 = scmp.eq.s32.totalorder %s11, 0
    %p123 = por %p121, %p122
    %p124 = scmp.ne.s32.totalorder %s113, %s116
    %p125 = scmp.eq.s32.totalorder %s16, 1
    %p126 = por %p124, %p125
    %p127 = scmp.ne.s32.totalorder %s116, %s117
    %p128 = scmp.eq.s32.totalorder %s16, 0
    %p129 = por %p127, %p128
    %p130 = scmp.ne.s32.totalorder %s116, %s117
    %p131 = scmp.eq.s32.totalorder %s17, 1
    %p132 = por %p130, %p131
    %p134 = scmp.ne.s32.totalorder %s117, %s133
    %p135 = scmp.eq.s32.totalorder %s17, 0
    %p136 = por %p134, %p135
    %s137 = ssub.s32 %s18, %s30
    %s138 = ssub.s32 %s19, %s26
    %s139 = sor.u32 %s137, %s138
    %p140 = scmp.eq.s32.totalorder %s139, 0
    %s142 = sadd.s32 %s141, 1
    %s143 = scalar_select %p140, %s141, %s142
    %p146 = pneg %p140
    %p147 = scmp.eq.s32.totalorder %s11, 1
    %p148 = por %p146, %p147
    %p149 = scmp.ne.s32.totalorder %s141, %s144
    %p150 = scmp.eq.s32.totalorder %s11, 0
    %p151 = por %p149, %p150
    %p152 = scmp.ne.s32.totalorder %s141, %s144
    %p153 = scmp.eq.s32.totalorder %s16, 1
    %p154 = por %p152, %p153
    %p155 = scmp.ne.s32.totalorder %s144, %s145
    %p156 = scmp.eq.s32.totalorder %s16, 0
    %p157 = por %p155, %p156
    %p158 = scmp.ne.s32.totalorder %s144, %s145
    %p159 = scmp.eq.s32.totalorder %s17, 1
    %p160 = por %p158, %p159
    %p162 = scmp.ne.s32.totalorder %s145, %s161
    %p163 = scmp.eq.s32.totalorder %s17, 0
    %p164 = por %p162, %p163
    %p165 = scmp.le.s32.totalorder 1, %s11
    %p166 = scmp.lt.s32.totalorder %s11, 3
    %p167 = pnand %p165, %p166
    %p168 = pneg %p167
    // Predicated region
    $region9: #{dual_model_forward.3} parent=5 // pred_check
      _
    $region10: #{dual_model_forward.3} parent=5 // pred_check_branch
      %170 = sbr.rel (%p167) target = $region12
    $region11: #{dual_model_forward.3} parent=5 // pred_region
      %s171 = ssub.s32 %s11, 1
      // Predicated region
      $region13: #{dual_model_forward.3} parent=11 // pred_check
        %p172 = pneg %p75
      $region14: #{dual_model_forward.3} parent=11 // pred_check_branch
        %174 = sbr.rel (%p172) target = $region16
      $region15: #{dual_model_forward.3} parent=11 // pred_region
        %s175 = smul.u32 4, %s21
        %p176 = scmp.lt.s32.totalorder %s175, 3
        %s177 = scalar_select %p176, %s175, 3
        %s178 = smul.addr %s177, 8
        %s179 = scalar_lea.vmem %s1, %s178
        %s180 = smul.u32 4, %s21
      $region16: #{dual_model_forward.3} parent=11 // pred_fallthru
        _
    $region12: #{dual_model_forward.3} parent=5 // pred_fallthru
      _
    %p181 = scmp.lt.s32.totalorder %s11, 2
    // Predicated region
    $region17: #{dual_model_forward.3} parent=5 // pred_check
      %p182 = pneg %p181
    $region18: #{dual_model_forward.3} parent=5 // pred_check_branch
      %184 = sbr.rel (%p182) target = $region20
    $region19: #{dual_model_forward.3} parent=5 // pred_region
      // Predicated region
      $region21: #{dual_model_forward.3} parent=19 // pred_check
        %p185 = pneg %p43
      $region22: #{dual_model_forward.3} parent=19 // pred_check_branch
        %187 = sbr.rel (%p185) target = $region24
      $region23: #{dual_model_forward.3} parent=19 // pred_region
        %p188 = scmp.lt.s32.totalorder %s18, 1
        %s189 = scalar_select %p188, %s18, 1
        %s190 = smul.addr %s189, 8
        %s191 = scalar_lea.vmem %s0, %s190
      $region24: #{dual_model_forward.3} parent=19 // pred_fallthru
        _
      // Predicated region
      $region25: #{dual_model_forward.3} parent=19 // pred_check
        %p192 = pneg %p95
      $region26: #{dual_model_forward.3} parent=19 // pred_check_branch
        %194 = sbr.rel (%p192) target = $region28
      $region27: #{dual_model_forward.3} parent=19 // pred_region
        %p195 = scmp.lt.s32.totalorder %s18, 1
        %s196 = scalar_select %p195, %s18, 1
        %s197 = smul.addr %s196, 8
        %s198 = scalar_lea.vmem %s2, %s197
      $region28: #{dual_model_forward.3} parent=19 // pred_fallthru
        _
    $region20: #{dual_model_forward.3} parent=5 // pred_fallthru
      _
    %p199 = scmp.le.s32.totalorder 1, %s11
    %p200 = scmp.lt.s32.totalorder %s11, 3
    %p201 = pnand %p199, %p200
    %p202 = pneg %p201
    // Predicated region
    $region29: #{dual_model_forward.3} parent=5 // pred_check
      _
    $region30: #{dual_model_forward.3} parent=5 // pred_check_branch
      %204 = sbr.rel (%p201) target = $region32
    $region31: #{dual_model_forward.3} parent=5 // pred_region
      %s205 = ssub.s32 %s11, 1
      %p206 = scmp.lt.s32.totalorder %s20, 1
      %s207 = scalar_select %p206, %s20, 1
      %s208 = smul.addr %s207, 8
      %s209 = scalar_lea.vmem %s0, %s208
      %p210 = pneg %p49
      %p211 = pneg %p46
      %s212 = smul.u32 4, %s21
      %p213 = scmp.lt.s32.totalorder %s212, 3
      %s214 = scalar_select %p213, %s212, 3
      %s215 = smul.addr %s214, 8
      %s216 = scalar_lea.vmem %s1, %s215
      %p217 = pneg %p75
      %p218 = pneg %p72
      %p219 = scmp.lt.s32.totalorder %s20, 1
      %s220 = scalar_select %p219, %s20, 1
      %s221 = smul.addr %s220, 8
      %s222 = scalar_lea.vmem %s2, %s221
      %p223 = pneg %p101
      %p224 = pneg %p98
      %p225 = pneg %p129
      %p226 = pneg %p126
      %s227 = smul.u32 4, %s21
      %p228 = scmp.lt.s32.totalorder %s20, 1
      %s229 = scalar_select %p228, %s20, 1
      %p230 = scmp.lt.s32.totalorder %s227, 3
      %s231 = scalar_select %p230, %s227, 3
      %s232 = smul.addr %s229, 4
      %s233 = sadd.s32 %s231, %s232
      %s234 = smul.addr %s233, 8
      %s235 = scalar_lea.vmem %s3, %s234
      %p236 = pneg %p157
      %p237 = pneg %p154
      %s238 = smul.u32 4, %s21
      %p239 = scmp.lt.s32.totalorder %s20, 1
      %s240 = scalar_select %p239, %s20, 1
      %p241 = scmp.lt.s32.totalorder %s238, 3
      %s242 = scalar_select %p241, %s238, 3
      %s243 = smul.addr %s240, 4
      %s244 = sadd.s32 %s242, %s243
      %s245 = smul.addr %s244, 8
      %s246 = scalar_lea.vmem %s4, %s245
      %p247 = scmp.lt.s32.totalorder %s20, 1
      %s248 = scalar_select %p247, %s20, 1
      %s249 = smul.addr %s248, 8
      %s250 = scalar_lea.vmem %s0, %s249
      %s251 = smul.u32 4, %s21
      %p252 = scmp.lt.s32.totalorder %s251, 3
      %s253 = scalar_select %p252, %s251, 3
      %s254 = smul.addr %s253, 8
      %s255 = scalar_lea.vmem %s1, %s254
      %s256 = smul.u32 4, %s21
      %p257 = scmp.lt.s32.totalorder %s20, 1
      %s258 = scalar_select %p257, %s20, 1
      %s259 = smul.addr %s258, 8
      %s260 = scalar_lea.vmem %s2, %s259
      %s261 = smul.u32 4, %s21
      %p262 = scmp.lt.s32.totalorder %s20, 1
      %s263 = scalar_select %p262, %s20, 1
      %p264 = scmp.lt.s32.totalorder %s261, 3
      %s265 = scalar_select %p264, %s261, 3
      %s266 = smul.addr %s263, 4
      %s267 = sadd.s32 %s265, %s266
      %s268 = smul.addr %s267, 8
      %s269 = scalar_lea.vmem %s3, %s268
      %s270 = smul.u32 4, %s21
      %s271 = smul.u32 4, %s21
      %p272 = scmp.lt.s32.totalorder %s20, 1
      %s273 = scalar_select %p272, %s20, 1
      %p274 = scmp.lt.s32.totalorder %s271, 3
      %s275 = scalar_select %p274, %s271, 3
      %s276 = smul.addr %s273, 4
      %s277 = sadd.s32 %s275, %s276
      %s278 = smul.addr %s277, 8
      %s279 = scalar_lea.vmem %s4, %s278
      %s280 = smul.u32 4, %s21
      %v282 = vld [vmem:[%s250] sm:$0xff]
      %v283 = vpack.c.bf16 %v282, %v282
      %v284 = vld [vmem:[%s255] sm:$0xff]
      %v285 = vld [vmem:[%s255 + $0x8] sm:$0xff]
      %v286 = vld [vmem:[%s255 + $0x10] sm:$0xff]
      %v287 = vld [vmem:[%s255 + $0x18] sm:$0xff]
      %v288 = vld [vmem:[%s255 + $0x20] sm:$0xff]
      %v289 = vld [vmem:[%s255 + $0x28] sm:$0xff]
      %v290 = vld [vmem:[%s255 + $0x30] sm:$0xff]
      %v291 = vld [vmem:[%s255 + $0x38] sm:$0xff]
      %v292 = vld [vmem:[%s255 + $0x40] sm:$0xff]
      %v293 = vld [vmem:[%s255 + $0x48] sm:$0xff]
      %v294 = vld [vmem:[%s255 + $0x50] sm:$0xff]
      %v295 = vld [vmem:[%s255 + $0x58] sm:$0xff]
      %v296 = vld [vmem:[%s255 + $0x60] sm:$0xff]
      %v297 = vld [vmem:[%s255 + $0x68] sm:$0xff]
      %v298 = vld [vmem:[%s255 + $0x70] sm:$0xff]
      %v299 = vld [vmem:[%s255 + $0x78] sm:$0xff]
      %v300 = vld [vmem:[%s255 + $0x80] sm:$0xf]
      %v301 = vld [vmem:[%s255 + $0x88] sm:$0xf]
      %v302 = vld [vmem:[%s255 + $0x90] sm:$0xf]
      %v303 = vld [vmem:[%s255 + $0x98] sm:$0xf]
      %v304 = vpack.c.bf16 %v288, %v284
      %v305 = vpack.c.bf16 %v289, %v285
      %v306 = vpack.c.bf16 %v290, %v286
      %v307 = vpack.c.bf16 %v291, %v287
      %v308 = vpack.c.bf16 %v296, %v292
      %v309 = vpack.c.bf16 %v297, %v293
      %v310 = vpack.c.bf16 %v298, %v294
      %v311 = vpack.c.bf16 %v299, %v295
      %v312 = vpack.c.bf16 %v300, %v300
      %v313 = vpack.c.bf16 %v301, %v301
      %v314 = vpack.c.bf16 %v302, %v302
      %v315 = vpack.c.bf16 %v303, %v303
      %v316 = vld [vmem:[%s260] sm:$0xff]
      %318 = vset.pattern.permute.xlu0 0
      %319 = vperm.xlu0 %318, %v316
      %v320 = vpop.permute.xlu0 %319
      %vm322 = vcmask 293888
      %v324 = vsel %vm322, %v283, 0
      %vm326 = vcmask 1041408
      %v328 = vsel %vm326, %v312, 0
      %v331 = vsel %vm326, %v313, 0
      %v334 = vsel %vm326, %v314, 0
      %v337 = vsel %vm326, %v315, 0
      %339 = vmatpush.bf16.msra.mxu0 0
      %340 = vmatpush.bf16.msra.mxu0 0
      %341 = vmatpush.bf16.msra.mxu0 0
      %342 = vmatpush.bf16.msra.mxu0 0
      %343 = vmatpush.bf16.msra.mxu0 0
      %344 = vmatpush.bf16.msra.mxu0 %v328
      %345 = vmatpush.bf16.msra.mxu0 %v308
      %346 = vmatpush.bf16.msra.mxu0 %v304
      %347 = vmatmul.bf16.gmra.mxu0 %v324
      %v348 = vpop.f32.mrf.mxu0
      %v349 = vadd.f32 %v320, %v348
      %v350 = vpop.f32.mrf.mxu0
      %351 = vdwg.mxu0
      %352 = vmatpush.bf16.msra.mxu0 0
      %353 = vmatpush.bf16.msra.mxu0 0
      %354 = vmatpush.bf16.msra.mxu0 0
      %355 = vmatpush.bf16.msra.mxu0 0
      %356 = vmatpush.bf16.msra.mxu0 0
      %357 = vmatpush.bf16.msra.mxu0 %v331
      %358 = vmatpush.bf16.msra.mxu0 %v309
      %359 = vmatpush.bf16.msra.mxu0 %v305
      %360 = vmatmul.bf16.gmra.mxu0 %v324
      %v361 = vpop.f32.mrf.mxu0
      %v362 = vadd.f32 %v320, %v361
      %v363 = vpop.f32.mrf.mxu0
      %364 = vdwg.mxu0
      %365 = vmatpush.bf16.msra.mxu0 0
      %366 = vmatpush.bf16.msra.mxu0 0
      %367 = vmatpush.bf16.msra.mxu0 0
      %368 = vmatpush.bf16.msra.mxu0 0
      %369 = vmatpush.bf16.msra.mxu0 0
      %370 = vmatpush.bf16.msra.mxu0 %v334
      %371 = vmatpush.bf16.msra.mxu0 %v310
      %372 = vmatpush.bf16.msra.mxu0 %v306
      %373 = vmatmul.bf16.gmra.mxu0 %v324
      %v374 = vpop.f32.mrf.mxu0
      %v375 = vadd.f32 %v320, %v374
      %v376 = vpop.f32.mrf.mxu0
      %377 = vdwg.mxu0
      %378 = vmatpush.bf16.msra.mxu0 0
      %379 = vmatpush.bf16.msra.mxu0 0
      %380 = vmatpush.bf16.msra.mxu0 0
      %381 = vmatpush.bf16.msra.mxu0 0
      %382 = vmatpush.bf16.msra.mxu0 0
      %383 = vmatpush.bf16.msra.mxu0 %v337
      %384 = vmatpush.bf16.msra.mxu0 %v311
      %385 = vmatpush.bf16.msra.mxu0 %v307
      %386 = vmatmul.bf16.gmra.mxu0 %v324
      %v387 = vpop.f32.mrf.mxu0
      %v388 = vadd.f32 %v320, %v387
      %v389 = vpop.f32.mrf.mxu0
      %390 = vdwg.mxu0
      %391 = vst [vmem:[%s269] sm:$0xff] %v349
      %392 = vst [vmem:[%s269 + $0x8] sm:$0xff] %v362
      %393 = vst [vmem:[%s269 + $0x10] sm:$0xff] %v375
      %394 = vst [vmem:[%s269 + $0x18] sm:$0xff] %v388
      %v395 = vmax.f32 %v349, 0.0
      %v396 = vmax.f32 %v362, 0.0
      %v397 = vmax.f32 %v375, 0.0
      %v398 = vmax.f32 %v388, 0.0
      %399 = vst [vmem:[%s279] sm:$0xff] %v395
      %400 = vst [vmem:[%s279 + $0x8] sm:$0xff] %v396
      %401 = vst [vmem:[%s279 + $0x10] sm:$0xff] %v397
      %402 = vst [vmem:[%s279 + $0x18] sm:$0xff] %v398
      %s403 = smul.u32 4, %s21
      %p404 = scmp.lt.s32.totalorder %s20, 1
      %s405 = scalar_select %p404, %s20, 1
      %p406 = scmp.lt.s32.totalorder %s403, 3
      %s407 = scalar_select %p406, %s403, 3
      %s408 = smul.addr %s405, 4
      %s409 = sadd.s32 %s407, %s408
      %s410 = smul.addr %s409, 8
      %s411 = scalar_lea.vmem %s3, %s410
      %s412 = smul.u32 4, %s21
      %p413 = scmp.lt.s32.totalorder %s20, 1
      %s414 = scalar_select %p413, %s20, 1
      %p415 = scmp.lt.s32.totalorder %s412, 3
      %s416 = scalar_select %p415, %s412, 3
      %s417 = smul.addr %s414, 4
      %s418 = sadd.s32 %s416, %s417
      %s419 = smul.addr %s418, 8
      %s420 = scalar_lea.vmem %s4, %s419
      // Predicated region
      $region33: #{dual_model_forward.3} parent=31 // pred_check
        %p421 = pneg %p126
      $region34: #{dual_model_forward.3} parent=31 // pred_check_branch
        %423 = sbr.rel (%p421) target = $region36
      $region35: #{dual_model_forward.3} parent=31 // pred_region
        %s424 = smul.u32 4, %s21
      $region36: #{dual_model_forward.3} parent=31 // pred_fallthru
        _
      // Predicated region
      $region37: #{dual_model_forward.3} parent=31 // pred_check
        %p425 = pneg %p154
      $region38: #{dual_model_forward.3} parent=31 // pred_check_branch
        %427 = sbr.rel (%p425) target = $region40
      $region39: #{dual_model_forward.3} parent=31 // pred_region
        %s428 = smul.u32 4, %s21
      $region40: #{dual_model_forward.3} parent=31 // pred_fallthru
        _
    $region32: #{dual_model_forward.3} parent=5 // pred_fallthru
      _
    %p429 = scmp.le.s32.totalorder 2, %s11
    // Predicated region
    $region41: #{dual_model_forward.3} parent=5 // pred_check
      %p430 = pneg %p429
    $region42: #{dual_model_forward.3} parent=5 // pred_check_branch
      %432 = sbr.rel (%p430) target = $region44
    $region43: #{dual_model_forward.3} parent=5 // pred_region
      %s433 = ssub.s32 %s11, 2
      // Predicated region
      $region45: #{dual_model_forward.3} parent=43 // pred_check
        %p434 = pneg %p132
      $region46: #{dual_model_forward.3} parent=43 // pred_check_branch
        %436 = sbr.rel (%p434) target = $region48
      $region47: #{dual_model_forward.3} parent=43 // pred_region
        %s437 = smul.u32 4, %s23
        %p438 = scmp.lt.s32.totalorder %s22, 1
        %s439 = scalar_select %p438, %s22, 1
        %p440 = scmp.lt.s32.totalorder %s437, 3
        %s441 = scalar_select %p440, %s437, 3
        %s442 = smul.addr %s439, 4
        %s443 = sadd.s32 %s441, %s442
        %s444 = smul.addr %s443, 8
        %s445 = scalar_lea.vmem %s3, %s444
      $region48: #{dual_model_forward.3} parent=43 // pred_fallthru
        _
      // Predicated region
      $region49: #{dual_model_forward.3} parent=43 // pred_check
        %p446 = pneg %p160
      $region50: #{dual_model_forward.3} parent=43 // pred_check_branch
        %448 = sbr.rel (%p446) target = $region52
      $region51: #{dual_model_forward.3} parent=43 // pred_region
        %s449 = smul.u32 4, %s23
        %p450 = scmp.lt.s32.totalorder %s22, 1
        %s451 = scalar_select %p450, %s22, 1
        %p452 = scmp.lt.s32.totalorder %s449, 3
        %s453 = scalar_select %p452, %s449, 3
        %s454 = smul.addr %s451, 4
        %s455 = sadd.s32 %s453, %s454
        %s456 = smul.addr %s455, 8
        %s457 = scalar_lea.vmem %s4, %s456
      $region52: #{dual_model_forward.3} parent=43 // pred_fallthru
        _
    $region44: #{dual_model_forward.3} parent=5 // pred_fallthru
      _
  $region6: #{dual_model_forward.3} parent=0 // loop_footer
    %s15 = sadd.s32 1, %s11
  $region7: #{dual_model_forward.3} parent=0 // loop_footer_branch
    %10 = sbr.rel target = $region3
  $region8: #{dual_model_forward.3} parent=0 // loop_exit
    _

// kernel: dual_model_forward.4
$region0: #{dual_model_forward.4}
  #allocation0 [shape = 'u32[]', space=smem, size = 0x4, offset = 0x4, fixed_abs, tag = 'smem constant byte address 0x4 - core index']
  #allocation1 [shape = 'u32[72,128]{1,0:T(1,128)}', space=vmem, size = 0x9000, scoped, tag = 'internal scratch']
  %s0 = inlined_call_operand.vmem [shape: f32[2,16,72], index: 0, kind: input, shape index: {}]
  %s1 = inlined_call_operand.vmem [shape: f32[2,72,512], index: 1, kind: input, shape index: {}]
  %s2 = inlined_call_operand.vmem [shape: f32[2,16,1], index: 2, kind: input, shape index: {}]
  %s3 = inlined_call_operand.vmem [shape: f32[2,16,512], index: 3, kind: output, shape index: {0}]
  %s4 = inlined_call_operand.vmem [shape: f32[2,16,512], index: 4, kind: output, shape index: {1}]
  %5 = xla_tuple %s3, %s4
  %s6 = sld [smem:[#allocation0]]
  $region53: #{dual_model_forward.4} parent=0
    _
  %s8 = ssub.s32 1, %s6
  %s9 = scalar_select 0, %s8, %s6
  loop: start=0, step=1, limit=4
  $region2: #{dual_model_forward.4} parent=0 // loop_pre_header
    _
  $region3: #{dual_model_forward.4} parent=0 // loop_header
    %s11 = sphi 0, %s15
    %p12 = scmp.ge.s32.totalorder %s11, 4
    %s18 = sphi 0, %s30
    %s19 = sphi 0, %s26
    %s20 = sphi 0, %s18
    %s21 = sphi 0, %s19
    %s22 = sphi 0, %s20
    %s23 = sphi 0, %s21
    %s33 = sphi 0, %s35
    %s36 = sphi 0, %s33
    %s37 = sphi 0, %s36
    %s53 = sphi 0, %s37
    %s61 = sphi 0, %s63
    %s64 = sphi 0, %s61
    %s65 = sphi 0, %s64
    %s81 = sphi 0, %s65
    %s87 = sphi 0, %s89
    %s90 = sphi 0, %s87
    %s91 = sphi 0, %s90
    %s107 = sphi 0, %s91
    %s115 = sphi 0, %s117
    %s118 = sphi 0, %s115
    %s119 = sphi 0, %s118
    %s135 = sphi 0, %s119
    %s143 = sphi 0, %s145
    %s146 = sphi 0, %s143
    %s147 = sphi 0, %s146
    %s163 = sphi 0, %s147
  $region4: #{dual_model_forward.4} parent=0 // loop_header_branch
    %14 = sbr.rel (%p12) target = $region8
  $region5: #{dual_model_forward.4} parent=0 // loop_body
    %s16 = ssub.s32 %s11, 1
    %s17 = ssub.s32 %s11, 2
    %s24 = sadd.s32 1, %s19
    %p25 = scmp.ge.s32.totalorder %s24, 1
    %s26 = scalar_select %p25, 0, %s24
    %s27 = sadd.s32 1, %s18
    %s28 = scalar_select %p25, %s27, %s18
    %p29 = scmp.ge.s32.totalorder %s28, 2
    %s30 = scalar_select %p29, 0, %s28
    %s31 = ssub.s32 %s18, %s30
    %p32 = scmp.eq.s32.totalorder %s31, 0
    %s34 = sadd.s32 %s33, 1
    %s35 = scalar_select %p32, %s33, %s34
    %p38 = pneg %p32
    %p39 = scmp.eq.s32.totalorder %s11, 1
    %p40 = por %p38, %p39
    %p41 = scmp.ne.s32.totalorder %s33, %s36
    %p42 = scmp.eq.s32.totalorder %s11, 0
    %p43 = por %p41, %p42
    %p44 = scmp.ne.s32.totalorder %s33, %s36
    %p45 = scmp.eq.s32.totalorder %s16, 1
    %p46 = por %p44, %p45
    %p47 = scmp.ne.s32.totalorder %s36, %s37
    %p48 = scmp.eq.s32.totalorder %s16, 0
    %p49 = por %p47, %p48
    %p50 = scmp.ne.s32.totalorder %s36, %s37
    %p51 = scmp.eq.s32.totalorder %s17, 1
    %p52 = por %p50, %p51
    %p54 = scmp.ne.s32.totalorder %s37, %s53
    %p55 = scmp.eq.s32.totalorder %s17, 0
    %p56 = por %p54, %p55
    %s57 = ssub.s32 %s18, %s30
    %s58 = ssub.s32 %s19, %s26
    %s59 = sor.u32 %s57, %s58
    %p60 = scmp.eq.s32.totalorder %s59, 0
    %s62 = sadd.s32 %s61, 1
    %s63 = scalar_select %p60, %s61, %s62
    %p66 = pneg %p60
    %p67 = scmp.eq.s32.totalorder %s11, 1
    %p68 = por %p66, %p67
    %p69 = scmp.ne.s32.totalorder %s61, %s64
    %p70 = scmp.eq.s32.totalorder %s11, 0
    %p71 = por %p69, %p70
    %p72 = scmp.ne.s32.totalorder %s61, %s64
    %p73 = scmp.eq.s32.totalorder %s16, 1
    %p74 = por %p72, %p73
    %p75 = scmp.ne.s32.totalorder %s64, %s65
    %p76 = scmp.eq.s32.totalorder %s16, 0
    %p77 = por %p75, %p76
    %p78 = scmp.ne.s32.totalorder %s64, %s65
    %p79 = scmp.eq.s32.totalorder %s17, 1
    %p80 = por %p78, %p79
    %p82 = scmp.ne.s32.totalorder %s65, %s81
    %p83 = scmp.eq.s32.totalorder %s17, 0
    %p84 = por %p82, %p83
    %s85 = ssub.s32 %s18, %s30
    %p86 = scmp.eq.s32.totalorder %s85, 0
    %s88 = sadd.s32 %s87, 1
    %s89 = scalar_select %p86, %s87, %s88
    %p92 = pneg %p86
    %p93 = scmp.eq.s32.totalorder %s11, 1
    %p94 = por %p92, %p93
    %p95 = scmp.ne.s32.totalorder %s87, %s90
    %p96 = scmp.eq.s32.totalorder %s11, 0
    %p97 = por %p95, %p96
    %p98 = scmp.ne.s32.totalorder %s87, %s90
    %p99 = scmp.eq.s32.totalorder %s16, 1
    %p100 = por %p98, %p99
    %p101 = scmp.ne.s32.totalorder %s90, %s91
    %p102 = scmp.eq.s32.totalorder %s16, 0
    %p103 = por %p101, %p102
    %p104 = scmp.ne.s32.totalorder %s90, %s91
    %p105 = scmp.eq.s32.totalorder %s17, 1
    %p106 = por %p104, %p105
    %p108 = scmp.ne.s32.totalorder %s91, %s107
    %p109 = scmp.eq.s32.totalorder %s17, 0
    %p110 = por %p108, %p109
    %s111 = ssub.s32 %s18, %s30
    %s112 = ssub.s32 %s19, %s26
    %s113 = sor.u32 %s111, %s112
    %p114 = scmp.eq.s32.totalorder %s113, 0
    %s116 = sadd.s32 %s115, 1
    %s117 = scalar_select %p114, %s115, %s116
    %p120 = pneg %p114
    %p121 = scmp.eq.s32.totalorder %s11, 1
    %p122 = por %p120, %p121
    %p123 = scmp.ne.s32.totalorder %s115, %s118
    %p124 = scmp.eq.s32.totalorder %s11, 0
    %p125 = por %p123, %p124
    %p126 = scmp.ne.s32.totalorder %s115, %s118
    %p127 = scmp.eq.s32.totalorder %s16, 1
    %p128 = por %p126, %p127
    %p129 = scmp.ne.s32.totalorder %s118, %s119
    %p130 = scmp.eq.s32.totalorder %s16, 0
    %p131 = por %p129, %p130
    %p132 = scmp.ne.s32.totalorder %s118, %s119
    %p133 = scmp.eq.s32.totalorder %s17, 1
    %p134 = por %p132, %p133
    %p136 = scmp.ne.s32.totalorder %s119, %s135
    %p137 = scmp.eq.s32.totalorder %s17, 0
    %p138 = por %p136, %p137
    %s139 = ssub.s32 %s18, %s30
    %s140 = ssub.s32 %s19, %s26
    %s141 = sor.u32 %s139, %s140
    %p142 = scmp.eq.s32.totalorder %s141, 0
    %s144 = sadd.s32 %s143, 1
    %s145 = scalar_select %p142, %s143, %s144
    %p148 = pneg %p142
    %p149 = scmp.eq.s32.totalorder %s11, 1
    %p150 = por %p148, %p149
    %p151 = scmp.ne.s32.totalorder %s143, %s146
    %p152 = scmp.eq.s32.totalorder %s11, 0
    %p153 = por %p151, %p152
    %p154 = scmp.ne.s32.totalorder %s143, %s146
    %p155 = scmp.eq.s32.totalorder %s16, 1
    %p156 = por %p154, %p155
    %p157 = scmp.ne.s32.totalorder %s146, %s147
    %p158 = scmp.eq.s32.totalorder %s16, 0
    %p159 = por %p157, %p158
    %p160 = scmp.ne.s32.totalorder %s146, %s147
    %p161 = scmp.eq.s32.totalorder %s17, 1
    %p162 = por %p160, %p161
    %p164 = scmp.ne.s32.totalorder %s147, %s163
    %p165 = scmp.eq.s32.totalorder %s17, 0
    %p166 = por %p164, %p165
    %p167 = scmp.le.s32.totalorder 1, %s11
    %p168 = scmp.lt.s32.totalorder %s11, 3
    %p169 = pnand %p167, %p168
    %p170 = pneg %p169
    // Predicated region
    $region9: #{dual_model_forward.4} parent=5 // pred_check
      _
    $region10: #{dual_model_forward.4} parent=5 // pred_check_branch
      %172 = sbr.rel (%p169) target = $region12
    $region11: #{dual_model_forward.4} parent=5 // pred_region
      %s173 = ssub.s32 %s11, 1
    $region12: #{dual_model_forward.4} parent=5 // pred_fallthru
      _
    %p174 = scmp.lt.s32.totalorder %s11, 2
    // Predicated region
    $region13: #{dual_model_forward.4} parent=5 // pred_check
      %p175 = pneg %p174
    $region14: #{dual_model_forward.4} parent=5 // pred_check_branch
      %177 = sbr.rel (%p175) target = $region16
    $region15: #{dual_model_forward.4} parent=5 // pred_region
      // Predicated region
      $region17: #{dual_model_forward.4} parent=15 // pred_check
        %p178 = pneg %p43
      $region18: #{dual_model_forward.4} parent=15 // pred_check_branch
        %180 = sbr.rel (%p178) target = $region20
      $region19: #{dual_model_forward.4} parent=15 // pred_region
        %p181 = scmp.lt.s32.totalorder %s18, 1
        %s182 = scalar_select %p181, %s18, 1
        %s183 = smul.addr %s182, 2
        %s184 = smul.addr %s183, 8
        %s185 = scalar_lea.vmem %s0, %s184
      $region20: #{dual_model_forward.4} parent=15 // pred_fallthru
        _
      // Predicated region
      $region21: #{dual_model_forward.4} parent=15 // pred_check
        %p186 = pneg %p71
      $region22: #{dual_model_forward.4} parent=15 // pred_check_branch
        %188 = sbr.rel (%p186) target = $region24
      $region23: #{dual_model_forward.4} parent=15 // pred_region
        %s189 = smul.u32 4, %s19
        %p190 = scmp.lt.s32.totalorder %s18, 1
        %s191 = scalar_select %p190, %s18, 1
        %p192 = scmp.lt.s32.totalorder %s189, 3
        %s193 = scalar_select %p192, %s189, 3
        %s194 = smul.addr %s191, 36
        %s195 = sadd.s32 %s193, %s194
        %s196 = smul.addr %s195, 8
        %s197 = scalar_lea.vmem %s1, %s196
        %s198 = smul.u32 4, %s19
      $region24: #{dual_model_forward.4} parent=15 // pred_fallthru
        _
      // Predicated region
      $region25: #{dual_model_forward.4} parent=15 // pred_check
        %p199 = pneg %p97
      $region26: #{dual_model_forward.4} parent=15 // pred_check_branch
        %201 = sbr.rel (%p199) target = $region28
      $region27: #{dual_model_forward.4} parent=15 // pred_region
        %p202 = scmp.lt.s32.totalorder %s18, 1
        %s203 = scalar_select %p202, %s18, 1
        %s204 = smul.addr %s203, 2
        %s205 = smul.addr %s204, 8
        %s206 = scalar_lea.vmem %s2, %s205
      $region28: #{dual_model_forward.4} parent=15 // pred_fallthru
        _
    $region16: #{dual_model_forward.4} parent=5 // pred_fallthru
      _
    %p207 = scmp.le.s32.totalorder 1, %s11
    %p208 = scmp.lt.s32.totalorder %s11, 3
    %p209 = pnand %p207, %p208
    %p210 = pneg %p209
    // Predicated region
    $region29: #{dual_model_forward.4} parent=5 // pred_check
      _
    $region30: #{dual_model_forward.4} parent=5 // pred_check_branch
      %212 = sbr.rel (%p209) target = $region32
    $region31: #{dual_model_forward.4} parent=5 // pred_region
      %s213 = ssub.s32 %s11, 1
      %p214 = scmp.lt.s32.totalorder %s20, 1
      %s215 = scalar_select %p214, %s20, 1
      %s216 = smul.addr %s215, 2
      %s217 = smul.addr %s216, 8
      %s218 = scalar_lea.vmem %s0, %s217
      %p219 = pneg %p49
      %p220 = pneg %p46
      %s221 = smul.u32 4, %s21
      %p222 = scmp.lt.s32.totalorder %s20, 1
      %s223 = scalar_select %p222, %s20, 1
      %p224 = scmp.lt.s32.totalorder %s221, 3
      %s225 = scalar_select %p224, %s221, 3
      %s226 = smul.addr %s223, 36
      %s227 = sadd.s32 %s225, %s226
      %s228 = smul.addr %s227, 8
      %s229 = scalar_lea.vmem %s1, %s228
      %p230 = pneg %p77
      %p231 = pneg %p74
      %p232 = scmp.lt.s32.totalorder %s20, 1
      %s233 = scalar_select %p232, %s20, 1
      %s234 = smul.addr %s233, 2
      %s235 = smul.addr %s234, 8
      %s236 = scalar_lea.vmem %s2, %s235
      %p237 = pneg %p103
      %p238 = pneg %p100
      %p239 = pneg %p131
      %p240 = pneg %p128
      %s241 = smul.u32 4, %s21
      %p242 = scmp.lt.s32.totalorder %s20, 1
      %s243 = scalar_select %p242, %s20, 1
      %p244 = scmp.lt.s32.totalorder %s241, 3
      %s245 = scalar_select %p244, %s241, 3
      %s246 = smul.addr %s243, 8
      %s247 = sadd.s32 %s245, %s246
      %s248 = smul.addr %s247, 8
      %s249 = scalar_lea.vmem %s3, %s248
      %p250 = pneg %p159
      %p251 = pneg %p156
      %s252 = smul.u32 4, %s21
      %p253 = scmp.lt.s32.totalorder %s20, 1
      %s254 = scalar_select %p253, %s20, 1
      %p255 = scmp.lt.s32.totalorder %s252, 3
      %s256 = scalar_select %p255, %s252, 3
      %s257 = smul.addr %s254, 8
      %s258 = sadd.s32 %s256, %s257
      %s259 = smul.addr %s258, 8
      %s260 = scalar_lea.vmem %s4, %s259
      %p261 = scmp.lt.s32.totalorder %s20, 1
      %s262 = scalar_select %p261, %s20, 1
      %s263 = smul.addr %s262, 2
      %s264 = smul.addr %s263, 8
      %s265 = scalar_lea.vmem %s0, %s264
      %s266 = smul.u32 4, %s21
      %p267 = scmp.lt.s32.totalorder %s20, 1
      %s268 = scalar_select %p267, %s20, 1
      %p269 = scmp.lt.s32.totalorder %s266, 3
      %s270 = scalar_select %p269, %s266, 3
      %s271 = smul.addr %s268, 36
      %s272 = sadd.s32 %s270, %s271
      %s273 = smul.addr %s272, 8
      %s274 = scalar_lea.vmem %s1, %s273
      %s275 = smul.u32 4, %s21
      %p276 = scmp.lt.s32.totalorder %s20, 1
      %s277 = scalar_select %p276, %s20, 1
      %s278 = smul.addr %s277, 2
      %s279 = smul.addr %s278, 8
      %s280 = scalar_lea.vmem %s2, %s279
      %s281 = smul.u32 4, %s21
      %p282 = scmp.lt.s32.totalorder %s20, 1
      %s283 = scalar_select %p282, %s20, 1
      %p284 = scmp.lt.s32.totalorder %s281, 3
      %s285 = scalar_select %p284, %s281, 3
      %s286 = smul.addr %s283, 8
      %s287 = sadd.s32 %s285, %s286
      %s288 = smul.addr %s287, 8
      %s289 = scalar_lea.vmem %s3, %s288
      %s290 = smul.u32 4, %s21
      %s291 = smul.u32 4, %s21
      %p292 = scmp.lt.s32.totalorder %s20, 1
      %s293 = scalar_select %p292, %s20, 1
      %p294 = scmp.lt.s32.totalorder %s291, 3
      %s295 = scalar_select %p294, %s291, 3
      %s296 = smul.addr %s293, 8
      %s297 = sadd.s32 %s295, %s296
      %s298 = smul.addr %s297, 8
      %s299 = scalar_lea.vmem %s4, %s298
      %s300 = smul.u32 4, %s21
      %v302 = vld [vmem:[%s265] sm:$0xff]
      %v303 = vld [vmem:[%s265 + $0x8] sm:$0xff]
      %v304 = vpack.c.bf16 %v303, %v302
      %v305 = vld [vmem:[%s274] sm:$0xff]
      %v306 = vld [vmem:[%s274 + $0x8] sm:$0xff]
      %v307 = vld [vmem:[%s274 + $0x10] sm:$0xff]
      %v308 = vld [vmem:[%s274 + $0x18] sm:$0xff]
      %v309 = vld [vmem:[%s274 + $0x20] sm:$0xff]
      %v310 = vld [vmem:[%s274 + $0x28] sm:$0xff]
      %v311 = vld [vmem:[%s274 + $0x30] sm:$0xff]
      %v312 = vld [vmem:[%s274 + $0x38] sm:$0xff]
      %v313 = vld [vmem:[%s274 + $0x40] sm:$0xff]
      %v314 = vld [vmem:[%s274 + $0x48] sm:$0xff]
      %v315 = vld [vmem:[%s274 + $0x50] sm:$0xff]
      %v316 = vld [vmem:[%s274 + $0x58] sm:$0xff]
      %v317 = vld [vmem:[%s274 + $0x60] sm:$0xff]
      %v318 = vld [vmem:[%s274 + $0x68] sm:$0xff]
      %v319 = vld [vmem:[%s274 + $0x70] sm:$0xff]
      %v320 = vld [vmem:[%s274 + $0x78] sm:$0xff]
      %v321 = vld [vmem:[%s274 + $0x80] sm:$0xff]
      %v322 = vld [vmem:[%s274 + $0x88] sm:$0xff]
      %v323 = vld [vmem:[%s274 + $0x90] sm:$0xff]
      %v324 = vld [vmem:[%s274 + $0x98] sm:$0xff]
      %v325 = vld [vmem:[%s274 + $0xa0] sm:$0xff]
      %v326 = vld [vmem:[%s274 + $0xa8] sm:$0xff]
      %v327 = vld [vmem:[%s274 + $0xb0] sm:$0xff]
      %v328 = vld [vmem:[%s274 + $0xb8] sm:$0xff]
      %v329 = vld [vmem:[%s274 + $0xc0] sm:$0xff]
      %v330 = vld [vmem:[%s274 + $0xc8] sm:$0xff]
      %v331 = vld [vmem:[%s274 + $0xd0] sm:$0xff]
      %v332 = vld [vmem:[%s274 + $0xd8] sm:$0xff]
      %v333 = vld [vmem:[%s274 + $0xe0] sm:$0xff]
      %v334 = vld [vmem:[%s274 + $0xe8] sm:$0xff]
      %v335 = vld [vmem:[%s274 + $0xf0] sm:$0xff]
      %v336 = vld [vmem:[%s274 + $0xf8] sm:$0xff]
      %v337 = vld [vmem:[%s274 + $0x100] sm:$0xff]
      %v338 = vld [vmem:[%s274 + $0x108] sm:$0xff]
      %v339 = vld [vmem:[%s274 + $0x110] sm:$0xff]
      %v340 = vld [vmem:[%s274 + $0x118] sm:$0xff]
      %v341 = vpack.c.bf16 %v309, %v305
      %v342 = vpack.c.bf16 %v310, %v306
      %v343 = vpack.c.bf16 %v311, %v307
      %v344 = vpack.c.bf16 %v312, %v308
      %v345 = vpack.c.bf16 %v317, %v313
      %v346 = vpack.c.bf16 %v318, %v314
      %v347 = vpack.c.bf16 %v319, %v315
      %v348 = vpack.c.bf16 %v320, %v316
      %v349 = vpack.c.bf16 %v325, %v321
      %v350 = vpack.c.bf16 %v326, %v322
      %v351 = vpack.c.bf16 %v327, %v323
      %v352 = vpack.c.bf16 %v328, %v324
      %v353 = vpack.c.bf16 %v333, %v329
      %v354 = vpack.c.bf16 %v334, %v330
      %v355 = vpack.c.bf16 %v335, %v331
      %v356 = vpack.c.bf16 %v336, %v332
      %v357 = vpack.c.bf16 %v337, %v337
      %v358 = vpack.c.bf16 %v338, %v338
      %v359 = vpack.c.bf16 %v339, %v339
      %v360 = vpack.c.bf16 %v340, %v340
      %v361 = vld [vmem:[%s280] sm:$0xff]
      %v362 = vld [vmem:[%s280 + $0x8] sm:$0xff]
      %364 = vset.pattern.permute.xlu0 0
      %365 = vperm.xlu0 %364, %v361
      %v366 = vpop.permute.xlu0 %365
      %369 = vset.pattern.permute.xlu0 0
      %370 = vperm.xlu0 %369, %v362
      %v371 = vpop.permute.xlu0 %370
      %vm373 = vcmask 588800
      %v375 = vsel %vm373, %v304, 0
      %vm377 = vcmask 1043456
      %v379 = vsel %vm377, %v357, 0
      %v382 = vsel %vm377, %v358, 0
      %v385 = vsel %vm377, %v359, 0
      %v388 = vsel %vm377, %v360, 0
      %390 = vmatpush.bf16.msra.mxu0 0
      %391 = vmatpush.bf16.msra.mxu0 0
      %392 = vmatpush.bf16.msra.mxu0 0
      %393 = vmatpush.bf16.msra.mxu0 %v379
      %394 = vmatpush.bf16.msra.mxu0 %v353
      %395 = vmatpush.bf16.msra.mxu0 %v349
      %396 = vmatpush.bf16.msra.mxu0 %v345
      %397 = vmatpush.bf16.msra.mxu0 %v341
      %398 = vmatmul.bf16.gmra.mxu0 %v375
      %v399 = vpop.f32.mrf.mxu0
      %v400 = vadd.f32 %v366, %v399
      %v401 = vpop.f32.mrf.mxu0
      %v402 = vadd.f32 %v371, %v401
      %403 = vdwg.mxu0
      %404 = vmatpush.bf16.msra.mxu0 0
      %405 = vmatpush.bf16.msra.mxu0 0
      %406 = vmatpush.bf16.msra.mxu0 0
      %407 = vmatpush.bf16.msra.mxu0 %v382
      %408 = vmatpush.bf16.msra.mxu0 %v354
      %409 = vmatpush.bf16.msra.mxu0 %v350
      %410 = vmatpush.bf16.msra.mxu0 %v346
      %411 = vmatpush.bf16.msra.mxu0 %v342
      %412 = vmatmul.bf16.gmra.mxu0 %v375
      %v413 = vpop.f32.mrf.mxu0
      %v414 = vadd.f32 %v366, %v413
      %v415 = vpop.f32.mrf.mxu0
      %v416 = vadd.f32 %v371, %v415
      %417 = vdwg.mxu0
      %418 = vmatpush.bf16.msra.mxu0 0
      %419 = vmatpush.bf16.msra.mxu0 0
      %420 = vmatpush.bf16.msra.mxu0 0
      %421 = vmatpush.bf16.msra.mxu0 %v385
      %422 = vmatpush.bf16.msra.mxu0 %v355
      %423 = vmatpush.bf16.msra.mxu0 %v351
      %424 = vmatpush.bf16.msra.mxu0 %v347
      %425 = vmatpush.bf16.msra.mxu0 %v343
      %426 = vmatmul.bf16.gmra.mxu0 %v375
      %v427 = vpop.f32.mrf.mxu0
      %v428 = vadd.f32 %v366, %v427
      %v429 = vpop.f32.mrf.mxu0
      %v430 = vadd.f32 %v371, %v429
      %431 = vdwg.mxu0
      %432 = vmatpush.bf16.msra.mxu0 0
      %433 = vmatpush.bf16.msra.mxu0 0
      %434 = vmatpush.bf16.msra.mxu0 0
      %435 = vmatpush.bf16.msra.mxu0 %v388
      %436 = vmatpush.bf16.msra.mxu0 %v356
      %437 = vmatpush.bf16.msra.mxu0 %v352
      %438 = vmatpush.bf16.msra.mxu0 %v348
      %439 = vmatpush.bf16.msra.mxu0 %v344
      %440 = vmatmul.bf16.gmra.mxu0 %v375
      %v441 = vpop.f32.mrf.mxu0
      %v442 = vadd.f32 %v366, %v441
      %v443 = vpop.f32.mrf.mxu0
      %v444 = vadd.f32 %v371, %v443
      %445 = vdwg.mxu0
      %446 = vst [vmem:[%s289] sm:$0xff] %v400
      %447 = vst [vmem:[%s289 + $0x8] sm:$0xff] %v414
      %448 = vst [vmem:[%s289 + $0x10] sm:$0xff] %v428
      %449 = vst [vmem:[%s289 + $0x18] sm:$0xff] %v442
      %450 = vst [vmem:[%s289 + $0x20] sm:$0xff] %v402
      %451 = vst [vmem:[%s289 + $0x28] sm:$0xff] %v416
      %452 = vst [vmem:[%s289 + $0x30] sm:$0xff] %v430
      %453 = vst [vmem:[%s289 + $0x38] sm:$0xff] %v444
      %v454 = vmax.f32 %v400, 0.0
      %v455 = vmax.f32 %v414, 0.0
      %v456 = vmax.f32 %v428, 0.0
      %v457 = vmax.f32 %v442, 0.0
      %v458 = vmax.f32 %v402, 0.0
      %v459 = vmax.f32 %v416, 0.0
      %v460 = vmax.f32 %v430, 0.0
      %v461 = vmax.f32 %v444, 0.0
      %462 = vst [vmem:[%s299] sm:$0xff] %v454
      %463 = vst [vmem:[%s299 + $0x8] sm:$0xff] %v455
      %464 = vst [vmem:[%s299 + $0x10] sm:$0xff] %v456
      %465 = vst [vmem:[%s299 + $0x18] sm:$0xff] %v457
      %466 = vst [vmem:[%s299 + $0x20] sm:$0xff] %v458
      %467 = vst [vmem:[%s299 + $0x28] sm:$0xff] %v459
      %468 = vst [vmem:[%s299 + $0x30] sm:$0xff] %v460
      %469 = vst [vmem:[%s299 + $0x38] sm:$0xff] %v461
      %s470 = smul.u32 4, %s21
      %p471 = scmp.lt.s32.totalorder %s20, 1
      %s472 = scalar_select %p471, %s20, 1
      %p473 = scmp.lt.s32.totalorder %s470, 3
      %s474 = scalar_select %p473, %s470, 3
      %s475 = smul.addr %s472, 8
      %s476 = sadd.s32 %s474, %s475
      %s477 = smul.addr %s476, 8
      %s478 = scalar_lea.vmem %s3, %s477
      %s479 = smul.u32 4, %s21
      %p480 = scmp.lt.s32.totalorder %s20, 1
      %s481 = scalar_select %p480, %s20, 1
      %p482 = scmp.lt.s32.totalorder %s479, 3
      %s483 = scalar_select %p482, %s479, 3
      %s484 = smul.addr %s481, 8
      %s485 = sadd.s32 %s483, %s484
      %s486 = smul.addr %s485, 8
      %s487 = scalar_lea.vmem %s4, %s486
      // Predicated region
      $region33: #{dual_model_forward.4} parent=31 // pred_check
        %p488 = pneg %p128
      $region34: #{dual_model_forward.4} parent=31 // pred_check_branch
        %490 = sbr.rel (%p488) target = $region36
      $region35: #{dual_model_forward.4} parent=31 // pred_region
        %s491 = smul.u32 4, %s21
      $region36: #{dual_model_forward.4} parent=31 // pred_fallthru
        _
      // Predicated region
      $region37: #{dual_model_forward.4} parent=31 // pred_check
        %p492 = pneg %p156
      $region38: #{dual_model_forward.4} parent=31 // pred_check_branch
        %494 = sbr.rel (%p492) target = $region40
      $region39: #{dual_model_forward.4} parent=31 // pred_region
        %s495 = smul.u32 4, %s21
      $region40: #{dual_model_forward.4} parent=31 // pred_fallthru
        _
    $region32: #{dual_model_forward.4} parent=5 // pred_fallthru
      _
    %p496 = scmp.le.s32.totalorder 2, %s11
    // Predicated region
    $region41: #{dual_model_forward.4} parent=5 // pred_check
      %p497 = pneg %p496
    $region42: #{dual_model_forward.4} parent=5 // pred_check_branch
      %499 = sbr.rel (%p497) target = $region44
    $region43: #{dual_model_forward.4} parent=5 // pred_region
      %s500 = ssub.s32 %s11, 2
      // Predicated region
      $region45: #{dual_model_forward.4} parent=43 // pred_check
        %p501 = pneg %p134
      $region46: #{dual_model_forward.4} parent=43 // pred_check_branch
        %503 = sbr.rel (%p501) target = $region48
      $region47: #{dual_model_forward.4} parent=43 // pred_region
        %s504 = smul.u32 4, %s23
        %p505 = scmp.lt.s32.totalorder %s22, 1
        %s506 = scalar_select %p505, %s22, 1
        %p507 = scmp.lt.s32.totalorder %s504, 3
        %s508 = scalar_select %p507, %s504, 3
        %s509 = smul.addr %s506, 8
        %s510 = sadd.s32 %s508, %s509
        %s511 = smul.addr %s510, 8
        %s512 = scalar_lea.vmem %s3, %s511
      $region48: #{dual_model_forward.4} parent=43 // pred_fallthru
        _
      // Predicated region
      $region49: #{dual_model_forward.4} parent=43 // pred_check
        %p513 = pneg %p162
      $region50: #{dual_model_forward.4} parent=43 // pred_check_branch
        %515 = sbr.rel (%p513) target = $region52
      $region51: #{dual_model_forward.4} parent=43 // pred_region
        %s516 = smul.u32 4, %s23
        %p517 = scmp.lt.s32.totalorder %s22, 1
        %s518 = scalar_select %p517, %s22, 1
        %p519 = scmp.lt.s32.totalorder %s516, 3
        %s520 = scalar_select %p519, %s516, 3
        %s521 = smul.addr %s518, 8
        %s522 = sadd.s32 %s520, %s521
        %s523 = smul.addr %s522, 8
        %s524 = scalar_lea.vmem %s4, %s523
      $region52: #{dual_model_forward.4} parent=43 // pred_fallthru
        _
    $region44: #{dual_model_forward.4} parent=5 // pred_fallthru
      _
  $region6: #{dual_model_forward.4} parent=0 // loop_footer
    %s15 = sadd.s32 1, %s11
  $region7: #{dual_model_forward.4} parent=0 // loop_footer_branch
    %10 = sbr.rel target = $region3
  $region8: #{dual_model_forward.4} parent=0 // loop_exit
    _

// kernel: dual_model_forward.5
$region0: #{dual_model_forward.5}
  #allocation0 [shape = 'u32[]', space=smem, size = 0x4, offset = 0x4, fixed_abs, tag = 'smem constant byte address 0x4 - core index']
  #allocation1 [shape = 'u32[72,128]{1,0:T(1,128)}', space=vmem, size = 0x9000, scoped, tag = 'internal scratch']
  %s0 = inlined_call_operand.vmem [shape: f32[8,512], index: 0, kind: input, shape index: {}]
  %s1 = inlined_call_operand.vmem [shape: f32[8,512], index: 1, kind: input, shape index: {}]
  %s2 = inlined_call_operand.vmem [shape: f32[16,512], index: 2, kind: input, shape index: {}]
  %s3 = inlined_call_operand.vmem [shape: f32[16,512], index: 3, kind: input, shape index: {}]
  %s4 = inlined_call_operand.vmem [shape: f32[512,32], index: 4, kind: input, shape index: {}]
  %s5 = inlined_call_operand.vmem [shape: f32[512,32], index: 5, kind: input, shape index: {}]
  %s6 = inlined_call_operand.vmem [shape: f32[32,2], index: 6, kind: input, shape index: {}, may-alias: {6,7}]
  %s7 = inlined_call_operand.vmem [shape: f32[32,2], index: 7, kind: input, shape index: {}, may-alias: {6,7}]
  %s8 = inlined_call_operand.vmem [shape: f32[2,10], index: 8, kind: input, shape index: {}]
  %s9 = inlined_call_operand.vmem [shape: f32[2,10], index: 9, kind: input, shape index: {}]
  %s10 = inlined_call_operand.hbm [shape: f32[1,1], index: 10, kind: output, shape index: {}]
  %s11 = sld [smem:[#allocation0]]
  $region50: #{dual_model_forward.5} parent=0
    _
  %s13 = ssub.s32 1, %s11
  %s14 = scalar_select 0, %s13, %s11
  $region1: #{dual_model_forward.5} parent=0
    #allocation2 [shape = 'u8[512]{0}', space=vmem, size = 0x400, scoped, tag = 'output window, operand 0, single buffered']
    #allocation3 [shape = 's32[1]{0}', space=sflag, size = 0x4, scoped, tag = 'scoped memory for dual_model_forward.5']
    %15 = vsyncpa [#allocation3], 0
    // Predicated region
    $region2: #{dual_model_forward.5} parent=1 // pred_check
      _
    $region3: #{dual_model_forward.5} parent=1 // pred_check_branch
      %17 = sbr.rel (0) target = $region5
    $region4: #{dual_model_forward.5} parent=1 // pred_region
      _
    $region5: #{dual_model_forward.5} parent=1 // pred_fallthru
      _
    // Predicated region
    $region6: #{dual_model_forward.5} parent=1 // pred_check
      _
    $region7: #{dual_model_forward.5} parent=1 // pred_check_branch
      %19 = sbr.rel (0) target = $region9
    $region8: #{dual_model_forward.5} parent=1 // pred_region
      _
    $region9: #{dual_model_forward.5} parent=1 // pred_fallthru
      _
    // Predicated region
    $region10: #{dual_model_forward.5} parent=1 // pred_check
      _
    $region11: #{dual_model_forward.5} parent=1 // pred_check_branch
      %21 = sbr.rel (0) target = $region13
    $region12: #{dual_model_forward.5} parent=1 // pred_region
      _
    $region13: #{dual_model_forward.5} parent=1 // pred_fallthru
      _
    // Predicated region
    $region14: #{dual_model_forward.5} parent=1 // pred_check
      _
    $region15: #{dual_model_forward.5} parent=1 // pred_check_branch
      %23 = sbr.rel (0) target = $region17
    $region16: #{dual_model_forward.5} parent=1 // pred_region
      _
    $region17: #{dual_model_forward.5} parent=1 // pred_fallthru
      _
    // Predicated region
    $region18: #{dual_model_forward.5} parent=1 // pred_check
      _
    $region19: #{dual_model_forward.5} parent=1 // pred_check_branch
      %25 = sbr.rel (0) target = $region21
    $region20: #{dual_model_forward.5} parent=1 // pred_region
      _
    $region21: #{dual_model_forward.5} parent=1 // pred_fallthru
      _
    // Predicated region
    $region22: #{dual_model_forward.5} parent=1 // pred_check
      _
    $region23: #{dual_model_forward.5} parent=1 // pred_check_branch
      %27 = sbr.rel (0) target = $region25
    $region24: #{dual_model_forward.5} parent=1 // pred_region
      _
    $region25: #{dual_model_forward.5} parent=1 // pred_fallthru
      _
    // Predicated region
    $region26: #{dual_model_forward.5} parent=1 // pred_check
      _
    $region27: #{dual_model_forward.5} parent=1 // pred_check_branch
      %29 = sbr.rel (0) target = $region29
    $region28: #{dual_model_forward.5} parent=1 // pred_region
      _
    $region29: #{dual_model_forward.5} parent=1 // pred_fallthru
      _
    // Predicated region
    $region30: #{dual_model_forward.5} parent=1 // pred_check
      _
    $region31: #{dual_model_forward.5} parent=1 // pred_check_branch
      %31 = sbr.rel (0) target = $region33
    $region32: #{dual_model_forward.5} parent=1 // pred_region
      _
    $region33: #{dual_model_forward.5} parent=1 // pred_fallthru
      _
    // Predicated region
    $region34: #{dual_model_forward.5} parent=1 // pred_check
      _
    $region35: #{dual_model_forward.5} parent=1 // pred_check_branch
      %33 = sbr.rel (0) target = $region37
    $region36: #{dual_model_forward.5} parent=1 // pred_region
      _
    $region37: #{dual_model_forward.5} parent=1 // pred_fallthru
      _
    // Predicated region
    $region38: #{dual_model_forward.5} parent=1 // pred_check
      _
    $region39: #{dual_model_forward.5} parent=1 // pred_check_branch
      %35 = sbr.rel (0) target = $region41
    $region40: #{dual_model_forward.5} parent=1 // pred_region
      _
    $region41: #{dual_model_forward.5} parent=1 // pred_fallthru
      _
    %v36 = vld [vmem:[%s4] sm:$0xff]
    %v37 = vld [vmem:[%s4 + $0x8] sm:$0xff]
    %v38 = vld [vmem:[%s4 + $0x10] sm:$0xff]
    %v39 = vld [vmem:[%s4 + $0x18] sm:$0xff]
    %v40 = vld [vmem:[%s4 + $0x20] sm:$0xff]
    %v41 = vld [vmem:[%s4 + $0x28] sm:$0xff]
    %v42 = vld [vmem:[%s4 + $0x30] sm:$0xff]
    %v43 = vld [vmem:[%s4 + $0x38] sm:$0xff]
    %v44 = vld [vmem:[%s4 + $0x40] sm:$0xff]
    %v45 = vld [vmem:[%s4 + $0x48] sm:$0xff]
    %v46 = vld [vmem:[%s4 + $0x50] sm:$0xff]
    %v47 = vld [vmem:[%s4 + $0x58] sm:$0xff]
    %v48 = vld [vmem:[%s4 + $0x60] sm:$0xff]
    %v49 = vld [vmem:[%s4 + $0x68] sm:$0xff]
    %v50 = vld [vmem:[%s4 + $0x70] sm:$0xff]
    %v51 = vld [vmem:[%s4 + $0x78] sm:$0xff]
    %v52 = vld [vmem:[%s4 + $0x80] sm:$0xff]
    %v53 = vld [vmem:[%s4 + $0x88] sm:$0xff]
    %v54 = vld [vmem:[%s4 + $0x90] sm:$0xff]
    %v55 = vld [vmem:[%s4 + $0x98] sm:$0xff]
    %v56 = vld [vmem:[%s4 + $0xa0] sm:$0xff]
    %v57 = vld [vmem:[%s4 + $0xa8] sm:$0xff]
    %v58 = vld [vmem:[%s4 + $0xb0] sm:$0xff]
    %v59 = vld [vmem:[%s4 + $0xb8] sm:$0xff]
    %v60 = vld [vmem:[%s4 + $0xc0] sm:$0xff]
    %v61 = vld [vmem:[%s4 + $0xc8] sm:$0xff]
    %v62 = vld [vmem:[%s4 + $0xd0] sm:$0xff]
    %v63 = vld [vmem:[%s4 + $0xd8] sm:$0xff]
    %v64 = vld [vmem:[%s4 + $0xe0] sm:$0xff]
    %v65 = vld [vmem:[%s4 + $0xe8] sm:$0xff]
    %v66 = vld [vmem:[%s4 + $0xf0] sm:$0xff]
    %v67 = vld [vmem:[%s4 + $0xf8] sm:$0xff]
    %v68 = vld [vmem:[%s4 + $0x100] sm:$0xff]
    %v69 = vld [vmem:[%s4 + $0x108] sm:$0xff]
    %v70 = vld [vmem:[%s4 + $0x110] sm:$0xff]
    %v71 = vld [vmem:[%s4 + $0x118] sm:$0xff]
    %v72 = vld [vmem:[%s4 + $0x120] sm:$0xff]
    %v73 = vld [vmem:[%s4 + $0x128] sm:$0xff]
    %v74 = vld [vmem:[%s4 + $0x130] sm:$0xff]
    %v75 = vld [vmem:[%s4 + $0x138] sm:$0xff]
    %v76 = vld [vmem:[%s4 + $0x140] sm:$0xff]
    %v77 = vld [vmem:[%s4 + $0x148] sm:$0xff]
    %v78 = vld [vmem:[%s4 + $0x150] sm:$0xff]
    %v79 = vld [vmem:[%s4 + $0x158] sm:$0xff]
    %v80 = vld [vmem:[%s4 + $0x160] sm:$0xff]
    %v81 = vld [vmem:[%s4 + $0x168] sm:$0xff]
    %v82 = vld [vmem:[%s4 + $0x170] sm:$0xff]
    %v83 = vld [vmem:[%s4 + $0x178] sm:$0xff]
    %v84 = vld [vmem:[%s4 + $0x180] sm:$0xff]
    %v85 = vld [vmem:[%s4 + $0x188] sm:$0xff]
    %v86 = vld [vmem:[%s4 + $0x190] sm:$0xff]
    %v87 = vld [vmem:[%s4 + $0x198] sm:$0xff]
    %v88 = vld [vmem:[%s4 + $0x1a0] sm:$0xff]
    %v89 = vld [vmem:[%s4 + $0x1a8] sm:$0xff]
    %v90 = vld [vmem:[%s4 + $0x1b0] sm:$0xff]
    %v91 = vld [vmem:[%s4 + $0x1b8] sm:$0xff]
    %v92 = vld [vmem:[%s4 + $0x1c0] sm:$0xff]
    %v93 = vld [vmem:[%s4 + $0x1c8] sm:$0xff]
    %v94 = vld [vmem:[%s4 + $0x1d0] sm:$0xff]
    %v95 = vld [vmem:[%s4 + $0x1d8] sm:$0xff]
    %v96 = vld [vmem:[%s4 + $0x1e0] sm:$0xff]
    %v97 = vld [vmem:[%s4 + $0x1e8] sm:$0xff]
    %v98 = vld [vmem:[%s4 + $0x1f0] sm:$0xff]
    %v99 = vld [vmem:[%s4 + $0x1f8] sm:$0xff]
    %v100 = vld [vmem:[%s5] sm:$0xff]
    %v101 = vld [vmem:[%s5 + $0x8] sm:$0xff]
    %v102 = vld [vmem:[%s5 + $0x10] sm:$0xff]
    %v103 = vld [vmem:[%s5 + $0x18] sm:$0xff]
    %v104 = vld [vmem:[%s5 + $0x20] sm:$0xff]
    %v105 = vld [vmem:[%s5 + $0x28] sm:$0xff]
    %v106 = vld [vmem:[%s5 + $0x30] sm:$0xff]
    %v107 = vld [vmem:[%s5 + $0x38] sm:$0xff]
    %v108 = vld [vmem:[%s5 + $0x40] sm:$0xff]
    %v109 = vld [vmem:[%s5 + $0x48] sm:$0xff]
    %v110 = vld [vmem:[%s5 + $0x50] sm:$0xff]
    %v111 = vld [vmem:[%s5 + $0x58] sm:$0xff]
    %v112 = vld [vmem:[%s5 + $0x60] sm:$0xff]
    %v113 = vld [vmem:[%s5 + $0x68] sm:$0xff]
    %v114 = vld [vmem:[%s5 + $0x70] sm:$0xff]
    %v115 = vld [vmem:[%s5 + $0x78] sm:$0xff]
    %v116 = vld [vmem:[%s5 + $0x80] sm:$0xff]
    %v117 = vld [vmem:[%s5 + $0x88] sm:$0xff]
    %v118 = vld [vmem:[%s5 + $0x90] sm:$0xff]
    %v119 = vld [vmem:[%s5 + $0x98] sm:$0xff]
    %v120 = vld [vmem:[%s5 + $0xa0] sm:$0xff]
    %v121 = vld [vmem:[%s5 + $0xa8] sm:$0xff]
    %v122 = vld [vmem:[%s5 + $0xb0] sm:$0xff]
    %v123 = vld [vmem:[%s5 + $0xb8] sm:$0xff]
    %v124 = vld [vmem:[%s5 + $0xc0] sm:$0xff]
    %v125 = vld [vmem:[%s5 + $0xc8] sm:$0xff]
    %v126 = vld [vmem:[%s5 + $0xd0] sm:$0xff]
    %v127 = vld [vmem:[%s5 + $0xd8] sm:$0xff]
    %v128 = vld [vmem:[%s5 + $0xe0] sm:$0xff]
    %v129 = vld [vmem:[%s5 + $0xe8] sm:$0xff]
    %v130 = vld [vmem:[%s5 + $0xf0] sm:$0xff]
    %v131 = vld [vmem:[%s5 + $0xf8] sm:$0xff]
    %v132 = vld [vmem:[%s5 + $0x100] sm:$0xff]
    %v133 = vld [vmem:[%s5 + $0x108] sm:$0xff]
    %v134 = vld [vmem:[%s5 + $0x110] sm:$0xff]
    %v135 = vld [vmem:[%s5 + $0x118] sm:$0xff]
    %v136 = vld [vmem:[%s5 + $0x120] sm:$0xff]
    %v137 = vld [vmem:[%s5 + $0x128] sm:$0xff]
    %v138 = vld [vmem:[%s5 + $0x130] sm:$0xff]
    %v139 = vld [vmem:[%s5 + $0x138] sm:$0xff]
    %v140 = vld [vmem:[%s5 + $0x140] sm:$0xff]
    %v141 = vld [vmem:[%s5 + $0x148] sm:$0xff]
    %v142 = vld [vmem:[%s5 + $0x150] sm:$0xff]
    %v143 = vld [vmem:[%s5 + $0x158] sm:$0xff]
    %v144 = vld [vmem:[%s5 + $0x160] sm:$0xff]
    %v145 = vld [vmem:[%s5 + $0x168] sm:$0xff]
    %v146 = vld [vmem:[%s5 + $0x170] sm:$0xff]
    %v147 = vld [vmem:[%s5 + $0x178] sm:$0xff]
    %v148 = vld [vmem:[%s5 + $0x180] sm:$0xff]
    %v149 = vld [vmem:[%s5 + $0x188] sm:$0xff]
    %v150 = vld [vmem:[%s5 + $0x190] sm:$0xff]
    %v151 = vld [vmem:[%s5 + $0x198] sm:$0xff]
    %v152 = vld [vmem:[%s5 + $0x1a0] sm:$0xff]
    %v153 = vld [vmem:[%s5 + $0x1a8] sm:$0xff]
    %v154 = vld [vmem:[%s5 + $0x1b0] sm:$0xff]
    %v155 = vld [vmem:[%s5 + $0x1b8] sm:$0xff]
    %v156 = vld [vmem:[%s5 + $0x1c0] sm:$0xff]
    %v157 = vld [vmem:[%s5 + $0x1c8] sm:$0xff]
    %v158 = vld [vmem:[%s5 + $0x1d0] sm:$0xff]
    %v159 = vld [vmem:[%s5 + $0x1d8] sm:$0xff]
    %v160 = vld [vmem:[%s5 + $0x1e0] sm:$0xff]
    %v161 = vld [vmem:[%s5 + $0x1e8] sm:$0xff]
    %v162 = vld [vmem:[%s5 + $0x1f0] sm:$0xff]
    %v163 = vld [vmem:[%s5 + $0x1f8] sm:$0xff]
    %v164 = vld [vmem:[%s6] sm:$0xff]
    %v165 = vld [vmem:[%s6 + $0x8] sm:$0xff]
    %v166 = vld [vmem:[%s6 + $0x10] sm:$0xff]
    %v167 = vld [vmem:[%s6 + $0x18] sm:$0xff]
    %v168 = vld [vmem:[%s7] sm:$0xff]
    %v169 = vld [vmem:[%s7 + $0x8] sm:$0xff]
    %v170 = vld [vmem:[%s7 + $0x10] sm:$0xff]
    %v171 = vld [vmem:[%s7 + $0x18] sm:$0xff]
    %v172 = vld [vmem:[%s0] sm:$0xff]
    %v173 = vld [vmem:[%s0 + $0x8] sm:$0xff]
    %v174 = vld [vmem:[%s0 + $0x10] sm:$0xff]
    %v175 = vld [vmem:[%s0 + $0x18] sm:$0xff]
    %v176 = vld [vmem:[%s1] sm:$0xff]
    %v177 = vld [vmem:[%s1 + $0x8] sm:$0xff]
    %v178 = vld [vmem:[%s1 + $0x10] sm:$0xff]
    %v179 = vld [vmem:[%s1 + $0x18] sm:$0xff]
    %v180 = vmul.f32 %v172, %v172
    %v181 = vmul.f32 %v173, %v173
    %v182 = vmul.f32 %v174, %v174
    %v183 = vmul.f32 %v175, %v175
    %v184 = vmul.f32 %v176, %v176
    %v185 = vmul.f32 %v177, %v177
    %v186 = vmul.f32 %v178, %v178
    %v187 = vmul.f32 %v179, %v179
    %188 = vmatpush.msra.mxu0 %v51
    %189 = vmatpush.msra.mxu0 %v50
    %190 = vmatpush.msra.mxu0 %v49
    %191 = vmatpush.msra.mxu0 %v48
    %192 = vmatpush.msra.mxu0 %v47
    %193 = vmatpush.msra.mxu0 %v46
    %194 = vmatpush.msra.mxu0 %v45
    %195 = vmatpush.msra.mxu0 %v44
    %196 = vmatpush.msra.mxu0 %v43
    %197 = vmatpush.msra.mxu0 %v42
    %198 = vmatpush.msra.mxu0 %v41
    %199 = vmatpush.msra.mxu0 %v40
    %200 = vmatpush.msra.mxu0 %v39
    %201 = vmatpush.msra.mxu0 %v38
    %202 = vmatpush.msra.mxu0 %v37
    %203 = vmatpush.msra.mxu0 %v36
    %204 = vmatmul.f32.gmra.mxu0 %v180
    %v205 = vpop.f32.mrf.mxu0
    %v206 = vadd.f32 0.0, %v205
    %207 = vdwg.mxu0
    %208 = vmatpush.msra.mxu0 %v67
    %209 = vmatpush.msra.mxu0 %v66
    %210 = vmatpush.msra.mxu0 %v65
    %211 = vmatpush.msra.mxu0 %v64
    %212 = vmatpush.msra.mxu0 %v63
    %213 = vmatpush.msra.mxu0 %v62
    %214 = vmatpush.msra.mxu0 %v61
    %215 = vmatpush.msra.mxu0 %v60
    %216 = vmatpush.msra.mxu0 %v59
    %217 = vmatpush.msra.mxu0 %v58
    %218 = vmatpush.msra.mxu0 %v57
    %219 = vmatpush.msra.mxu0 %v56
    %220 = vmatpush.msra.mxu0 %v55
    %221 = vmatpush.msra.mxu0 %v54
    %222 = vmatpush.msra.mxu0 %v53
    %223 = vmatpush.msra.mxu0 %v52
    %224 = vmatmul.f32.gmra.mxu0 %v181
    %v225 = vpop.f32.mrf.mxu0
    %v226 = vadd.f32 %v206, %v225
    %227 = vdwg.mxu0
    %228 = vmatpush.msra.mxu0 %v83
    %229 = vmatpush.msra.mxu0 %v82
    %230 = vmatpush.msra.mxu0 %v81
    %231 = vmatpush.msra.mxu0 %v80
    %232 = vmatpush.msra.mxu0 %v79
    %233 = vmatpush.msra.mxu0 %v78
    %234 = vmatpush.msra.mxu0 %v77
    %235 = vmatpush.msra.mxu0 %v76
    %236 = vmatpush.msra.mxu0 %v75
    %237 = vmatpush.msra.mxu0 %v74
    %238 = vmatpush.msra.mxu0 %v73
    %239 = vmatpush.msra.mxu0 %v72
    %240 = vmatpush.msra.mxu0 %v71
    %241 = vmatpush.msra.mxu0 %v70
    %242 = vmatpush.msra.mxu0 %v69
    %243 = vmatpush.msra.mxu0 %v68
    %244 = vmatmul.f32.gmra.mxu0 %v182
    %v245 = vpop.f32.mrf.mxu0
    %v246 = vadd.f32 %v226, %v245
    %247 = vdwg.mxu0
    %248 = vmatpush.msra.mxu0 %v99
    %249 = vmatpush.msra.mxu0 %v98
    %250 = vmatpush.msra.mxu0 %v97
    %251 = vmatpush.msra.mxu0 %v96
    %252 = vmatpush.msra.mxu0 %v95
    %253 = vmatpush.msra.mxu0 %v94
    %254 = vmatpush.msra.mxu0 %v93
    %255 = vmatpush.msra.mxu0 %v92
    %256 = vmatpush.msra.mxu0 %v91
    %257 = vmatpush.msra.mxu0 %v90
    %258 = vmatpush.msra.mxu0 %v89
    %259 = vmatpush.msra.mxu0 %v88
    %260 = vmatpush.msra.mxu0 %v87
    %261 = vmatpush.msra.mxu0 %v86
    %262 = vmatpush.msra.mxu0 %v85
    %263 = vmatpush.msra.mxu0 %v84
    %264 = vmatmul.f32.gmra.mxu0 %v183
    %v265 = vpop.f32.mrf.mxu0
    %v266 = vadd.f32 %v246, %v265
    %267 = vdwg.mxu0
    %268 = vmatpush.msra.mxu0 %v115
    %269 = vmatpush.msra.mxu0 %v114
    %270 = vmatpush.msra.mxu0 %v113
    %271 = vmatpush.msra.mxu0 %v112
    %272 = vmatpush.msra.mxu0 %v111
    %273 = vmatpush.msra.mxu0 %v110
    %274 = vmatpush.msra.mxu0 %v109
    %275 = vmatpush.msra.mxu0 %v108
    %276 = vmatpush.msra.mxu0 %v107
    %277 = vmatpush.msra.mxu0 %v106
    %278 = vmatpush.msra.mxu0 %v105
    %279 = vmatpush.msra.mxu0 %v104
    %280 = vmatpush.msra.mxu0 %v103
    %281 = vmatpush.msra.mxu0 %v102
    %282 = vmatpush.msra.mxu0 %v101
    %283 = vmatpush.msra.mxu0 %v100
    %284 = vmatmul.f32.gmra.mxu0 %v180
    %v285 = vpop.f32.mrf.mxu0
    %v286 = vadd.f32 0.0, %v285
    %287 = vdwg.mxu0
    %288 = vmatpush.msra.mxu0 %v131
    %289 = vmatpush.msra.mxu0 %v130
    %290 = vmatpush.msra.mxu0 %v129
    %291 = vmatpush.msra.mxu0 %v128
    %292 = vmatpush.msra.mxu0 %v127
    %293 = vmatpush.msra.mxu0 %v126
    %294 = vmatpush.msra.mxu0 %v125
    %295 = vmatpush.msra.mxu0 %v124
    %296 = vmatpush.msra.mxu0 %v123
    %297 = vmatpush.msra.mxu0 %v122
    %298 = vmatpush.msra.mxu0 %v121
    %299 = vmatpush.msra.mxu0 %v120
    %300 = vmatpush.msra.mxu0 %v119
    %301 = vmatpush.msra.mxu0 %v118
    %302 = vmatpush.msra.mxu0 %v117
    %303 = vmatpush.msra.mxu0 %v116
    %304 = vmatmul.f32.gmra.mxu0 %v181
    %v305 = vpop.f32.mrf.mxu0
    %v306 = vadd.f32 %v286, %v305
    %307 = vdwg.mxu0
    %308 = vmatpush.msra.mxu0 %v147
    %309 = vmatpush.msra.mxu0 %v146
    %310 = vmatpush.msra.mxu0 %v145
    %311 = vmatpush.msra.mxu0 %v144
    %312 = vmatpush.msra.mxu0 %v143
    %313 = vmatpush.msra.mxu0 %v142
    %314 = vmatpush.msra.mxu0 %v141
    %315 = vmatpush.msra.mxu0 %v140
    %316 = vmatpush.msra.mxu0 %v139
    %317 = vmatpush.msra.mxu0 %v138
    %318 = vmatpush.msra.mxu0 %v137
    %319 = vmatpush.msra.mxu0 %v136
    %320 = vmatpush.msra.mxu0 %v135
    %321 = vmatpush.msra.mxu0 %v134
    %322 = vmatpush.msra.mxu0 %v133
    %323 = vmatpush.msra.mxu0 %v132
    %324 = vmatmul.f32.gmra.mxu0 %v182
    %v325 = vpop.f32.mrf.mxu0
    %v326 = vadd.f32 %v306, %v325
    %327 = vdwg.mxu0
    %328 = vmatpush.msra.mxu0 %v163
    %329 = vmatpush.msra.mxu0 %v162
    %330 = vmatpush.msra.mxu0 %v161
    %331 = vmatpush.msra.mxu0 %v160
    %332 = vmatpush.msra.mxu0 %v159
    %333 = vmatpush.msra.mxu0 %v158
    %334 = vmatpush.msra.mxu0 %v157
    %335 = vmatpush.msra.mxu0 %v156
    %336 = vmatpush.msra.mxu0 %v155
    %337 = vmatpush.msra.mxu0 %v154
    %338 = vmatpush.msra.mxu0 %v153
    %339 = vmatpush.msra.mxu0 %v152
    %340 = vmatpush.msra.mxu0 %v151
    %341 = vmatpush.msra.mxu0 %v150
    %342 = vmatpush.msra.mxu0 %v149
    %343 = vmatpush.msra.mxu0 %v148
    %344 = vmatmul.f32.gmra.mxu0 %v183
    %v345 = vpop.f32.mrf.mxu0
    %v346 = vadd.f32 %v326, %v345
    %347 = vdwg.mxu0
    %348 = vmatpush.msra.mxu0 %v51
    %349 = vmatpush.msra.mxu0 %v50
    %350 = vmatpush.msra.mxu0 %v49
    %351 = vmatpush.msra.mxu0 %v48
    %352 = vmatpush.msra.mxu0 %v47
    %353 = vmatpush.msra.mxu0 %v46
    %354 = vmatpush.msra.mxu0 %v45
    %355 = vmatpush.msra.mxu0 %v44
    %356 = vmatpush.msra.mxu0 %v43
    %357 = vmatpush.msra.mxu0 %v42
    %358 = vmatpush.msra.mxu0 %v41
    %359 = vmatpush.msra.mxu0 %v40
    %360 = vmatpush.msra.mxu0 %v39
    %361 = vmatpush.msra.mxu0 %v38
    %362 = vmatpush.msra.mxu0 %v37
    %363 = vmatpush.msra.mxu0 %v36
    %364 = vmatmul.f32.gmra.mxu0 %v184
    %v365 = vpop.f32.mrf.mxu0
    %v366 = vadd.f32 0.0, %v365
    %367 = vdwg.mxu0
    %368 = vmatpush.msra.mxu0 %v67
    %369 = vmatpush.msra.mxu0 %v66
    %370 = vmatpush.msra.mxu0 %v65
    %371 = vmatpush.msra.mxu0 %v64
    %372 = vmatpush.msra.mxu0 %v63
    %373 = vmatpush.msra.mxu0 %v62
    %374 = vmatpush.msra.mxu0 %v61
    %375 = vmatpush.msra.mxu0 %v60
    %376 = vmatpush.msra.mxu0 %v59
    %377 = vmatpush.msra.mxu0 %v58
    %378 = vmatpush.msra.mxu0 %v57
    %379 = vmatpush.msra.mxu0 %v56
    %380 = vmatpush.msra.mxu0 %v55
    %381 = vmatpush.msra.mxu0 %v54
    %382 = vmatpush.msra.mxu0 %v53
    %383 = vmatpush.msra.mxu0 %v52
    %384 = vmatmul.f32.gmra.mxu0 %v185
    %v385 = vpop.f32.mrf.mxu0
    %v386 = vadd.f32 %v366, %v385
    %387 = vdwg.mxu0
    %388 = vmatpush.msra.mxu0 %v83
    %389 = vmatpush.msra.mxu0 %v82
    %390 = vmatpush.msra.mxu0 %v81
    %391 = vmatpush.msra.mxu0 %v80
    %392 = vmatpush.msra.mxu0 %v79
    %393 = vmatpush.msra.mxu0 %v78
    %394 = vmatpush.msra.mxu0 %v77
    %395 = vmatpush.msra.mxu0 %v76
    %396 = vmatpush.msra.mxu0 %v75
    %397 = vmatpush.msra.mxu0 %v74
    %398 = vmatpush.msra.mxu0 %v73
    %399 = vmatpush.msra.mxu0 %v72
    %400 = vmatpush.msra.mxu0 %v71
    %401 = vmatpush.msra.mxu0 %v70
    %402 = vmatpush.msra.mxu0 %v69
    %403 = vmatpush.msra.mxu0 %v68
    %404 = vmatmul.f32.gmra.mxu0 %v186
    %v405 = vpop.f32.mrf.mxu0
    %v406 = vadd.f32 %v386, %v405
    %407 = vdwg.mxu0
    %408 = vmatpush.msra.mxu0 %v99
    %409 = vmatpush.msra.mxu0 %v98
    %410 = vmatpush.msra.mxu0 %v97
    %411 = vmatpush.msra.mxu0 %v96
    %412 = vmatpush.msra.mxu0 %v95
    %413 = vmatpush.msra.mxu0 %v94
    %414 = vmatpush.msra.mxu0 %v93
    %415 = vmatpush.msra.mxu0 %v92
    %416 = vmatpush.msra.mxu0 %v91
    %417 = vmatpush.msra.mxu0 %v90
    %418 = vmatpush.msra.mxu0 %v89
    %419 = vmatpush.msra.mxu0 %v88
    %420 = vmatpush.msra.mxu0 %v87
    %421 = vmatpush.msra.mxu0 %v86
    %422 = vmatpush.msra.mxu0 %v85
    %423 = vmatpush.msra.mxu0 %v84
    %424 = vmatmul.f32.gmra.mxu0 %v187
    %v425 = vpop.f32.mrf.mxu0
    %v426 = vadd.f32 %v406, %v425
    %427 = vdwg.mxu0
    %428 = vmatpush.msra.mxu0 %v115
    %429 = vmatpush.msra.mxu0 %v114
    %430 = vmatpush.msra.mxu0 %v113
    %431 = vmatpush.msra.mxu0 %v112
    %432 = vmatpush.msra.mxu0 %v111
    %433 = vmatpush.msra.mxu0 %v110
    %434 = vmatpush.msra.mxu0 %v109
    %435 = vmatpush.msra.mxu0 %v108
    %436 = vmatpush.msra.mxu0 %v107
    %437 = vmatpush.msra.mxu0 %v106
    %438 = vmatpush.msra.mxu0 %v105
    %439 = vmatpush.msra.mxu0 %v104
    %440 = vmatpush.msra.mxu0 %v103
    %441 = vmatpush.msra.mxu0 %v102
    %442 = vmatpush.msra.mxu0 %v101
    %443 = vmatpush.msra.mxu0 %v100
    %444 = vmatmul.f32.gmra.mxu0 %v184
    %v445 = vpop.f32.mrf.mxu0
    %v446 = vadd.f32 0.0, %v445
    %447 = vdwg.mxu0
    %448 = vmatpush.msra.mxu0 %v131
    %449 = vmatpush.msra.mxu0 %v130
    %450 = vmatpush.msra.mxu0 %v129
    %451 = vmatpush.msra.mxu0 %v128
    %452 = vmatpush.msra.mxu0 %v127
    %453 = vmatpush.msra.mxu0 %v126
    %454 = vmatpush.msra.mxu0 %v125
    %455 = vmatpush.msra.mxu0 %v124
    %456 = vmatpush.msra.mxu0 %v123
    %457 = vmatpush.msra.mxu0 %v122
    %458 = vmatpush.msra.mxu0 %v121
    %459 = vmatpush.msra.mxu0 %v120
    %460 = vmatpush.msra.mxu0 %v119
    %461 = vmatpush.msra.mxu0 %v118
    %462 = vmatpush.msra.mxu0 %v117
    %463 = vmatpush.msra.mxu0 %v116
    %464 = vmatmul.f32.gmra.mxu0 %v185
    %v465 = vpop.f32.mrf.mxu0
    %v466 = vadd.f32 %v446, %v465
    %467 = vdwg.mxu0
    %468 = vmatpush.msra.mxu0 %v147
    %469 = vmatpush.msra.mxu0 %v146
    %470 = vmatpush.msra.mxu0 %v145
    %471 = vmatpush.msra.mxu0 %v144
    %472 = vmatpush.msra.mxu0 %v143
    %473 = vmatpush.msra.mxu0 %v142
    %474 = vmatpush.msra.mxu0 %v141
    %475 = vmatpush.msra.mxu0 %v140
    %476 = vmatpush.msra.mxu0 %v139
    %477 = vmatpush.msra.mxu0 %v138
    %478 = vmatpush.msra.mxu0 %v137
    %479 = vmatpush.msra.mxu0 %v136
    %480 = vmatpush.msra.mxu0 %v135
    %481 = vmatpush.msra.mxu0 %v134
    %482 = vmatpush.msra.mxu0 %v133
    %483 = vmatpush.msra.mxu0 %v132
    %484 = vmatmul.f32.gmra.mxu0 %v186
    %v485 = vpop.f32.mrf.mxu0
    %v486 = vadd.f32 %v466, %v485
    %487 = vdwg.mxu0
    %488 = vmatpush.msra.mxu0 %v163
    %489 = vmatpush.msra.mxu0 %v162
    %490 = vmatpush.msra.mxu0 %v161
    %491 = vmatpush.msra.mxu0 %v160
    %492 = vmatpush.msra.mxu0 %v159
    %493 = vmatpush.msra.mxu0 %v158
    %494 = vmatpush.msra.mxu0 %v157
    %495 = vmatpush.msra.mxu0 %v156
    %496 = vmatpush.msra.mxu0 %v155
    %497 = vmatpush.msra.mxu0 %v154
    %498 = vmatpush.msra.mxu0 %v153
    %499 = vmatpush.msra.mxu0 %v152
    %500 = vmatpush.msra.mxu0 %v151
    %501 = vmatpush.msra.mxu0 %v150
    %502 = vmatpush.msra.mxu0 %v149
    %503 = vmatpush.msra.mxu0 %v148
    %504 = vmatmul.f32.gmra.mxu0 %v187
    %v505 = vpop.f32.mrf.mxu0
    %v506 = vadd.f32 %v486, %v505
    %507 = vdwg.mxu0
    %v508 = vmul.f32 %v266, %v266
    %v509 = vmul.f32 %v346, %v346
    %vm510 = vcmask 261120
    %v511 = vsel %vm510, %v508, 0.0
    %v512 = vrot.slane %v511, 4
    %v513 = vadd.f32 %v511, %v512
    %v514 = vrot.slane %v513, 2
    %v515 = vadd.f32 %v513, %v514
    %v516 = vrot.slane %v515, 1
    %v517 = vadd.f32 %v515, %v516
    %v518 = vsel %vm510, %v509, 0.0
    %v519 = vrot.slane %v518, 4
    %v520 = vadd.f32 %v518, %v519
    %v521 = vrot.slane %v520, 2
    %v522 = vadd.f32 %v520, %v521
    %v523 = vrot.slane %v522, 1
    %v524 = vadd.f32 %v522, %v523
    %v526 = vsel %vm510, %v524, 0
    %528 = vmatpush.msra.mxu0 0.0
    %529 = vmatpush.msra.mxu0 0.0
    %530 = vmatpush.msra.mxu0 0.0
    %531 = vmatpush.msra.mxu0 0.0
    %532 = vmatpush.msra.mxu0 0.0
    %533 = vmatpush.msra.mxu0 0.0
    %534 = vmatpush.msra.mxu0 0.0
    %535 = vmatpush.msra.mxu0 0.0
    %536 = vmatpush.msra.mxu0 0.0
    %537 = vmatpush.msra.mxu0 0.0
    %538 = vmatpush.msra.mxu0 0.0
    %539 = vmatpush.msra.mxu0 0.0
    %540 = vmatpush.msra.mxu0 %v171
    %541 = vmatpush.msra.mxu0 %v170
    %542 = vmatpush.msra.mxu0 %v169
    %543 = vmatpush.msra.mxu0 %v168
    %544 = vmatmul.f32.gmra.mxu0 %v526
    %v545 = vpop.f32.mrf.mxu0
    %v546 = vadd.f32 0.0, %v545
    %547 = vdwg.mxu0
    %v549 = vsel %vm510, %v517, 0
    %551 = vmatpush.msra.mxu0 0.0
    %552 = vmatpush.msra.mxu0 0.0
    %553 = vmatpush.msra.mxu0 0.0
    %554 = vmatpush.msra.mxu0 0.0
    %555 = vmatpush.msra.mxu0 0.0
    %556 = vmatpush.msra.mxu0 0.0
    %557 = vmatpush.msra.mxu0 0.0
    %558 = vmatpush.msra.mxu0 0.0
    %559 = vmatpush.msra.mxu0 0.0
    %560 = vmatpush.msra.mxu0 0.0
    %561 = vmatpush.msra.mxu0 0.0
    %562 = vmatpush.msra.mxu0 0.0
    %563 = vmatpush.msra.mxu0 %v167
    %564 = vmatpush.msra.mxu0 %v166
    %565 = vmatpush.msra.mxu0 %v165
    %566 = vmatpush.msra.mxu0 %v164
    %567 = vmatmul.f32.gmra.mxu0 %v549
    %v568 = vpop.f32.mrf.mxu0
    %v569 = vadd.f32 %v546, %v568
    %570 = vdwg.mxu0
    %v571 = vmul.f32 %v426, %v426
    %v572 = vmul.f32 %v506, %v506
    %v573 = vsel %vm510, %v571, 0.0
    %v574 = vrot.slane %v573, 4
    %v575 = vadd.f32 %v573, %v574
    %v576 = vrot.slane %v575, 2
    %v577 = vadd.f32 %v575, %v576
    %v578 = vrot.slane %v577, 1
    %v579 = vadd.f32 %v577, %v578
    %v580 = vsel %vm510, %v572, 0.0
    %v581 = vrot.slane %v580, 4
    %v582 = vadd.f32 %v580, %v581
    %v583 = vrot.slane %v582, 2
    %v584 = vadd.f32 %v582, %v583
    %v585 = vrot.slane %v584, 1
    %v586 = vadd.f32 %v584, %v585
    %v588 = vsel %vm510, %v586, 0
    %590 = vmatpush.msra.mxu0 0.0
    %591 = vmatpush.msra.mxu0 0.0
    %592 = vmatpush.msra.mxu0 0.0
    %593 = vmatpush.msra.mxu0 0.0
    %594 = vmatpush.msra.mxu0 0.0
    %595 = vmatpush.msra.mxu0 0.0
    %596 = vmatpush.msra.mxu0 0.0
    %597 = vmatpush.msra.mxu0 0.0
    %598 = vmatpush.msra.mxu0 0.0
    %599 = vmatpush.msra.mxu0 0.0
    %600 = vmatpush.msra.mxu0 0.0
    %601 = vmatpush.msra.mxu0 0.0
    %602 = vmatpush.msra.mxu0 %v171
    %603 = vmatpush.msra.mxu0 %v170
    %604 = vmatpush.msra.mxu0 %v169
    %605 = vmatpush.msra.mxu0 %v168
    %606 = vmatmul.f32.gmra.mxu0 %v588
    %v607 = vpop.f32.mrf.mxu0
    %v608 = vadd.f32 0.0, %v607
    %609 = vdwg.mxu0
    %v611 = vsel %vm510, %v579, 0
    %613 = vmatpush.msra.mxu0 0.0
    %614 = vmatpush.msra.mxu0 0.0
    %615 = vmatpush.msra.mxu0 0.0
    %616 = vmatpush.msra.mxu0 0.0
    %617 = vmatpush.msra.mxu0 0.0
    %618 = vmatpush.msra.mxu0 0.0
    %619 = vmatpush.msra.mxu0 0.0
    %620 = vmatpush.msra.mxu0 0.0
    %621 = vmatpush.msra.mxu0 0.0
    %622 = vmatpush.msra.mxu0 0.0
    %623 = vmatpush.msra.mxu0 0.0
    %624 = vmatpush.msra.mxu0 0.0
    %625 = vmatpush.msra.mxu0 %v167
    %626 = vmatpush.msra.mxu0 %v166
    %627 = vmatpush.msra.mxu0 %v165
    %628 = vmatpush.msra.mxu0 %v164
    %629 = vmatmul.f32.gmra.mxu0 %v611
    %v630 = vpop.f32.mrf.mxu0
    %v631 = vadd.f32 %v608, %v630
    %632 = vdwg.mxu0
    %v633 = vmul.f32 %v266, %v426
    %v634 = vmul.f32 %v346, %v506
    %v635 = vsel %vm510, %v633, 0.0
    %v636 = vrot.slane %v635, 4
    %v637 = vadd.f32 %v635, %v636
    %v638 = vrot.slane %v637, 2
    %v639 = vadd.f32 %v637, %v638
    %v640 = vrot.slane %v639, 1
    %v641 = vadd.f32 %v639, %v640
    %v642 = vsel %vm510, %v634, 0.0
    %v643 = vrot.slane %v642, 4
    %v644 = vadd.f32 %v642, %v643
    %v645 = vrot.slane %v644, 2
    %v646 = vadd.f32 %v644, %v645
    %v647 = vrot.slane %v646, 1
    %v648 = vadd.f32 %v646, %v647
    %v650 = vsel %vm510, %v648, 0
    %652 = vmatpush.msra.mxu0 0.0
    %653 = vmatpush.msra.mxu0 0.0
    %654 = vmatpush.msra.mxu0 0.0
    %655 = vmatpush.msra.mxu0 0.0
    %656 = vmatpush.msra.mxu0 0.0
    %657 = vmatpush.msra.mxu0 0.0
    %658 = vmatpush.msra.mxu0 0.0
    %659 = vmatpush.msra.mxu0 0.0
    %660 = vmatpush.msra.mxu0 0.0
    %661 = vmatpush.msra.mxu0 0.0
    %662 = vmatpush.msra.mxu0 0.0
    %663 = vmatpush.msra.mxu0 0.0
    %664 = vmatpush.msra.mxu0 %v171
    %665 = vmatpush.msra.mxu0 %v170
    %666 = vmatpush.msra.mxu0 %v169
    %667 = vmatpush.msra.mxu0 %v168
    %668 = vmatmul.f32.gmra.mxu0 %v650
    %v669 = vpop.f32.mrf.mxu0
    %v670 = vadd.f32 0.0, %v669
    %671 = vdwg.mxu0
    %v673 = vsel %vm510, %v641, 0
    %675 = vmatpush.msra.mxu0 0.0
    %676 = vmatpush.msra.mxu0 0.0
    %677 = vmatpush.msra.mxu0 0.0
    %678 = vmatpush.msra.mxu0 0.0
    %679 = vmatpush.msra.mxu0 0.0
    %680 = vmatpush.msra.mxu0 0.0
    %681 = vmatpush.msra.mxu0 0.0
    %682 = vmatpush.msra.mxu0 0.0
    %683 = vmatpush.msra.mxu0 0.0
    %684 = vmatpush.msra.mxu0 0.0
    %685 = vmatpush.msra.mxu0 0.0
    %686 = vmatpush.msra.mxu0 0.0
    %687 = vmatpush.msra.mxu0 %v167
    %688 = vmatpush.msra.mxu0 %v166
    %689 = vmatpush.msra.mxu0 %v165
    %690 = vmatpush.msra.mxu0 %v164
    %691 = vmatmul.f32.gmra.mxu0 %v673
    %v692 = vpop.f32.mrf.mxu0
    %v693 = vadd.f32 %v670, %v692
    %694 = vdwg.mxu0
    %v695 = vrsqrt.pop %v569
    %v696 = vmul.f32 %v695, %v569
    %v697 = vmul.f32 %v696, %v695
    %v698 = vmul.f32 0.5, %v697
    %v699 = vsub.f32 1.5, %v698
    %v700 = vmul.f32 %v695, %v699
    %v701 = vmul.f32 %v569, %v700
    %vm702 = vcmp.eq.f32.partialorder %v569, inf
    %v703 = vsel %vm702, %v569, %v701
    %vm704 = vcmp.eq.f32.partialorder %v569, 0.0
    %v705 = vand.u32 %v569, 2147483648
    %v706 = vsel %vm704, %v705, %v703
    %v707 = vmax.f32 %v706, 1e-12
    %v708 = vrsqrt.pop %v631
    %v709 = vmul.f32 %v708, %v631
    %v710 = vmul.f32 %v709, %v708
    %v711 = vmul.f32 0.5, %v710
    %v712 = vsub.f32 1.5, %v711
    %v713 = vmul.f32 %v708, %v712
    %v714 = vmul.f32 %v631, %v713
    %vm715 = vcmp.eq.f32.partialorder %v631, inf
    %v716 = vsel %vm715, %v631, %v714
    %vm717 = vcmp.eq.f32.partialorder %v631, 0.0
    %v718 = vand.u32 %v631, 2147483648
    %v719 = vsel %vm717, %v718, %v716
    %v720 = vmax.f32 %v719, 1e-12
    %v721 = vmul.f32 %v707, %v707
    %v722 = vrcp.pop %v721
    %v723 = vmul.f32 %v721, %v722
    %v724 = vsub.f32 1.0, %v723
    %v725 = vmul.f32 %v722, %v724
    %v726 = vadd.f32 %v722, %v725
    %vm727 = vweird.f32 %v721
    %vm728 = vweird.f32 %v722
    %vm729 = vmor %vm727, %vm728
    %v730 = vsel %vm729, %v722, %v726
    %v731 = vand.u32 2147483647, %v721
    %vm732 = vcmp.eq.f32.partialorder %v731, 8.507059e+37
    %v733 = vand.u32 %v721, 2147483648
    %v734 = vor.u32 1.1754944e-38, %v733
    %v735 = vsel %vm732, %v734, %v730
    %v736 = vmul.f32 %v569, %v735
    %v737 = vmul.f32 %v720, %v720
    %v738 = vrcp.pop %v737
    %v739 = vmul.f32 %v737, %v738
    %v740 = vsub.f32 1.0, %v739
    %v741 = vmul.f32 %v738, %v740
    %v742 = vadd.f32 %v738, %v741
    %vm743 = vweird.f32 %v737
    %vm744 = vweird.f32 %v738
    %vm745 = vmor %vm743, %vm744
    %v746 = vsel %vm745, %v738, %v742
    %v747 = vand.u32 2147483647, %v737
    %vm748 = vcmp.eq.f32.partialorder %v747, 8.507059e+37
    %v749 = vand.u32 %v737, 2147483648
    %v750 = vor.u32 1.1754944e-38, %v749
    %v751 = vsel %vm748, %v750, %v746
    %v752 = vmul.f32 %v631, %v751
    %v753 = vadd.f32 %v736, %v752
    %v754 = vmul.f32 %v693, 2.0
    %v755 = vmul.f32 %v707, %v720
    %v756 = vrcp.pop %v755
    %v757 = vmul.f32 %v755, %v756
    %v758 = vsub.f32 1.0, %v757
    %v759 = vmul.f32 %v756, %v758
    %v760 = vadd.f32 %v756, %v759
    %vm761 = vweird.f32 %v755
    %vm762 = vweird.f32 %v756
    %vm763 = vmor %vm761, %vm762
    %v764 = vsel %vm763, %v756, %v760
    %v765 = vand.u32 2147483647, %v755
    %vm766 = vcmp.eq.f32.partialorder %v765, 8.507059e+37
    %v767 = vand.u32 %v755, 2147483648
    %v768 = vor.u32 1.1754944e-38, %v767
    %v769 = vsel %vm766, %v768, %v764
    %v770 = vmul.f32 %v754, %v769
    %v771 = vsub.f32 %v753, %v770
    %v772 = vmax.f32 %v771, 0.0
    %v773 = vrsqrt.pop %v772
    %v774 = vmul.f32 %v773, %v772
    %v775 = vmul.f32 %v774, %v773
    %v776 = vmul.f32 0.5, %v775
    %v777 = vsub.f32 1.5, %v776
    %v778 = vmul.f32 %v773, %v777
    %v779 = vmul.f32 %v772, %v778
    %vm780 = vcmp.eq.f32.partialorder %v772, inf
    %v781 = vsel %vm780, %v772, %v779
    %vm782 = vcmp.eq.f32.partialorder %v772, 0.0
    %v783 = vand.u32 %v772, 2147483648
    %v784 = vsel %vm782, %v783, %v781
    %vm785 = vcmask 8192
    %v786 = vsel %vm785, %v784, 0.0
    %787 = vadd.xlane.f32.xlu0 %v786
    %v788 = vpop.xlane.xlu0 %787
    %v789 = vrot.slane %v788, 4
    %v790 = vadd.f32 %v788, %v789
    %v791 = vrot.slane %v790, 2
    %v792 = vadd.f32 %v790, %v791
    %v793 = vrot.slane %v792, 1
    %v794 = vadd.f32 %v792, %v793
    %s795 = vtos %v794
    %v796 = vrcp.pop 2.0
    %v797 = vmul.f32 2.0, %v796
    %v798 = vsub.f32 1.0, %v797
    %v799 = vmul.f32 %v796, %v798
    %v800 = vadd.f32 %v796, %v799
    %vm801 = vweird.f32 %v796
    %v802 = vsel %vm801, %v796, %v800
    %s803 = vtos %v802
    %s804 = smul.f32 %s795, %s803
    %v805 = vld [vmem:[%s2] sm:$0xff]
    %v806 = vld [vmem:[%s2 + $0x8] sm:$0xff]
    %v807 = vld [vmem:[%s2 + $0x10] sm:$0xff]
    %v808 = vld [vmem:[%s2 + $0x18] sm:$0xff]
    %v809 = vld [vmem:[%s2 + $0x20] sm:$0xff]
    %v810 = vld [vmem:[%s2 + $0x28] sm:$0xff]
    %v811 = vld [vmem:[%s2 + $0x30] sm:$0xff]
    %v812 = vld [vmem:[%s2 + $0x38] sm:$0xff]
    %v813 = vld [vmem:[%s3] sm:$0xff]
    %v814 = vld [vmem:[%s3 + $0x8] sm:$0xff]
    %v815 = vld [vmem:[%s3 + $0x10] sm:$0xff]
    %v816 = vld [vmem:[%s3 + $0x18] sm:$0xff]
    %v817 = vld [vmem:[%s3 + $0x20] sm:$0xff]
    %v818 = vld [vmem:[%s3 + $0x28] sm:$0xff]
    %v819 = vld [vmem:[%s3 + $0x30] sm:$0xff]
    %v820 = vld [vmem:[%s3 + $0x38] sm:$0xff]
    %v821 = vmul.f32 %v805, %v805
    %v822 = vmul.f32 %v806, %v806
    %v823 = vmul.f32 %v807, %v807
    %v824 = vmul.f32 %v808, %v808
    %v825 = vmul.f32 %v809, %v809
    %v826 = vmul.f32 %v810, %v810
    %v827 = vmul.f32 %v811, %v811
    %v828 = vmul.f32 %v812, %v812
    %v829 = vmul.f32 %v813, %v813
    %v830 = vmul.f32 %v814, %v814
    %v831 = vmul.f32 %v815, %v815
    %v832 = vmul.f32 %v816, %v816
    %v833 = vmul.f32 %v817, %v817
    %v834 = vmul.f32 %v818, %v818
    %v835 = vmul.f32 %v819, %v819
    %v836 = vmul.f32 %v820, %v820
    %837 = vmatpush.msra.mxu0 %v51
    %838 = vmatpush.msra.mxu0 %v50
    %839 = vmatpush.msra.mxu0 %v49
    %840 = vmatpush.msra.mxu0 %v48
    %841 = vmatpush.msra.mxu0 %v47
    %842 = vmatpush.msra.mxu0 %v46
    %843 = vmatpush.msra.mxu0 %v45
    %844 = vmatpush.msra.mxu0 %v44
    %845 = vmatpush.msra.mxu0 %v43
    %846 = vmatpush.msra.mxu0 %v42
    %847 = vmatpush.msra.mxu0 %v41
    %848 = vmatpush.msra.mxu0 %v40
    %849 = vmatpush.msra.mxu0 %v39
    %850 = vmatpush.msra.mxu0 %v38
    %851 = vmatpush.msra.mxu0 %v37
    %852 = vmatpush.msra.mxu0 %v36
    %853 = vmatmul.f32.gmra.mxu0 %v821
    %v854 = vpop.f32.mrf.mxu0
    %v855 = vadd.f32 0.0, %v854
    %856 = vmatmul.f32.gmra.mxu0 %v825
    %v857 = vpop.f32.mrf.mxu0
    %v858 = vadd.f32 0.0, %v857
    %859 = vdwg.mxu0
    %860 = vmatpush.msra.mxu0 %v67
    %861 = vmatpush.msra.mxu0 %v66
    %862 = vmatpush.msra.mxu0 %v65
    %863 = vmatpush.msra.mxu0 %v64
    %864 = vmatpush.msra.mxu0 %v63
    %865 = vmatpush.msra.mxu0 %v62
    %866 = vmatpush.msra.mxu0 %v61
    %867 = vmatpush.msra.mxu0 %v60
    %868 = vmatpush.msra.mxu0 %v59
    %869 = vmatpush.msra.mxu0 %v58
    %870 = vmatpush.msra.mxu0 %v57
    %871 = vmatpush.msra.mxu0 %v56
    %872 = vmatpush.msra.mxu0 %v55
    %873 = vmatpush.msra.mxu0 %v54
    %874 = vmatpush.msra.mxu0 %v53
    %875 = vmatpush.msra.mxu0 %v52
    %876 = vmatmul.f32.gmra.mxu0 %v822
    %v877 = vpop.f32.mrf.mxu0
    %v878 = vadd.f32 %v855, %v877
    %879 = vmatmul.f32.gmra.mxu0 %v826
    %v880 = vpop.f32.mrf.mxu0
    %v881 = vadd.f32 %v858, %v880
    %882 = vdwg.mxu0
    %883 = vmatpush.msra.mxu0 %v83
    %884 = vmatpush.msra.mxu0 %v82
    %885 = vmatpush.msra.mxu0 %v81
    %886 = vmatpush.msra.mxu0 %v80
    %887 = vmatpush.msra.mxu0 %v79
    %888 = vmatpush.msra.mxu0 %v78
    %889 = vmatpush.msra.mxu0 %v77
    %890 = vmatpush.msra.mxu0 %v76
    %891 = vmatpush.msra.mxu0 %v75
    %892 = vmatpush.msra.mxu0 %v74
    %893 = vmatpush.msra.mxu0 %v73
    %894 = vmatpush.msra.mxu0 %v72
    %895 = vmatpush.msra.mxu0 %v71
    %896 = vmatpush.msra.mxu0 %v70
    %897 = vmatpush.msra.mxu0 %v69
    %898 = vmatpush.msra.mxu0 %v68
    %899 = vmatmul.f32.gmra.mxu0 %v823
    %v900 = vpop.f32.mrf.mxu0
    %v901 = vadd.f32 %v878, %v900
    %902 = vmatmul.f32.gmra.mxu0 %v827
    %v903 = vpop.f32.mrf.mxu0
    %v904 = vadd.f32 %v881, %v903
    %905 = vdwg.mxu0
    %906 = vmatpush.msra.mxu0 %v99
    %907 = vmatpush.msra.mxu0 %v98
    %908 = vmatpush.msra.mxu0 %v97
    %909 = vmatpush.msra.mxu0 %v96
    %910 = vmatpush.msra.mxu0 %v95
    %911 = vmatpush.msra.mxu0 %v94
    %912 = vmatpush.msra.mxu0 %v93
    %913 = vmatpush.msra.mxu0 %v92
    %914 = vmatpush.msra.mxu0 %v91
    %915 = vmatpush.msra.mxu0 %v90
    %916 = vmatpush.msra.mxu0 %v89
    %917 = vmatpush.msra.mxu0 %v88
    %918 = vmatpush.msra.mxu0 %v87
    %919 = vmatpush.msra.mxu0 %v86
    %920 = vmatpush.msra.mxu0 %v85
    %921 = vmatpush.msra.mxu0 %v84
    %922 = vmatmul.f32.gmra.mxu0 %v824
    %v923 = vpop.f32.mrf.mxu0
    %v924 = vadd.f32 %v901, %v923
    %925 = vmatmul.f32.gmra.mxu0 %v828
    %v926 = vpop.f32.mrf.mxu0
    %v927 = vadd.f32 %v904, %v926
    %928 = vdwg.mxu0
    %929 = vmatpush.msra.mxu0 %v115
    %930 = vmatpush.msra.mxu0 %v114
    %931 = vmatpush.msra.mxu0 %v113
    %932 = vmatpush.msra.mxu0 %v112
    %933 = vmatpush.msra.mxu0 %v111
    %934 = vmatpush.msra.mxu0 %v110
    %935 = vmatpush.msra.mxu0 %v109
    %936 = vmatpush.msra.mxu0 %v108
    %937 = vmatpush.msra.mxu0 %v107
    %938 = vmatpush.msra.mxu0 %v106
    %939 = vmatpush.msra.mxu0 %v105
    %940 = vmatpush.msra.mxu0 %v104
    %941 = vmatpush.msra.mxu0 %v103
    %942 = vmatpush.msra.mxu0 %v102
    %943 = vmatpush.msra.mxu0 %v101
    %944 = vmatpush.msra.mxu0 %v100
    %945 = vmatmul.f32.gmra.mxu0 %v821
    %v946 = vpop.f32.mrf.mxu0
    %v947 = vadd.f32 0.0, %v946
    %948 = vmatmul.f32.gmra.mxu0 %v825
    %v949 = vpop.f32.mrf.mxu0
    %v950 = vadd.f32 0.0, %v949
    %951 = vdwg.mxu0
    %952 = vmatpush.msra.mxu0 %v131
    %953 = vmatpush.msra.mxu0 %v130
    %954 = vmatpush.msra.mxu0 %v129
    %955 = vmatpush.msra.mxu0 %v128
    %956 = vmatpush.msra.mxu0 %v127
    %957 = vmatpush.msra.mxu0 %v126
    %958 = vmatpush.msra.mxu0 %v125
    %959 = vmatpush.msra.mxu0 %v124
    %960 = vmatpush.msra.mxu0 %v123
    %961 = vmatpush.msra.mxu0 %v122
    %962 = vmatpush.msra.mxu0 %v121
    %963 = vmatpush.msra.mxu0 %v120
    %964 = vmatpush.msra.mxu0 %v119
    %965 = vmatpush.msra.mxu0 %v118
    %966 = vmatpush.msra.mxu0 %v117
    %967 = vmatpush.msra.mxu0 %v116
    %968 = vmatmul.f32.gmra.mxu0 %v822
    %v969 = vpop.f32.mrf.mxu0
    %v970 = vadd.f32 %v947, %v969
    %971 = vmatmul.f32.gmra.mxu0 %v826
    %v972 = vpop.f32.mrf.mxu0
    %v973 = vadd.f32 %v950, %v972
    %974 = vdwg.mxu0
    %975 = vmatpush.msra.mxu0 %v147
    %976 = vmatpush.msra.mxu0 %v146
    %977 = vmatpush.msra.mxu0 %v145
    %978 = vmatpush.msra.mxu0 %v144
    %979 = vmatpush.msra.mxu0 %v143
    %980 = vmatpush.msra.mxu0 %v142
    %981 = vmatpush.msra.mxu0 %v141
    %982 = vmatpush.msra.mxu0 %v140
    %983 = vmatpush.msra.mxu0 %v139
    %984 = vmatpush.msra.mxu0 %v138
    %985 = vmatpush.msra.mxu0 %v137
    %986 = vmatpush.msra.mxu0 %v136
    %987 = vmatpush.msra.mxu0 %v135
    %988 = vmatpush.msra.mxu0 %v134
    %989 = vmatpush.msra.mxu0 %v133
    %990 = vmatpush.msra.mxu0 %v132
    %991 = vmatmul.f32.gmra.mxu0 %v823
    %v992 = vpop.f32.mrf.mxu0
    %v993 = vadd.f32 %v970, %v992
    %994 = vmatmul.f32.gmra.mxu0 %v827
    %v995 = vpop.f32.mrf.mxu0
    %v996 = vadd.f32 %v973, %v995
    %997 = vdwg.mxu0
    %998 = vmatpush.msra.mxu0 %v163
    %999 = vmatpush.msra.mxu0 %v162
    %1000 = vmatpush.msra.mxu0 %v161
    %1001 = vmatpush.msra.mxu0 %v160
    %1002 = vmatpush.msra.mxu0 %v159
    %1003 = vmatpush.msra.mxu0 %v158
    %1004 = vmatpush.msra.mxu0 %v157
    %1005 = vmatpush.msra.mxu0 %v156
    %1006 = vmatpush.msra.mxu0 %v155
    %1007 = vmatpush.msra.mxu0 %v154
    %1008 = vmatpush.msra.mxu0 %v153
    %1009 = vmatpush.msra.mxu0 %v152
    %1010 = vmatpush.msra.mxu0 %v151
    %1011 = vmatpush.msra.mxu0 %v150
    %1012 = vmatpush.msra.mxu0 %v149
    %1013 = vmatpush.msra.mxu0 %v148
    %1014 = vmatmul.f32.gmra.mxu0 %v824
    %v1015 = vpop.f32.mrf.mxu0
    %v1016 = vadd.f32 %v993, %v1015
    %1017 = vmatmul.f32.gmra.mxu0 %v828
    %v1018 = vpop.f32.mrf.mxu0
    %v1019 = vadd.f32 %v996, %v1018
    %1020 = vdwg.mxu0
    %1021 = vmatpush.msra.mxu0 %v51
    %1022 = vmatpush.msra.mxu0 %v50
    %1023 = vmatpush.msra.mxu0 %v49
    %1024 = vmatpush.msra.mxu0 %v48
    %1025 = vmatpush.msra.mxu0 %v47
    %1026 = vmatpush.msra.mxu0 %v46
    %1027 = vmatpush.msra.mxu0 %v45
    %1028 = vmatpush.msra.mxu0 %v44
    %1029 = vmatpush.msra.mxu0 %v43
    %1030 = vmatpush.msra.mxu0 %v42
    %1031 = vmatpush.msra.mxu0 %v41
    %1032 = vmatpush.msra.mxu0 %v40
    %1033 = vmatpush.msra.mxu0 %v39
    %1034 = vmatpush.msra.mxu0 %v38
    %1035 = vmatpush.msra.mxu0 %v37
    %1036 = vmatpush.msra.mxu0 %v36
    %1037 = vmatmul.f32.gmra.mxu0 %v829
    %v1038 = vpop.f32.mrf.mxu0
    %v1039 = vadd.f32 0.0, %v1038
    %1040 = vmatmul.f32.gmra.mxu0 %v833
    %v1041 = vpop.f32.mrf.mxu0
    %v1042 = vadd.f32 0.0, %v1041
    %1043 = vdwg.mxu0
    %1044 = vmatpush.msra.mxu0 %v67
    %1045 = vmatpush.msra.mxu0 %v66
    %1046 = vmatpush.msra.mxu0 %v65
    %1047 = vmatpush.msra.mxu0 %v64
    %1048 = vmatpush.msra.mxu0 %v63
    %1049 = vmatpush.msra.mxu0 %v62
    %1050 = vmatpush.msra.mxu0 %v61
    %1051 = vmatpush.msra.mxu0 %v60
    %1052 = vmatpush.msra.mxu0 %v59
    %1053 = vmatpush.msra.mxu0 %v58
    %1054 = vmatpush.msra.mxu0 %v57
    %1055 = vmatpush.msra.mxu0 %v56
    %1056 = vmatpush.msra.mxu0 %v55
    %1057 = vmatpush.msra.mxu0 %v54
    %1058 = vmatpush.msra.mxu0 %v53
    %1059 = vmatpush.msra.mxu0 %v52
    %1060 = vmatmul.f32.gmra.mxu0 %v830
    %v1061 = vpop.f32.mrf.mxu0
    %v1062 = vadd.f32 %v1039, %v1061
    %1063 = vmatmul.f32.gmra.mxu0 %v834
    %v1064 = vpop.f32.mrf.mxu0
    %v1065 = vadd.f32 %v1042, %v1064
    %1066 = vdwg.mxu0
    %1067 = vmatpush.msra.mxu0 %v83
    %1068 = vmatpush.msra.mxu0 %v82
    %1069 = vmatpush.msra.mxu0 %v81
    %1070 = vmatpush.msra.mxu0 %v80
    %1071 = vmatpush.msra.mxu0 %v79
    %1072 = vmatpush.msra.mxu0 %v78
    %1073 = vmatpush.msra.mxu0 %v77
    %1074 = vmatpush.msra.mxu0 %v76
    %1075 = vmatpush.msra.mxu0 %v75
    %1076 = vmatpush.msra.mxu0 %v74
    %1077 = vmatpush.msra.mxu0 %v73
    %1078 = vmatpush.msra.mxu0 %v72
    %1079 = vmatpush.msra.mxu0 %v71
    %1080 = vmatpush.msra.mxu0 %v70
    %1081 = vmatpush.msra.mxu0 %v69
    %1082 = vmatpush.msra.mxu0 %v68
    %1083 = vmatmul.f32.gmra.mxu0 %v831
    %v1084 = vpop.f32.mrf.mxu0
    %v1085 = vadd.f32 %v1062, %v1084
    %1086 = vmatmul.f32.gmra.mxu0 %v835
    %v1087 = vpop.f32.mrf.mxu0
    %v1088 = vadd.f32 %v1065, %v1087
    %1089 = vdwg.mxu0
    %1090 = vmatpush.msra.mxu0 %v99
    %1091 = vmatpush.msra.mxu0 %v98
    %1092 = vmatpush.msra.mxu0 %v97
    %1093 = vmatpush.msra.mxu0 %v96
    %1094 = vmatpush.msra.mxu0 %v95
    %1095 = vmatpush.msra.mxu0 %v94
    %1096 = vmatpush.msra.mxu0 %v93
    %1097 = vmatpush.msra.mxu0 %v92
    %1098 = vmatpush.msra.mxu0 %v91
    %1099 = vmatpush.msra.mxu0 %v90
    %1100 = vmatpush.msra.mxu0 %v89
    %1101 = vmatpush.msra.mxu0 %v88
    %1102 = vmatpush.msra.mxu0 %v87
    %1103 = vmatpush.msra.mxu0 %v86
    %1104 = vmatpush.msra.mxu0 %v85
    %1105 = vmatpush.msra.mxu0 %v84
    %1106 = vmatmul.f32.gmra.mxu0 %v832
    %v1107 = vpop.f32.mrf.mxu0
    %v1108 = vadd.f32 %v1085, %v1107
    %1109 = vmatmul.f32.gmra.mxu0 %v836
    %v1110 = vpop.f32.mrf.mxu0
    %v1111 = vadd.f32 %v1088, %v1110
    %1112 = vdwg.mxu0
    %1113 = vmatpush.msra.mxu0 %v115
    %1114 = vmatpush.msra.mxu0 %v114
    %1115 = vmatpush.msra.mxu0 %v113
    %1116 = vmatpush.msra.mxu0 %v112
    %1117 = vmatpush.msra.mxu0 %v111
    %1118 = vmatpush.msra.mxu0 %v110
    %1119 = vmatpush.msra.mxu0 %v109
    %1120 = vmatpush.msra.mxu0 %v108
    %1121 = vmatpush.msra.mxu0 %v107
    %1122 = vmatpush.msra.mxu0 %v106
    %1123 = vmatpush.msra.mxu0 %v105
    %1124 = vmatpush.msra.mxu0 %v104
    %1125 = vmatpush.msra.mxu0 %v103
    %1126 = vmatpush.msra.mxu0 %v102
    %1127 = vmatpush.msra.mxu0 %v101
    %1128 = vmatpush.msra.mxu0 %v100
    %1129 = vmatmul.f32.gmra.mxu0 %v829
    %v1130 = vpop.f32.mrf.mxu0
    %v1131 = vadd.f32 0.0, %v1130
    %1132 = vmatmul.f32.gmra.mxu0 %v833
    %v1133 = vpop.f32.mrf.mxu0
    %v1134 = vadd.f32 0.0, %v1133
    %1135 = vdwg.mxu0
    %1136 = vmatpush.msra.mxu0 %v131
    %1137 = vmatpush.msra.mxu0 %v130
    %1138 = vmatpush.msra.mxu0 %v129
    %1139 = vmatpush.msra.mxu0 %v128
    %1140 = vmatpush.msra.mxu0 %v127
    %1141 = vmatpush.msra.mxu0 %v126
    %1142 = vmatpush.msra.mxu0 %v125
    %1143 = vmatpush.msra.mxu0 %v124
    %1144 = vmatpush.msra.mxu0 %v123
    %1145 = vmatpush.msra.mxu0 %v122
    %1146 = vmatpush.msra.mxu0 %v121
    %1147 = vmatpush.msra.mxu0 %v120
    %1148 = vmatpush.msra.mxu0 %v119
    %1149 = vmatpush.msra.mxu0 %v118
    %1150 = vmatpush.msra.mxu0 %v117
    %1151 = vmatpush.msra.mxu0 %v116
    %1152 = vmatmul.f32.gmra.mxu0 %v830
    %v1153 = vpop.f32.mrf.mxu0
    %v1154 = vadd.f32 %v1131, %v1153
    %1155 = vmatmul.f32.gmra.mxu0 %v834
    %v1156 = vpop.f32.mrf.mxu0
    %v1157 = vadd.f32 %v1134, %v1156
    %1158 = vdwg.mxu0
    %1159 = vmatpush.msra.mxu0 %v147
    %1160 = vmatpush.msra.mxu0 %v146
    %1161 = vmatpush.msra.mxu0 %v145
    %1162 = vmatpush.msra.mxu0 %v144
    %1163 = vmatpush.msra.mxu0 %v143
    %1164 = vmatpush.msra.mxu0 %v142
    %1165 = vmatpush.msra.mxu0 %v141
    %1166 = vmatpush.msra.mxu0 %v140
    %1167 = vmatpush.msra.mxu0 %v139
    %1168 = vmatpush.msra.mxu0 %v138
    %1169 = vmatpush.msra.mxu0 %v137
    %1170 = vmatpush.msra.mxu0 %v136
    %1171 = vmatpush.msra.mxu0 %v135
    %1172 = vmatpush.msra.mxu0 %v134
    %1173 = vmatpush.msra.mxu0 %v133
    %1174 = vmatpush.msra.mxu0 %v132
    %1175 = vmatmul.f32.gmra.mxu0 %v831
    %v1176 = vpop.f32.mrf.mxu0
    %v1177 = vadd.f32 %v1154, %v1176
    %1178 = vmatmul.f32.gmra.mxu0 %v835
    %v1179 = vpop.f32.mrf.mxu0
    %v1180 = vadd.f32 %v1157, %v1179
    %1181 = vdwg.mxu0
    %1182 = vmatpush.msra.mxu0 %v163
    %1183 = vmatpush.msra.mxu0 %v162
    %1184 = vmatpush.msra.mxu0 %v161
    %1185 = vmatpush.msra.mxu0 %v160
    %1186 = vmatpush.msra.mxu0 %v159
    %1187 = vmatpush.msra.mxu0 %v158
    %1188 = vmatpush.msra.mxu0 %v157
    %1189 = vmatpush.msra.mxu0 %v156
    %1190 = vmatpush.msra.mxu0 %v155
    %1191 = vmatpush.msra.mxu0 %v154
    %1192 = vmatpush.msra.mxu0 %v153
    %1193 = vmatpush.msra.mxu0 %v152
    %1194 = vmatpush.msra.mxu0 %v151
    %1195 = vmatpush.msra.mxu0 %v150
    %1196 = vmatpush.msra.mxu0 %v149
    %1197 = vmatpush.msra.mxu0 %v148
    %1198 = vmatmul.f32.gmra.mxu0 %v832
    %v1199 = vpop.f32.mrf.mxu0
    %v1200 = vadd.f32 %v1177, %v1199
    %1201 = vmatmul.f32.gmra.mxu0 %v836
    %v1202 = vpop.f32.mrf.mxu0
    %v1203 = vadd.f32 %v1180, %v1202
    %1204 = vdwg.mxu0
    %v1205 = vmul.f32 %v924, %v924
    %v1206 = vmul.f32 %v927, %v927
    %v1207 = vmul.f32 %v1016, %v1016
    %v1208 = vmul.f32 %v1019, %v1019
    %v1209 = vsel %vm510, %v1205, 0.0
    %v1210 = vsel %vm510, %v1206, 0.0
    %v1211 = vadd.f32 %v1209, %v1210
    %v1212 = vrot.slane %v1211, 4
    %v1213 = vadd.f32 %v1211, %v1212
    %v1214 = vrot.slane %v1213, 2
    %v1215 = vadd.f32 %v1213, %v1214
    %v1216 = vrot.slane %v1215, 1
    %v1217 = vadd.f32 %v1215, %v1216
    %v1218 = vsel %vm510, %v1207, 0.0
    %v1219 = vsel %vm510, %v1208, 0.0
    %v1220 = vadd.f32 %v1218, %v1219
    %v1221 = vrot.slane %v1220, 4
    %v1222 = vadd.f32 %v1220, %v1221
    %v1223 = vrot.slane %v1222, 2
    %v1224 = vadd.f32 %v1222, %v1223
    %v1225 = vrot.slane %v1224, 1
    %v1226 = vadd.f32 %v1224, %v1225
    %v1228 = vsel %vm510, %v1226, 0
    %1230 = vmatpush.msra.mxu0 0.0
    %1231 = vmatpush.msra.mxu0 0.0
    %1232 = vmatpush.msra.mxu0 0.0
    %1233 = vmatpush.msra.mxu0 0.0
    %1234 = vmatpush.msra.mxu0 0.0
    %1235 = vmatpush.msra.mxu0 0.0
    %1236 = vmatpush.msra.mxu0 0.0
    %1237 = vmatpush.msra.mxu0 0.0
    %1238 = vmatpush.msra.mxu0 0.0
    %1239 = vmatpush.msra.mxu0 0.0
    %1240 = vmatpush.msra.mxu0 0.0
    %1241 = vmatpush.msra.mxu0 0.0
    %1242 = vmatpush.msra.mxu0 %v171
    %1243 = vmatpush.msra.mxu0 %v170
    %1244 = vmatpush.msra.mxu0 %v169
    %1245 = vmatpush.msra.mxu0 %v168
    %1246 = vmatmul.f32.gmra.mxu0 %v1228
    %v1247 = vpop.f32.mrf.mxu0
    %v1248 = vadd.f32 0.0, %v1247
    %1249 = vdwg.mxu0
    %v1251 = vsel %vm510, %v1217, 0
    %1253 = vmatpush.msra.mxu0 0.0
    %1254 = vmatpush.msra.mxu0 0.0
    %1255 = vmatpush.msra.mxu0 0.0
    %1256 = vmatpush.msra.mxu0 0.0
    %1257 = vmatpush.msra.mxu0 0.0
    %1258 = vmatpush.msra.mxu0 0.0
    %1259 = vmatpush.msra.mxu0 0.0
    %1260 = vmatpush.msra.mxu0 0.0
    %1261 = vmatpush.msra.mxu0 0.0
    %1262 = vmatpush.msra.mxu0 0.0
    %1263 = vmatpush.msra.mxu0 0.0
    %1264 = vmatpush.msra.mxu0 0.0
    %1265 = vmatpush.msra.mxu0 %v167
    %1266 = vmatpush.msra.mxu0 %v166
    %1267 = vmatpush.msra.mxu0 %v165
    %1268 = vmatpush.msra.mxu0 %v164
    %1269 = vmatmul.f32.gmra.mxu0 %v1251
    %v1270 = vpop.f32.mrf.mxu0
    %v1271 = vadd.f32 %v1248, %v1270
    %1272 = vdwg.mxu0
    %v1273 = vmul.f32 %v1108, %v1108
    %v1274 = vmul.f32 %v1111, %v1111
    %v1275 = vmul.f32 %v1200, %v1200
    %v1276 = vmul.f32 %v1203, %v1203
    %v1277 = vsel %vm510, %v1273, 0.0
    %v1278 = vsel %vm510, %v1274, 0.0
    %v1279 = vadd.f32 %v1277, %v1278
    %v1280 = vrot.slane %v1279, 4
    %v1281 = vadd.f32 %v1279, %v1280
    %v1282 = vrot.slane %v1281, 2
    %v1283 = vadd.f32 %v1281, %v1282
    %v1284 = vrot.slane %v1283, 1
    %v1285 = vadd.f32 %v1283, %v1284
    %v1286 = vsel %vm510, %v1275, 0.0
    %v1287 = vsel %vm510, %v1276, 0.0
    %v1288 = vadd.f32 %v1286, %v1287
    %v1289 = vrot.slane %v1288, 4
    %v1290 = vadd.f32 %v1288, %v1289
    %v1291 = vrot.slane %v1290, 2
    %v1292 = vadd.f32 %v1290, %v1291
    %v1293 = vrot.slane %v1292, 1
    %v1294 = vadd.f32 %v1292, %v1293
    %v1296 = vsel %vm510, %v1294, 0
    %1298 = vmatpush.msra.mxu0 0.0
    %1299 = vmatpush.msra.mxu0 0.0
    %1300 = vmatpush.msra.mxu0 0.0
    %1301 = vmatpush.msra.mxu0 0.0
    %1302 = vmatpush.msra.mxu0 0.0
    %1303 = vmatpush.msra.mxu0 0.0
    %1304 = vmatpush.msra.mxu0 0.0
    %1305 = vmatpush.msra.mxu0 0.0
    %1306 = vmatpush.msra.mxu0 0.0
    %1307 = vmatpush.msra.mxu0 0.0
    %1308 = vmatpush.msra.mxu0 0.0
    %1309 = vmatpush.msra.mxu0 0.0
    %1310 = vmatpush.msra.mxu0 %v171
    %1311 = vmatpush.msra.mxu0 %v170
    %1312 = vmatpush.msra.mxu0 %v169
    %1313 = vmatpush.msra.mxu0 %v168
    %1314 = vmatmul.f32.gmra.mxu0 %v1296
    %v1315 = vpop.f32.mrf.mxu0
    %v1316 = vadd.f32 0.0, %v1315
    %1317 = vdwg.mxu0
    %v1319 = vsel %vm510, %v1285, 0
    %1321 = vmatpush.msra.mxu0 0.0
    %1322 = vmatpush.msra.mxu0 0.0
    %1323 = vmatpush.msra.mxu0 0.0
    %1324 = vmatpush.msra.mxu0 0.0
    %1325 = vmatpush.msra.mxu0 0.0
    %1326 = vmatpush.msra.mxu0 0.0
    %1327 = vmatpush.msra.mxu0 0.0
    %1328 = vmatpush.msra.mxu0 0.0
    %1329 = vmatpush.msra.mxu0 0.0
    %1330 = vmatpush.msra.mxu0 0.0
    %1331 = vmatpush.msra.mxu0 0.0
    %1332 = vmatpush.msra.mxu0 0.0
    %1333 = vmatpush.msra.mxu0 %v167
    %1334 = vmatpush.msra.mxu0 %v166
    %1335 = vmatpush.msra.mxu0 %v165
    %1336 = vmatpush.msra.mxu0 %v164
    %1337 = vmatmul.f32.gmra.mxu0 %v1319
    %v1338 = vpop.f32.mrf.mxu0
    %v1339 = vadd.f32 %v1316, %v1338
    %1340 = vdwg.mxu0
    %v1341 = vmul.f32 %v924, %v1108
    %v1342 = vmul.f32 %v927, %v1111
    %v1343 = vmul.f32 %v1016, %v1200
    %v1344 = vmul.f32 %v1019, %v1203
    %v1345 = vsel %vm510, %v1341, 0.0
    %v1346 = vsel %vm510, %v1342, 0.0
    %v1347 = vadd.f32 %v1345, %v1346
    %v1348 = vrot.slane %v1347, 4
    %v1349 = vadd.f32 %v1347, %v1348
    %v1350 = vrot.slane %v1349, 2
    %v1351 = vadd.f32 %v1349, %v1350
    %v1352 = vrot.slane %v1351, 1
    %v1353 = vadd.f32 %v1351, %v1352
    %v1354 = vsel %vm510, %v1343, 0.0
    %v1355 = vsel %vm510, %v1344, 0.0
    %v1356 = vadd.f32 %v1354, %v1355
    %v1357 = vrot.slane %v1356, 4
    %v1358 = vadd.f32 %v1356, %v1357
    %v1359 = vrot.slane %v1358, 2
    %v1360 = vadd.f32 %v1358, %v1359
    %v1361 = vrot.slane %v1360, 1
    %v1362 = vadd.f32 %v1360, %v1361
    %v1364 = vsel %vm510, %v1362, 0
    %1366 = vmatpush.msra.mxu0 0.0
    %1367 = vmatpush.msra.mxu0 0.0
    %1368 = vmatpush.msra.mxu0 0.0
    %1369 = vmatpush.msra.mxu0 0.0
    %1370 = vmatpush.msra.mxu0 0.0
    %1371 = vmatpush.msra.mxu0 0.0
    %1372 = vmatpush.msra.mxu0 0.0
    %1373 = vmatpush.msra.mxu0 0.0
    %1374 = vmatpush.msra.mxu0 0.0
    %1375 = vmatpush.msra.mxu0 0.0
    %1376 = vmatpush.msra.mxu0 0.0
    %1377 = vmatpush.msra.mxu0 0.0
    %1378 = vmatpush.msra.mxu0 %v171
    %1379 = vmatpush.msra.mxu0 %v170
    %1380 = vmatpush.msra.mxu0 %v169
    %1381 = vmatpush.msra.mxu0 %v168
    %1382 = vmatmul.f32.gmra.mxu0 %v1364
    %v1383 = vpop.f32.mrf.mxu0
    %v1384 = vadd.f32 0.0, %v1383
    %1385 = vdwg.mxu0
    %v1387 = vsel %vm510, %v1353, 0
    %1389 = vmatpush.msra.mxu0 0.0
    %1390 = vmatpush.msra.mxu0 0.0
    %1391 = vmatpush.msra.mxu0 0.0
    %1392 = vmatpush.msra.mxu0 0.0
    %1393 = vmatpush.msra.mxu0 0.0
    %1394 = vmatpush.msra.mxu0 0.0
    %1395 = vmatpush.msra.mxu0 0.0
    %1396 = vmatpush.msra.mxu0 0.0
    %1397 = vmatpush.msra.mxu0 0.0
    %1398 = vmatpush.msra.mxu0 0.0
    %1399 = vmatpush.msra.mxu0 0.0
    %1400 = vmatpush.msra.mxu0 0.0
    %1401 = vmatpush.msra.mxu0 %v167
    %1402 = vmatpush.msra.mxu0 %v166
    %1403 = vmatpush.msra.mxu0 %v165
    %1404 = vmatpush.msra.mxu0 %v164
    %1405 = vmatmul.f32.gmra.mxu0 %v1387
    %v1406 = vpop.f32.mrf.mxu0
    %v1407 = vadd.f32 %v1384, %v1406
    %1408 = vdwg.mxu0
    %v1409 = vrsqrt.pop %v1271
    %v1410 = vmul.f32 %v1409, %v1271
    %v1411 = vmul.f32 %v1410, %v1409
    %v1412 = vmul.f32 0.5, %v1411
    %v1413 = vsub.f32 1.5, %v1412
    %v1414 = vmul.f32 %v1409, %v1413
    %v1415 = vmul.f32 %v1271, %v1414
    %vm1416 = vcmp.eq.f32.partialorder %v1271, inf
    %v1417 = vsel %vm1416, %v1271, %v1415
    %vm1418 = vcmp.eq.f32.partialorder %v1271, 0.0
    %v1419 = vand.u32 %v1271, 2147483648
    %v1420 = vsel %vm1418, %v1419, %v1417
    %v1421 = vmax.f32 %v1420, 1e-12
    %v1422 = vrsqrt.pop %v1339
    %v1423 = vmul.f32 %v1422, %v1339
    %v1424 = vmul.f32 %v1423, %v1422
    %v1425 = vmul.f32 0.5, %v1424
    %v1426 = vsub.f32 1.5, %v1425
    %v1427 = vmul.f32 %v1422, %v1426
    %v1428 = vmul.f32 %v1339, %v1427
    %vm1429 = vcmp.eq.f32.partialorder %v1339, inf
    %v1430 = vsel %vm1429, %v1339, %v1428
    %vm1431 = vcmp.eq.f32.partialorder %v1339, 0.0
    %v1432 = vand.u32 %v1339, 2147483648
    %v1433 = vsel %vm1431, %v1432, %v1430
    %v1434 = vmax.f32 %v1433, 1e-12
    %v1435 = vmul.f32 %v1421, %v1421
    %v1436 = vrcp.pop %v1435
    %v1437 = vmul.f32 %v1435, %v1436
    %v1438 = vsub.f32 1.0, %v1437
    %v1439 = vmul.f32 %v1436, %v1438
    %v1440 = vadd.f32 %v1436, %v1439
    %vm1441 = vweird.f32 %v1435
    %vm1442 = vweird.f32 %v1436
    %vm1443 = vmor %vm1441, %vm1442
    %v1444 = vsel %vm1443, %v1436, %v1440
    %v1445 = vand.u32 2147483647, %v1435
    %vm1446 = vcmp.eq.f32.partialorder %v1445, 8.507059e+37
    %v1447 = vand.u32 %v1435, 2147483648
    %v1448 = vor.u32 1.1754944e-38, %v1447
    %v1449 = vsel %vm1446, %v1448, %v1444
    %v1450 = vmul.f32 %v1271, %v1449
    %v1451 = vmul.f32 %v1434, %v1434
    %v1452 = vrcp.pop %v1451
    %v1453 = vmul.f32 %v1451, %v1452
    %v1454 = vsub.f32 1.0, %v1453
    %v1455 = vmul.f32 %v1452, %v1454
    %v1456 = vadd.f32 %v1452, %v1455
    %vm1457 = vweird.f32 %v1451
    %vm1458 = vweird.f32 %v1452
    %vm1459 = vmor %vm1457, %vm1458
    %v1460 = vsel %vm1459, %v1452, %v1456
    %v1461 = vand.u32 2147483647, %v1451
    %vm1462 = vcmp.eq.f32.partialorder %v1461, 8.507059e+37
    %v1463 = vand.u32 %v1451, 2147483648
    %v1464 = vor.u32 1.1754944e-38, %v1463
    %v1465 = vsel %vm1462, %v1464, %v1460
    %v1466 = vmul.f32 %v1339, %v1465
    %v1467 = vadd.f32 %v1450, %v1466
    %v1468 = vmul.f32 %v1407, 2.0
    %v1469 = vmul.f32 %v1421, %v1434
    %v1470 = vrcp.pop %v1469
    %v1471 = vmul.f32 %v1469, %v1470
    %v1472 = vsub.f32 1.0, %v1471
    %v1473 = vmul.f32 %v1470, %v1472
    %v1474 = vadd.f32 %v1470, %v1473
    %vm1475 = vweird.f32 %v1469
    %vm1476 = vweird.f32 %v1470
    %vm1477 = vmor %vm1475, %vm1476
    %v1478 = vsel %vm1477, %v1470, %v1474
    %v1479 = vand.u32 2147483647, %v1469
    %vm1480 = vcmp.eq.f32.partialorder %v1479, 8.507059e+37
    %v1481 = vand.u32 %v1469, 2147483648
    %v1482 = vor.u32 1.1754944e-38, %v1481
    %v1483 = vsel %vm1480, %v1482, %v1478
    %v1484 = vmul.f32 %v1468, %v1483
    %v1485 = vsub.f32 %v1467, %v1484
    %v1486 = vmax.f32 %v1485, 0.0
    %v1487 = vrsqrt.pop %v1486
    %v1488 = vmul.f32 %v1487, %v1486
    %v1489 = vmul.f32 %v1488, %v1487
    %v1490 = vmul.f32 0.5, %v1489
    %v1491 = vsub.f32 1.5, %v1490
    %v1492 = vmul.f32 %v1487, %v1491
    %v1493 = vmul.f32 %v1486, %v1492
    %vm1494 = vcmp.eq.f32.partialorder %v1486, inf
    %v1495 = vsel %vm1494, %v1486, %v1493
    %vm1496 = vcmp.eq.f32.partialorder %v1486, 0.0
    %v1497 = vand.u32 %v1486, 2147483648
    %v1498 = vsel %vm1496, %v1497, %v1495
    %v1499 = vsel %vm785, %v1498, 0.0
    %1500 = vadd.xlane.f32.xlu0 %v1499
    %v1501 = vpop.xlane.xlu0 %1500
    %v1502 = vrot.slane %v1501, 4
    %v1503 = vadd.f32 %v1501, %v1502
    %v1504 = vrot.slane %v1503, 2
    %v1505 = vadd.f32 %v1503, %v1504
    %v1506 = vrot.slane %v1505, 1
    %v1507 = vadd.f32 %v1505, %v1506
    %s1508 = vtos %v1507
    %v1509 = vrcp.pop 2.0
    %v1510 = vmul.f32 2.0, %v1509
    %v1511 = vsub.f32 1.0, %v1510
    %v1512 = vmul.f32 %v1509, %v1511
    %v1513 = vadd.f32 %v1509, %v1512
    %vm1514 = vweird.f32 %v1509
    %v1515 = vsel %vm1514, %v1509, %v1513
    %s1516 = vtos %v1515
    %s1517 = smul.f32 %s1508, %s1516
    %v1518 = vld [vmem:[%s8] sm:$0x3]
    %v1519 = vld [vmem:[%s9] sm:$0x3]
    %vm1520 = vcmask 74752
    %v1521 = vsel %vm1520, %v1518, -inf
    %1522 = vmax.xlane.f32.xlu0 %v1521
    %v1523 = vpop.xlane.xlu0 %1522
    %v1524 = vsub.f32 %v1518, %v1523
    %v1525 = vmul.f32 %v1524, 1.442695
    %v1526 = vpow.pop %v1525
    %v1527 = vsel %vm1520, %v1526, 0.0
    %1528 = vadd.xlane.f32.xlu0 %v1527
    %v1529 = vpop.xlane.xlu0 %1528
    %v1530 = vrcp.pop %v1529
    %v1531 = vmul.f32 %v1529, %v1530
    %v1532 = vsub.f32 1.0, %v1531
    %v1533 = vmul.f32 %v1530, %v1532
    %v1534 = vadd.f32 %v1530, %v1533
    %vm1535 = vweird.f32 %v1529
    %vm1536 = vweird.f32 %v1530
    %vm1537 = vmor %vm1535, %vm1536
    %v1538 = vsel %vm1537, %v1530, %v1534
    %v1539 = vand.u32 2147483647, %v1529
    %vm1540 = vcmp.eq.f32.partialorder %v1539, 8.507059e+37
    %v1541 = vand.u32 %v1529, 2147483648
    %v1542 = vor.u32 1.1754944e-38, %v1541
    %v1543 = vsel %vm1540, %v1542, %v1538
    %v1544 = vmul.f32 %v1526, %v1543
    %v1545 = vadd.f32 %v1544, 1e-45
    %v1546 = vmax.f32 %v1545, 1.1754944e-38
    %v1547 = vsel %vm1520, %v1519, -inf
    %1548 = vmax.xlane.f32.xlu0 %v1547
    %v1549 = vpop.xlane.xlu0 %1548
    %v1550 = vsub.f32 %v1519, %v1549
    %v1551 = vmul.f32 %v1550, 1.442695
    %v1552 = vpow.pop %v1551
    %v1553 = vsel %vm1520, %v1552, 0.0
    %1554 = vadd.xlane.f32.xlu0 %v1553
    %v1555 = vpop.xlane.xlu0 %1554
    %v1556 = vrcp.pop %v1555
    %v1557 = vmul.f32 %v1555, %v1556
    %v1558 = vsub.f32 1.0, %v1557
    %v1559 = vmul.f32 %v1556, %v1558
    %v1560 = vadd.f32 %v1556, %v1559
    %vm1561 = vweird.f32 %v1555
    %vm1562 = vweird.f32 %v1556
    %vm1563 = vmor %vm1561, %vm1562
    %v1564 = vsel %vm1563, %v1556, %v1560
    %v1565 = vand.u32 2147483647, %v1555
    %vm1566 = vcmp.eq.f32.partialorder %v1565, 8.507059e+37
    %v1567 = vand.u32 %v1555, 2147483648
    %v1568 = vor.u32 1.1754944e-38, %v1567
    %v1569 = vsel %vm1566, %v1568, %v1564
    %v1570 = vmul.f32 %v1552, %v1569
    %v1571 = vadd.f32 %v1570, 1e-45
    %v1572 = vmax.f32 %v1571, 1.1754944e-38
    %v1573 = vadd.f32 %v1546, %v1572
    %v1574 = vmul.f32 %v1573, 0.5
    %v1575 = vlog2.pop %v1574
    %v1576 = vmul.f32 %v1575, 0.6931472
    %v1577 = vlog2.pop %v1546
    %v1578 = vmul.f32 %v1577, 0.6931472
    %v1579 = vsub.f32 %v1578, %v1576
    %v1580 = vmul.f32 %v1546, %v1579
    %v1581 = vsel %vm1520, %v1580, 0.0
    %1582 = vadd.xlane.f32.xlu0 %v1581
    %v1583 = vpop.xlane.xlu0 %1582
    %v1584 = vrot.slane %v1583, 4
    %v1585 = vadd.f32 %v1583, %v1584
    %v1586 = vrot.slane %v1585, 2
    %v1587 = vadd.f32 %v1585, %v1586
    %v1588 = vrot.slane %v1587, 1
    %v1589 = vadd.f32 %v1587, %v1588
    %s1590 = vtos %v1589
    %v1591 = vrcp.pop 2.0
    %v1592 = vmul.f32 2.0, %v1591
    %v1593 = vsub.f32 1.0, %v1592
    %v1594 = vmul.f32 %v1591, %v1593
    %v1595 = vadd.f32 %v1591, %v1594
    %vm1596 = vweird.f32 %v1591
    %v1597 = vsel %vm1596, %v1591, %v1595
    %s1598 = vtos %v1597
    %s1599 = smul.f32 %s1590, %s1598
    %v1600 = vlog2.pop %v1572
    %v1601 = vmul.f32 %v1600, 0.6931472
    %v1602 = vsub.f32 %v1601, %v1576
    %v1603 = vmul.f32 %v1572, %v1602
    %v1604 = vsel %vm1520, %v1603, 0.0
    %1605 = vadd.xlane.f32.xlu0 %v1604
    %v1606 = vpop.xlane.xlu0 %1605
    %v1607 = vrot.slane %v1606, 4
    %v1608 = vadd.f32 %v1606, %v1607
    %v1609 = vrot.slane %v1608, 2
    %v1610 = vadd.f32 %v1608, %v1609
    %v1611 = vrot.slane %v1610, 1
    %v1612 = vadd.f32 %v1610, %v1611
    %s1613 = vtos %v1612
    %v1614 = vrcp.pop 2.0
    %v1615 = vmul.f32 2.0, %v1614
    %v1616 = vsub.f32 1.0, %v1615
    %v1617 = vmul.f32 %v1614, %v1616
    %v1618 = vadd.f32 %v1614, %v1617
    %vm1619 = vweird.f32 %v1614
    %v1620 = vsel %vm1619, %v1614, %v1618
    %s1621 = vtos %v1620
    %s1622 = smul.f32 %s1613, %s1621
    %s1623 = sadd.f32 %s1599, %s1622
    %s1624 = smul.f32 %s1623, 0.5
    %v1625 = vrcp.pop 2.0
    %v1626 = vmul.f32 2.0, %v1625
    %v1627 = vsub.f32 1.0, %v1626
    %v1628 = vmul.f32 %v1625, %v1627
    %v1629 = vadd.f32 %v1625, %v1628
    %vm1630 = vweird.f32 %v1625
    %v1631 = vsel %vm1630, %v1625, %v1629
    %s1632 = vtos %v1631
    %s1633 = smul.f32 %s804, %s1632
    %v1634 = vrcp.pop 2.0
    %v1635 = vmul.f32 2.0, %v1634
    %v1636 = vsub.f32 1.0, %v1635
    %v1637 = vmul.f32 %v1634, %v1636
    %v1638 = vadd.f32 %v1634, %v1637
    %vm1639 = vweird.f32 %v1634
    %v1640 = vsel %vm1639, %v1634, %v1638
    %s1641 = vtos %v1640
    %s1642 = smul.f32 %s1517, %s1641
    %s1643 = sadd.f32 %s1633, %s1642
    %s1644 = sadd.f32 %s1643, %s1624
    %v1645 = vstv %s1644
    %vm1646 = vcmask 0
    %1647 = vst.msk [vmem:[#allocation2] sm:$0x1] %vm1646, %v1645
    // Predicated region
    $region42: #{dual_model_forward.5} parent=1 // pred_check
      _
    $region43: #{dual_model_forward.5} parent=1 // pred_check_branch
      %1649 = sbr.rel (0) target = $region45
    $region44: #{dual_model_forward.5} parent=1 // pred_region
      %1651 = vsyncadd [#allocation3], 0
      %s1653 = sshll.u32 [#allocation2], 4
      %s1654 = int_to_ptr.vmem [resolvable:$true] %s1653
      %s1655 = sshll.u32 %s10, 4
      %s1656 = int_to_ptr.hbm [resolvable:$true] %s1655
      %1658 = dma.vmem_to_hbm [thread:$0]  %s1654, 16, %s1656, [#allocation3]
    $region45: #{dual_model_forward.5} parent=1 // pred_fallthru
      _
    // Predicated region
    $region46: #{dual_model_forward.5} parent=1 // pred_check
      _
    $region47: #{dual_model_forward.5} parent=1 // pred_check_branch
      %1660 = sbr.rel (0) target = $region49
    $region48: #{dual_model_forward.5} parent=1 // pred_region
      %1662 = dma.done [#allocation3], 16
    $region49: #{dual_model_forward.5} parent=1 // pred_fallthru
      _
    %1663 = vsyncpa [#allocation3], 1

</llo_original>
